<compile_context>
chip_gen: v6e
topology: v6e:2x2x1
jax: 0.10.0
libtpu: 0.0.40
codegen_flags: <defaults>
</compile_context>

<pallas_src>
import functools

import jax
import jax.numpy as jnp
from jax.experimental import pallas as pl
from jax.experimental.pallas import tpu as pltpu


def _hswish(v):
    return v * jnp.clip(v + 3.0, 0.0, 6.0) * (1.0 / 6.0)


def _hsigmoid(v):
    return jnp.clip(v + 3.0, 0.0, 6.0) * (1.0 / 6.0)


# --------------------------------------------------------------------------- #
# Kernel: B images per grid step, everything 2-D lane-packed (rows, W*C).      #
# --------------------------------------------------------------------------- #
def up_attn_kernel(z_ref, k1_ref, vexp_ref, wse1_ref, bse1_ref, wse2_ref,
                   k3_ref, vout_ref, ry_ref, mx_ref, pool_ref, bcast_ref,
                   out_ref, *, residual, batch, H):
    f32, bf16 = jnp.float32, jnp.bfloat16

    z = z_ref[...].astype(f32)                                      # (B*H, W*Cin), pre-masked
    vexp = vexp_ref[...]                                            # (5, W*Cexp) f32

    # 1x1 expand conv (block-diag kron weight, bf16 operands) + BN + hard-swish
    h = jnp.dot(z.astype(bf16), k1_ref[...], preferred_element_type=f32)   # (B*H, W*Cexp)
    h = _hswish(h * vexp[0:1] + vexp[1:2])

    # k=1 depthwise conv (per-channel scale, BN folded) + hard-swish
    h = _hswish(h * vexp[2:3] + vexp[3:4])

    # Squeeze-and-Excite: per-image avg pool (matmul) -> FC -> ReLU -> FC -> hsigmoid
    pooled = jnp.dot(pool_ref[...], h, preferred_element_type=f32)         # (B, W*Cexp)
    s1 = jnp.dot(pooled.astype(bf16), wse1_ref[...],                       # 1/(H*W) folded
                 preferred_element_type=f32) + bse1_ref[...]
    s1 = jnp.maximum(s1, 0.0)
    gate = _hsigmoid(jnp.dot(s1.astype(bf16), wse2_ref[...],
                             preferred_element_type=f32) + vexp[4:5])      # (B, W*Cexp)
    h = h * jnp.dot(bcast_ref[...], gate, preferred_element_type=f32)      # per-image gate rows

    # 1x1 project conv + folded BN (linear) + residual
    vout = vout_ref[...]
    o = jnp.dot(h.astype(bf16), k3_ref[...], preferred_element_type=f32)   # (B*H, W*Cout)
    o = o * vout[0:1] + vout[1:2]
    if residual:                                                           # static (cin == cout)
        o = o + z

    # Bilinear x2 upsample (align_corners=True), separable:
    #   x-direction on the full batch of rows (lane-dense MXU matmul) ...
    t = jnp.dot(o.astype(bf16), mx_ref[...], preferred_element_type=f32)   # (B*H, 2W*Cout)
    #   ... then y-direction per image (Ry is tiny, exact FLOPs, static unroll).
    ry = ry_ref[...]
    for b in range(batch):
        tb = t[b * H:(b + 1) * H, :]
        u = jnp.dot(ry, tb, preferred_element_type=f32)                    # (2H, 2W*Cout)
        out_ref[b * 2 * H:(b + 1) * 2 * H, :] = u.astype(out_ref.dtype)


# --------------------------------------------------------------------------- #
# Host-side packing of parameters into the lane-packed layout.                 #
# --------------------------------------------------------------------------- #
def _bilinear_matrix(in_size, out_size):
    """Row-interpolation matrix for nn.Upsample(bilinear, align_corners=True)."""
    if in_size == 1:
        return jnp.ones((out_size, 1), jnp.float32)
    pos = jnp.arange(out_size, dtype=jnp.float32) * (in_size - 1) / (out_size - 1)
    lo = jnp.clip(jnp.floor(pos), 0, in_size - 1)
    hi = jnp.minimum(lo + 1, in_size - 1)
    frac = pos - lo
    lo_oh = jax.nn.one_hot(lo.astype(jnp.int32), in_size, dtype=jnp.float32)
    hi_oh = jax.nn.one_hot(hi.astype(jnp.int32), in_size, dtype=jnp.float32)
    return lo_oh * (1.0 - frac)[:, None] + hi_oh * frac[:, None]


def _pack_params(p, H, W, B):
    cout = p['w3'].shape[1]
    eye_w = jnp.eye(W, dtype=jnp.float32)

    k1 = jnp.kron(eye_w, p['w1']).astype(jnp.bfloat16)               # (W*Cin, W*Cexp)
    k3 = jnp.kron(eye_w, p['w3']).astype(jnp.bfloat16)               # (W*Cexp, W*Cout)
    vexp = jnp.stack([jnp.tile(p['bn1_s'], W),                       # (5, W*Cexp) f32
                      jnp.tile(p['bn1_b'], W),
                      jnp.tile(p['w_dw'] * p['bn2_s'], W),
                      jnp.tile(p['bn2_b'], W),
                      jnp.tile(p['b_se2'], W)], axis=0)
    vout = jnp.stack([jnp.tile(p['bn3_s'], W),                       # (2, W*Cout) f32
                      jnp.tile(p['bn3_b'], W)], axis=0)
    wse1 = (jnp.tile(p['w_se1'], (W, 1)) / float(H * W)).astype(jnp.bfloat16)
    bse1 = p['b_se1'][None, :]                                       # (1, cse) f32
    wse2 = jnp.tile(p['w_se2'], (1, W)).astype(jnp.bfloat16)         # (cse, W*Cexp)

    ry = _bilinear_matrix(H, 2 * H)                                  # (2H, H) f32
    rx = _bilinear_matrix(W, 2 * W)                                  # (2W, W)
    mx = jnp.kron(rx.T, jnp.eye(cout, dtype=jnp.float32)).astype(jnp.bfloat16)  # (W*Cout, 2W*Cout)

    # SE pooling / gate-broadcast matrices (per-image sum over H rows, and back).
    pool = jnp.kron(jnp.eye(B, dtype=jnp.float32), jnp.ones((1, H), jnp.float32))   # (B, B*H)
    bcast = jnp.kron(jnp.eye(B, dtype=jnp.float32), jnp.ones((H, 1), jnp.float32))  # (B*H, B)
    return (k1, vexp, wse1, bse1, wse2, k3, vout, ry, mx, pool, bcast)


def _pick_batch_block(N, H, max_rows=512):
    """Largest divisor of N whose row count B*H stays within a reasonable MXU/VMEM budget."""
    best = 1
    for b in range(1, N + 1):
        if N % b == 0 and b * H <= max(max_rows, H):
            best = b
    return best


# --------------------------------------------------------------------------- #
# Public forward: NCHW in, NCHW out (like the PyTorch module).                 #
# --------------------------------------------------------------------------- #
def up_attention_forward(x_nchw, mask_nchw, p):
    N, cin, H, W = x_nchw.shape
    cexp = p['w1'].shape[1]
    cse = p['w_se1'].shape[1]
    cout = p['w3'].shape[1]
    B = _pick_batch_block(N, H)
    steps = N // B

    # z = x * mask fused into the existing NCHW -> lane-packed relayout (exact:
    # the same z feeds the bottleneck and, if cin==cout, the residual branch).
    z = x_nchw * mask_nchw
    z2 = jnp.transpose(z, (0, 2, 3, 1)).reshape(N * H, W * cin).astype(jnp.float32)

    packed = _pack_params(p, H, W, B)
    residual = (cin == cout)      # stride == 1 always in this module
    kernel = functools.partial(up_attn_kernel, residual=residual, batch=B, H=H)

    # Advisory cost estimate + explicit VMEM budget (capped v7x-safe at 64 MiB).
    M = B * H
    flops_step = (2 * M * (W * cin) * (W * cexp)
                  + 2 * M * (W * cexp) * (W * cout)
                  + 2 * B * M * (W * cexp)                    # SE pooling matmul
                  + 4 * B * (W * cexp) * cse                  # SE FCs
                  + 2 * M * B * (W * cexp)                    # gate row-broadcast matmul
                  + 2 * M * (W * cout) * (2 * W * cout)       # x upsample
                  + 2 * B * (2 * H) * H * (2 * W * cout))     # y upsample
    weight_bytes = sum(int(a.size) * a.dtype.itemsize for a in packed)
    io_bytes = int(z2.size) * 4 + N * 2 * H * 2 * W * cout * 4
    cost = pl.CostEstimate(flops=steps * flops_step, transcendentals=0,
                           bytes_accessed=io_bytes + weight_bytes)

    act_bytes = 4 * (M * W * cin + 3 * M * W * cexp + 2 * M * 2 * W * cout)
    vmem_needed = 2 * (weight_bytes + M * W * cin * 4 + M * 2 * (2 * W * cout) * 4) + act_bytes
    vmem_limit = int(min(max(2 * vmem_needed, 32 * 2 ** 20), 64 * 2 ** 20))

    grid_spec = pltpu.PrefetchScalarGridSpec(
        num_scalar_prefetch=0,
        grid=(steps,),
        in_specs=[
            pl.BlockSpec((B * H, W * cin), lambda n: (n, 0)),           # z (packed, pre-masked)
            pl.BlockSpec((W * cin, W * cexp), lambda n: (0, 0)),        # expand weight (bf16)
            pl.BlockSpec((5, W * cexp), lambda n: (0, 0)),              # bn1/dw/bn2/b_se2 rows
            pl.BlockSpec((W * cexp, cse), lambda n: (0, 0)),            # SE fc1 (bf16, mean folded)
            pl.BlockSpec((1, cse), lambda n: (0, 0)),                   # SE b1
            pl.BlockSpec((cse, W * cexp), lambda n: (0, 0)),            # SE fc2 (bf16, tiled)
            pl.BlockSpec((W * cexp, W * cout), lambda n: (0, 0)),       # project weight (bf16)
            pl.BlockSpec((2, W * cout), lambda n: (0, 0)),              # bn3 scale/bias rows
            pl.BlockSpec((2 * H, H), lambda n: (0, 0)),                 # Ry
            pl.BlockSpec((W * cout, 2 * W * cout), lambda n: (0, 0)),   # Mx = kron(Rx^T, I) (bf16)
            pl.BlockSpec((B, B * H), lambda n: (0, 0)),                 # SE pool matrix
            pl.BlockSpec((B * H, B), lambda n: (0, 0)),                 # gate broadcast matrix
        ],
        out_specs=pl.BlockSpec((B * 2 * H, 2 * W * cout), lambda n: (n, 0)),
    )

    out2 = pl.pallas_call(
        kernel,
        out_shape=jax.ShapeDtypeStruct((N * 2 * H, 2 * W * cout), jnp.float32),
        grid_spec=grid_spec,
        compiler_params=pltpu.CompilerParams(
            dimension_semantics=("parallel",),
            vmem_limit_bytes=vmem_limit),
        cost_estimate=cost,
    )(z2, *packed)

    out = out2.reshape(N, 2 * H, 2 * W, cout)
    return jnp.transpose(out, (0, 3, 1, 2))       # module contract is NCHW


# --------------------------------------------------------------------------- #
# Deterministic synthetic parameters (no checkpoint).                          #
# --------------------------------------------------------------------------- #
def init_params(key, ch_in, ch_out):
    cexp = 3 * ch_out                    # exp_channels = 3 * ch_out
    cse = max(cexp // 4, 1)
    ks = jax.random.split(key, 5)
    eps = 1e-5
    bn_s = 1.0 / (1.0 + eps) ** 0.5      # gamma=1, var=1, mean=0, beta=0 (eval fold)
    return dict(
        w1=jax.random.normal(ks[0], (ch_in, cexp), jnp.float32) / (ch_in ** 0.5),
        bn1_s=jnp.full((cexp,), bn_s, jnp.float32),
        bn1_b=jnp.zeros((cexp,), jnp.float32),
        w_dw=jax.random.normal(ks[1], (cexp,), jnp.float32),
        bn2_s=jnp.full((cexp,), bn_s, jnp.float32),
        bn2_b=jnp.zeros((cexp,), jnp.float32),
        w_se1=jax.random.normal(ks[2], (cexp, cse), jnp.float32) / (cexp ** 0.5),
        b_se1=jnp.zeros((cse,), jnp.float32),
        w_se2=jax.random.normal(ks[3], (cse, cexp), jnp.float32) / (cse ** 0.5),
        b_se2=jnp.zeros((cexp,), jnp.float32),
        w3=jax.random.normal(ks[4], (cexp, ch_out), jnp.float32) / (cexp ** 0.5),
        bn3_s=jnp.full((ch_out,), bn_s, jnp.float32),
        bn3_b=jnp.zeros((ch_out,), jnp.float32),
    )


# --------------------------------------------------------------------------- #
# Plain-JAX reference (independent formulation, f32/HIGHEST) for correctness.  #
# --------------------------------------------------------------------------- #
def _upsample_bilinear_x2_ref(x):       # NCHW, align_corners=True
    N, C, H, W = x.shape

    def coords(n_in, n_out):
        idx = jnp.arange(n_out, dtype=jnp.float32)
        src = idx * (n_in - 1) / max(n_out - 1, 1)
        lo = jnp.clip(jnp.floor(src).astype(jnp.int32), 0, n_in - 1)
        hi = jnp.minimum(lo + 1, n_in - 1)
        return lo, hi, src - lo.astype(jnp.float32)

    y0, y1, fy = coords(H, 2 * H)
    x0, x1, fx = coords(W, 2 * W)
    rows = (x[:, :, y0, :] * (1.0 - fy)[None, None, :, None]
            + x[:, :, y1, :] * fy[None, None, :, None])
    return (rows[:, :, :, x0] * (1.0 - fx)[None, None, None, :]
            + rows[:, :, :, x1] * fx[None, None, None, :])


def reference_forward(x_nchw, mask_nchw, p):
    hp = jax.lax.Precision.HIGHEST
    z = x_nchw * mask_nchw
    zh = jnp.transpose(z, (0, 2, 3, 1))                           # NHWC
    h = jnp.einsum('nhwc,ce->nhwe', zh, p['w1'], precision=hp)
    h = _hswish(h * p['bn1_s'] + p['bn1_b'])
    h = _hswish(h * (p['w_dw'] * p['bn2_s']) + p['bn2_b'])
    s = jnp.mean(h, axis=(1, 2))
    s1 = jnp.maximum(jnp.dot(s, p['w_se1'], precision=hp) + p['b_se1'], 0.0)
    gate = _hsigmoid(jnp.dot(s1, p['w_se2'], precision=hp) + p['b_se2'])
    h = h * gate[:, None, None, :]
    o = jnp.einsum('nhwe,eo->nhwo', h, p['w3'], precision=hp)
    o = o * p['bn3_s'] + p['bn3_b']
    if zh.shape[-1] == o.shape[-1]:
        o = o + zh
    return _upsample_bilinear_x2_ref(jnp.transpose(o, (0, 3, 1, 2)))


if __name__ == "__main__":
    ch_in, ch_out = 4, 16
    N, H, W = 2, 16, 16

    key = jax.random.PRNGKey(0)
    kx, km, kw = jax.random.split(key, 3)
    x = jax.random.normal(kx, (N, ch_in, H, W), jnp.float32)           # NCHW
    mask = jax.nn.sigmoid(jax.random.normal(km, (N, 1, H, W), jnp.float32))
    params = init_params(kw, ch_in, ch_out)

    out = jax.block_until_ready(up_attention_forward(x, mask, params))
    assert out.shape == (N, ch_out, 2 * H, 2 * W), out.shape

    ref = jax.block_until_ready(reference_forward(x, mask, params))
    ref_max = float(jnp.max(jnp.abs(ref)))
    max_err = float(jnp.max(jnp.abs(out - ref)))
    # bf16 MXU operands with f32 accumulation vs. a HIGHEST-precision f32 reference.
    assert max_err <= 3e-2 * max(1.0, ref_max), f"max abs err {max_err} (ref max {ref_max})"

    print("KERNEL_OK")
</pallas_src>

<mosaic_0001>
module attributes {stable_mosaic.version = 11 : i64} {
  func.func @up_attn_kernel(%arg0: i32, %arg1: memref<32x64xf32, #tpu.memory_space<vmem>>, %arg2: memref<64x768xbf16, #tpu.memory_space<vmem>>, %arg3: memref<5x768xf32, #tpu.memory_space<vmem>>, %arg4: memref<768x12xbf16, #tpu.memory_space<vmem>>, %arg5: memref<1x12xf32, #tpu.memory_space<vmem>>, %arg6: memref<12x768xbf16, #tpu.memory_space<vmem>>, %arg7: memref<768x256xbf16, #tpu.memory_space<vmem>>, %arg8: memref<2x256xf32, #tpu.memory_space<vmem>>, %arg9: memref<32x16xf32, #tpu.memory_space<vmem>>, %arg10: memref<256x512xbf16, #tpu.memory_space<vmem>>, %arg11: memref<2x32xf32, #tpu.memory_space<vmem>>, %arg12: memref<32x2xf32, #tpu.memory_space<vmem>>, %arg13: memref<64x512xf32, #tpu.memory_space<vmem>>) attributes {dimension_semantics = [#tpu.dimension_semantics<parallel>], iteration_bounds = array<i64: 1>, scalar_prefetch = 0 : i64, scratch_operands = 0 : i64, tpu.core_type = #tpu.core_type<tc>, window_params = [{transform_indices = @transform_0, window_bounds = array<i64: 32, 64>}, {pipeline_mode = #tpu.pipeline_mode<synchronous>, transform_indices = @transform_1, window_bounds = array<i64: 64, 768>}, {pipeline_mode = #tpu.pipeline_mode<synchronous>, transform_indices = @transform_2, window_bounds = array<i64: 5, 768>}, {pipeline_mode = #tpu.pipeline_mode<synchronous>, transform_indices = @transform_3, window_bounds = array<i64: 768, 12>}, {pipeline_mode = #tpu.pipeline_mode<synchronous>, transform_indices = @transform_4, window_bounds = array<i64: 1, 12>}, {pipeline_mode = #tpu.pipeline_mode<synchronous>, transform_indices = @transform_5, window_bounds = array<i64: 12, 768>}, {pipeline_mode = #tpu.pipeline_mode<synchronous>, transform_indices = @transform_6, window_bounds = array<i64: 768, 256>}, {pipeline_mode = #tpu.pipeline_mode<synchronous>, transform_indices = @transform_7, window_bounds = array<i64: 2, 256>}, {pipeline_mode = #tpu.pipeline_mode<synchronous>, transform_indices = @transform_8, window_bounds = array<i64: 32, 16>}, {pipeline_mode = #tpu.pipeline_mode<synchronous>, transform_indices = @transform_9, window_bounds = array<i64: 256, 512>}, {pipeline_mode = #tpu.pipeline_mode<synchronous>, transform_indices = @transform_10, window_bounds = array<i64: 2, 32>}, {pipeline_mode = #tpu.pipeline_mode<synchronous>, transform_indices = @transform_11, window_bounds = array<i64: 32, 2>}, {transform_indices = @transform_12, window_bounds = array<i64: 64, 512>}]} {
    %c0 = arith.constant 0 : index
    %c0_0 = arith.constant 0 : index
    %0 = vector.load %arg1[%c0, %c0_0] : memref<32x64xf32, #tpu.memory_space<vmem>>, vector<32x64xf32>
    %c0_1 = arith.constant 0 : index
    %c0_2 = arith.constant 0 : index
    %1 = vector.load %arg3[%c0_1, %c0_2] : memref<5x768xf32, #tpu.memory_space<vmem>>, vector<5x768xf32>
    %2 = arith.truncf %0 : vector<32x64xf32> to vector<32x64xbf16>
    %c0_3 = arith.constant 0 : index
    %c0_4 = arith.constant 0 : index
    %3 = vector.load %arg2[%c0_3, %c0_4] : memref<64x768xbf16, #tpu.memory_space<vmem>>, vector<64x768xbf16>
    %cst = arith.constant dense<0.000000e+00> : vector<32x768xf32>
    %4 = tpu.matmul %2, %3, %cst {dimension_numbers = #tpu.dot_dimension_numbers<[1], [0], [0], [1], [0, 0, 1, 1], [], []>} : vector<32x64xbf16>, vector<64x768xbf16>, vector<32x768xf32> -> vector<32x768xf32>
    %5 = vector.extract_strided_slice %1 {offsets = [0, 0], sizes = [1, 768], strides = [1, 1]} : vector<5x768xf32> to vector<1x768xf32>
    %6 = vector.broadcast %5 : vector<1x768xf32> to vector<32x768xf32>
    %7 = arith.mulf %4, %6 : vector<32x768xf32>
    %8 = vector.extract_strided_slice %1 {offsets = [1, 0], sizes = [1, 768], strides = [1, 1]} : vector<5x768xf32> to vector<1x768xf32>
    %9 = vector.broadcast %8 : vector<1x768xf32> to vector<32x768xf32>
    %10 = arith.addf %7, %9 : vector<32x768xf32>
    %cst_5 = arith.constant 3.000000e+00 : f32
    %11 = vector.broadcast %cst_5 : f32 to vector<32x768xf32>
    %12 = arith.addf %10, %11 : vector<32x768xf32>
    %cst_6 = arith.constant 0.000000e+00 : f32
    %cst_7 = arith.constant 6.000000e+00 : f32
    %13 = vector.broadcast %cst_6 : f32 to vector<32x768xf32>
    %14 = arith.maximumf %13, %12 : vector<32x768xf32>
    %15 = vector.broadcast %cst_7 : f32 to vector<32x768xf32>
    %16 = arith.minimumf %15, %14 : vector<32x768xf32>
    %17 = arith.mulf %10, %16 : vector<32x768xf32>
    %cst_8 = arith.constant 0.166666672 : f32
    %18 = vector.broadcast %cst_8 : f32 to vector<32x768xf32>
    %19 = arith.mulf %17, %18 : vector<32x768xf32>
    %20 = vector.extract_strided_slice %1 {offsets = [2, 0], sizes = [1, 768], strides = [1, 1]} : vector<5x768xf32> to vector<1x768xf32>
    %21 = vector.broadcast %20 : vector<1x768xf32> to vector<32x768xf32>
    %22 = arith.mulf %19, %21 : vector<32x768xf32>
    %23 = vector.extract_strided_slice %1 {offsets = [3, 0], sizes = [1, 768], strides = [1, 1]} : vector<5x768xf32> to vector<1x768xf32>
    %24 = vector.broadcast %23 : vector<1x768xf32> to vector<32x768xf32>
    %25 = arith.addf %22, %24 : vector<32x768xf32>
    %cst_9 = arith.constant 3.000000e+00 : f32
    %26 = vector.broadcast %cst_9 : f32 to vector<32x768xf32>
    %27 = arith.addf %25, %26 : vector<32x768xf32>
    %cst_10 = arith.constant 0.000000e+00 : f32
    %cst_11 = arith.constant 6.000000e+00 : f32
    %28 = vector.broadcast %cst_10 : f32 to vector<32x768xf32>
    %29 = arith.maximumf %28, %27 : vector<32x768xf32>
    %30 = vector.broadcast %cst_11 : f32 to vector<32x768xf32>
    %31 = arith.minimumf %30, %29 : vector<32x768xf32>
    %32 = arith.mulf %25, %31 : vector<32x768xf32>
    %cst_12 = arith.constant 0.166666672 : f32
    %33 = vector.broadcast %cst_12 : f32 to vector<32x768xf32>
    %34 = arith.mulf %32, %33 : vector<32x768xf32>
    %c0_13 = arith.constant 0 : index
    %c0_14 = arith.constant 0 : index
    %35 = vector.load %arg11[%c0_13, %c0_14] : memref<2x32xf32, #tpu.memory_space<vmem>>, vector<2x32xf32>
    %cst_15 = arith.constant dense<0.000000e+00> : vector<2x768xf32>
    %36 = tpu.matmul %35, %34, %cst_15 {dimension_numbers = #tpu.dot_dimension_numbers<[1], [0], [0], [1], [0, 0, 1, 1], [], []>} : vector<2x32xf32>, vector<32x768xf32>, vector<2x768xf32> -> vector<2x768xf32>
    %37 = arith.truncf %36 : vector<2x768xf32> to vector<2x768xbf16>
    %c0_16 = arith.constant 0 : index
    %c0_17 = arith.constant 0 : index
    %38 = vector.load %arg4[%c0_16, %c0_17] : memref<768x12xbf16, #tpu.memory_space<vmem>>, vector<768x12xbf16>
    %cst_18 = arith.constant dense<0.000000e+00> : vector<2x12xf32>
    %39 = tpu.matmul %37, %38, %cst_18 {dimension_numbers = #tpu.dot_dimension_numbers<[1], [0], [0], [1], [0, 0, 1, 1], [], []>} : vector<2x768xbf16>, vector<768x12xbf16>, vector<2x12xf32> -> vector<2x12xf32>
    %c0_19 = arith.constant 0 : index
    %c0_20 = arith.constant 0 : index
    %40 = vector.load %arg5[%c0_19, %c0_20] : memref<1x12xf32, #tpu.memory_space<vmem>>, vector<1x12xf32>
    %41 = vector.broadcast %40 : vector<1x12xf32> to vector<2x12xf32>
    %42 = arith.addf %39, %41 : vector<2x12xf32>
    %cst_21 = arith.constant 0.000000e+00 : f32
    %43 = vector.broadcast %cst_21 : f32 to vector<2x12xf32>
    %44 = arith.maximumf %42, %43 : vector<2x12xf32>
    %45 = arith.truncf %44 : vector<2x12xf32> to vector<2x12xbf16>
    %c0_22 = arith.constant 0 : index
    %c0_23 = arith.constant 0 : index
    %46 = vector.load %arg6[%c0_22, %c0_23] : memref<12x768xbf16, #tpu.memory_space<vmem>>, vector<12x768xbf16>
    %cst_24 = arith.constant dense<0.000000e+00> : vector<2x768xf32>
    %47 = tpu.matmul %45, %46, %cst_24 {dimension_numbers = #tpu.dot_dimension_numbers<[1], [0], [0], [1], [0, 0, 1, 1], [], []>} : vector<2x12xbf16>, vector<12x768xbf16>, vector<2x768xf32> -> vector<2x768xf32>
    %48 = vector.extract_strided_slice %1 {offsets = [4, 0], sizes = [1, 768], strides = [1, 1]} : vector<5x768xf32> to vector<1x768xf32>
    %49 = vector.broadcast %48 : vector<1x768xf32> to vector<2x768xf32>
    %50 = arith.addf %47, %49 : vector<2x768xf32>
    %cst_25 = arith.constant 3.000000e+00 : f32
    %51 = vector.broadcast %cst_25 : f32 to vector<2x768xf32>
    %52 = arith.addf %50, %51 : vector<2x768xf32>
    %cst_26 = arith.constant 0.000000e+00 : f32
    %cst_27 = arith.constant 6.000000e+00 : f32
    %53 = vector.broadcast %cst_26 : f32 to vector<2x768xf32>
    %54 = arith.maximumf %53, %52 : vector<2x768xf32>
    %55 = vector.broadcast %cst_27 : f32 to vector<2x768xf32>
    %56 = arith.minimumf %55, %54 : vector<2x768xf32>
    %cst_28 = arith.constant 0.166666672 : f32
    %57 = vector.broadcast %cst_28 : f32 to vector<2x768xf32>
    %58 = arith.mulf %56, %57 : vector<2x768xf32>
    %c0_29 = arith.constant 0 : index
    %c0_30 = arith.constant 0 : index
    %59 = vector.load %arg12[%c0_29, %c0_30] : memref<32x2xf32, #tpu.memory_space<vmem>>, vector<32x2xf32>
    %cst_31 = arith.constant dense<0.000000e+00> : vector<32x768xf32>
    %60 = tpu.matmul %59, %58, %cst_31 {dimension_numbers = #tpu.dot_dimension_numbers<[1], [0], [0], [1], [0, 0, 1, 1], [], []>} : vector<32x2xf32>, vector<2x768xf32>, vector<32x768xf32> -> vector<32x768xf32>
    %61 = arith.mulf %34, %60 : vector<32x768xf32>
    %c0_32 = arith.constant 0 : index
    %c0_33 = arith.constant 0 : index
    %62 = vector.load %arg8[%c0_32, %c0_33] : memref<2x256xf32, #tpu.memory_space<vmem>>, vector<2x256xf32>
    %63 = arith.truncf %61 : vector<32x768xf32> to vector<32x768xbf16>
    %c0_34 = arith.constant 0 : index
    %c0_35 = arith.constant 0 : index
    %64 = vector.load %arg7[%c0_34, %c0_35] : memref<768x256xbf16, #tpu.memory_space<vmem>>, vector<768x256xbf16>
    %cst_36 = arith.constant dense<0.000000e+00> : vector<32x256xf32>
    %65 = tpu.matmul %63, %64, %cst_36 {dimension_numbers = #tpu.dot_dimension_numbers<[1], [0], [0], [1], [0, 0, 1, 1], [], []>} : vector<32x768xbf16>, vector<768x256xbf16>, vector<32x256xf32> -> vector<32x256xf32>
    %66 = vector.extract_strided_slice %62 {offsets = [0, 0], sizes = [1, 256], strides = [1, 1]} : vector<2x256xf32> to vector<1x256xf32>
    %67 = vector.broadcast %66 : vector<1x256xf32> to vector<32x256xf32>
    %68 = arith.mulf %65, %67 : vector<32x256xf32>
    %69 = vector.extract_strided_slice %62 {offsets = [1, 0], sizes = [1, 256], strides = [1, 1]} : vector<2x256xf32> to vector<1x256xf32>
    %70 = vector.broadcast %69 : vector<1x256xf32> to vector<32x256xf32>
    %71 = arith.addf %68, %70 : vector<32x256xf32>
    %72 = arith.truncf %71 : vector<32x256xf32> to vector<32x256xbf16>
    %c0_37 = arith.constant 0 : index
    %c0_38 = arith.constant 0 : index
    %73 = vector.load %arg10[%c0_37, %c0_38] : memref<256x512xbf16, #tpu.memory_space<vmem>>, vector<256x512xbf16>
    %cst_39 = arith.constant dense<0.000000e+00> : vector<32x512xf32>
    %74 = tpu.matmul %72, %73, %cst_39 {dimension_numbers = #tpu.dot_dimension_numbers<[1], [0], [0], [1], [0, 0, 1, 1], [], []>} : vector<32x256xbf16>, vector<256x512xbf16>, vector<32x512xf32> -> vector<32x512xf32>
    %c0_40 = arith.constant 0 : index
    %c0_41 = arith.constant 0 : index
    %75 = vector.load %arg9[%c0_40, %c0_41] : memref<32x16xf32, #tpu.memory_space<vmem>>, vector<32x16xf32>
    %76 = vector.extract_strided_slice %74 {offsets = [0, 0], sizes = [16, 512], strides = [1, 1]} : vector<32x512xf32> to vector<16x512xf32>
    %cst_42 = arith.constant dense<0.000000e+00> : vector<32x512xf32>
    %77 = tpu.matmul %75, %76, %cst_42 {dimension_numbers = #tpu.dot_dimension_numbers<[1], [0], [0], [1], [0, 0, 1, 1], [], []>} : vector<32x16xf32>, vector<16x512xf32>, vector<32x512xf32> -> vector<32x512xf32>
    %c0_43 = arith.constant 0 : index
    %c0_44 = arith.constant 0 : index
    %78 = vector.load %arg13[%c0_43, %c0_44] : memref<64x512xf32, #tpu.memory_space<vmem>>, vector<32x512xf32>
    tpu.vector_store %arg13[%c0_43, %c0_44], %77 {strides = array<i32>} : memref<64x512xf32, #tpu.memory_space<vmem>>, vector<32x512xf32>,
    %79 = vector.extract_strided_slice %74 {offsets = [16, 0], sizes = [16, 512], strides = [1, 1]} : vector<32x512xf32> to vector<16x512xf32>
    %cst_45 = arith.constant dense<0.000000e+00> : vector<32x512xf32>
    %80 = tpu.matmul %75, %79, %cst_45 {dimension_numbers = #tpu.dot_dimension_numbers<[1], [0], [0], [1], [0, 0, 1, 1], [], []>} : vector<32x16xf32>, vector<16x512xf32>, vector<32x512xf32> -> vector<32x512xf32>
    %c32 = arith.constant 32 : index
    %c0_46 = arith.constant 0 : index
    %81 = vector.load %arg13[%c32, %c0_46] : memref<64x512xf32, #tpu.memory_space<vmem>>, vector<32x512xf32>
    tpu.vector_store %arg13[%c32, %c0_46], %80 {strides = array<i32>} : memref<64x512xf32, #tpu.memory_space<vmem>>, vector<32x512xf32>,
    return
  }
  func.func @transform_0(%arg0: i32) -> (i32, i32) {
    %c0_i32 = arith.constant 0 : i32
    %c0_i32_0 = arith.constant 0 : i32
    return %arg0, %c0_i32 : i32, i32
  }
  func.func @transform_1(%arg0: i32) -> (i32, i32) {
    %c0_i32 = arith.constant 0 : i32
    %c0_i32_0 = arith.constant 0 : i32
    %c0_i32_1 = arith.constant 0 : i32
    return %c0_i32, %c0_i32_0 : i32, i32
  }
  func.func @transform_2(%arg0: i32) -> (i32, i32) {
    %c0_i32 = arith.constant 0 : i32
    %c0_i32_0 = arith.constant 0 : i32
    %c0_i32_1 = arith.constant 0 : i32
    return %c0_i32, %c0_i32_0 : i32, i32
  }
  func.func @transform_3(%arg0: i32) -> (i32, i32) {
    %c0_i32 = arith.constant 0 : i32
    %c0_i32_0 = arith.constant 0 : i32
    %c0_i32_1 = arith.constant 0 : i32
    return %c0_i32, %c0_i32_0 : i32, i32
  }
  func.func @transform_4(%arg0: i32) -> (i32, i32) {
    %c0_i32 = arith.constant 0 : i32
    %c0_i32_0 = arith.constant 0 : i32
    %c0_i32_1 = arith.constant 0 : i32
    return %c0_i32, %c0_i32_0 : i32, i32
  }
  func.func @transform_5(%arg0: i32) -> (i32, i32) {
    %c0_i32 = arith.constant 0 : i32
    %c0_i32_0 = arith.constant 0 : i32
    %c0_i32_1 = arith.constant 0 : i32
    return %c0_i32, %c0_i32_0 : i32, i32
  }
  func.func @transform_6(%arg0: i32) -> (i32, i32) {
    %c0_i32 = arith.constant 0 : i32
    %c0_i32_0 = arith.constant 0 : i32
    %c0_i32_1 = arith.constant 0 : i32
    return %c0_i32, %c0_i32_0 : i32, i32
  }
  func.func @transform_7(%arg0: i32) -> (i32, i32) {
    %c0_i32 = arith.constant 0 : i32
    %c0_i32_0 = arith.constant 0 : i32
    %c0_i32_1 = arith.constant 0 : i32
    return %c0_i32, %c0_i32_0 : i32, i32
  }
  func.func @transform_8(%arg0: i32) -> (i32, i32) {
    %c0_i32 = arith.constant 0 : i32
    %c0_i32_0 = arith.constant 0 : i32
    %c0_i32_1 = arith.constant 0 : i32
    return %c0_i32, %c0_i32_0 : i32, i32
  }
  func.func @transform_9(%arg0: i32) -> (i32, i32) {
    %c0_i32 = arith.constant 0 : i32
    %c0_i32_0 = arith.constant 0 : i32
    %c0_i32_1 = arith.constant 0 : i32
    return %c0_i32, %c0_i32_0 : i32, i32
  }
  func.func @transform_10(%arg0: i32) -> (i32, i32) {
    %c0_i32 = arith.constant 0 : i32
    %c0_i32_0 = arith.constant 0 : i32
    %c0_i32_1 = arith.constant 0 : i32
    return %c0_i32, %c0_i32_0 : i32, i32
  }
  func.func @transform_11(%arg0: i32) -> (i32, i32) {
    %c0_i32 = arith.constant 0 : i32
    %c0_i32_0 = arith.constant 0 : i32
    %c0_i32_1 = arith.constant 0 : i32
    return %c0_i32, %c0_i32_0 : i32, i32
  }
  func.func @transform_12(%arg0: i32) -> (i32, i32) {
    %c0_i32 = arith.constant 0 : i32
    %c0_i32_0 = arith.constant 0 : i32
    return %arg0, %c0_i32 : i32, i32
  }
}

</mosaic_0001>

<llo_original>
// kernel: tpu_custom_call.1
$region0: #{tpu_custom_call.1}
  #allocation0 [shape = 'u32[]', space=smem, size = 0x4, offset = 0x4, fixed_abs, tag = 'smem constant byte address 0x4 - core index']
  #allocation1 [shape = 'u32[144,128]{1,0:T(1,128)}', space=vmem, size = 0x12000, scoped, tag = 'internal scratch']
  %s0 = inlined_call_operand.hbm [shape: f32[32,64], index: 0, kind: input, shape index: {}]
  %s1 = inlined_call_operand.hbm [shape: bf16[64,768], index: 1, kind: input, shape index: {}]
  %s2 = inlined_call_operand.hbm [shape: f32[5,768], index: 2, kind: input, shape index: {}]
  %s3 = inlined_call_operand.vmem [shape: bf16[768,12], index: 3, kind: input, shape index: {}]
  %s4 = inlined_call_operand.vmem [shape: f32[1,12], index: 4, kind: input, shape index: {}]
  %s5 = inlined_call_operand.hbm [shape: bf16[12,768], index: 5, kind: input, shape index: {}]
  %s6 = inlined_call_operand.hbm [shape: bf16[768,256], index: 6, kind: input, shape index: {}]
  %s7 = inlined_call_operand.vmem [shape: f32[2,256], index: 7, kind: input, shape index: {}]
  %s8 = inlined_call_operand.vmem [shape: f32[32,16], index: 8, kind: input, shape index: {}]
  %s9 = inlined_call_operand.vmem [shape: bf16[256,512], index: 9, kind: input, shape index: {}]
  %s10 = inlined_call_operand.vmem [shape: f32[2,32], index: 10, kind: input, shape index: {}]
  %s11 = inlined_call_operand.vmem [shape: f32[32,2], index: 11, kind: input, shape index: {}]
  %s12 = inlined_call_operand.hbm [shape: f32[64,512], index: 12, kind: output, shape index: {}]
  %s13 = sld [smem:[#allocation0]]
  $region78: #{tpu_custom_call.1} parent=0
    _
  %s15 = ssub.s32 1, %s13
  %s16 = scalar_select 0, %s15, %s13
  $region1: #{tpu_custom_call.1} parent=0
    #allocation2 [shape = 'u8[16384]{0}', space=vmem, size = 0x4000, scoped, tag = 'input window, operand 0, single buffered']
    #allocation3 [shape = 's32[1]{0}', space=sflag, size = 0x4, scoped, tag = 'scoped memory for tpu_custom_call.1']
    #allocation4 [shape = 's32[1]{0}', space=sflag, size = 0x4, scoped, tag = 'scoped memory for tpu_custom_call.1']
    #allocation5 [shape = 'u8[98304]{0}', space=vmem, size = 0x18000, scoped, tag = 'input window, operand 1, single buffered']
    #allocation6 [shape = 's32[1]{0}', space=sflag, size = 0x4, scoped, tag = 'scoped memory for tpu_custom_call.1']
    #allocation7 [shape = 'u8[24576]{0}', space=vmem, size = 0x6000, scoped, tag = 'input window, operand 2, single buffered']
    #allocation8 [shape = 'u8[24576]{0}', space=vmem, size = 0x6000, scoped, tag = 'input window, operand 5, single buffered']
    #allocation9 [shape = 's32[1]{0}', space=sflag, size = 0x4, scoped, tag = 'scoped memory for tpu_custom_call.1']
    #allocation10 [shape = 'u8[393216]{0}', space=vmem, size = 0x60000, scoped, tag = 'input window, operand 6, single buffered']
    #allocation11 [shape = 'u8[131072]{0}', space=vmem, size = 0x20000, scoped, tag = 'output window, operand 0, single buffered']
    %17 = vsyncpa [#allocation3], 0
    %18 = vsyncpa [#allocation6], 0
    %19 = vsyncpa [#allocation9], 0
    %20 = vsyncpa [#allocation4], 0
    // Predicated region
    $region2: #{tpu_custom_call.1} parent=1 // pred_check
      _
    $region3: #{tpu_custom_call.1} parent=1 // pred_check_branch
      %22 = sbr.rel (0) target = $region5
    $region4: #{tpu_custom_call.1} parent=1 // pred_region
      %s24 = ssub.s32 512, 512
      %25 = vsyncadd [#allocation3], %s24
      %s26 = sshll.u32 [#allocation2], 4
      %s27 = int_to_ptr.vmem [resolvable:$true] %s26
      %32 = dma.hbm_to_vmem [thread:$0]  %s0, 512, %s27, [#allocation3], 128, 128, 8
    $region5: #{tpu_custom_call.1} parent=1 // pred_fallthru
      _
    // Predicated region
    $region6: #{tpu_custom_call.1} parent=1 // pred_check
      _
    $region7: #{tpu_custom_call.1} parent=1 // pred_check_branch
      %34 = sbr.rel (0) target = $region9
    $region8: #{tpu_custom_call.1} parent=1 // pred_region
      %s36 = ssub.s32 3072, 3072
      %37 = vsyncadd [#allocation6], %s36
      %s38 = sshll.u32 [#allocation5], 4
      %s39 = int_to_ptr.vmem [resolvable:$true] %s38
      %44 = dma.hbm_to_vmem [thread:$0]  %s1, 3072, %s39, [#allocation6], 384, 384, 24
    $region9: #{tpu_custom_call.1} parent=1 // pred_fallthru
      _
    // Predicated region
    $region10: #{tpu_custom_call.1} parent=1 // pred_check
      _
    $region11: #{tpu_custom_call.1} parent=1 // pred_check_branch
      %46 = sbr.rel (0) target = $region13
    $region12: #{tpu_custom_call.1} parent=1 // pred_region
      %s48 = ssub.s32 768, 768
      %49 = vsyncadd [#allocation6], %s48
      %s51 = sshll.u32 [#allocation7], 4
      %s52 = int_to_ptr.vmem [resolvable:$true] %s51
      %54 = dma.hbm_to_vmem [thread:$0]  %s2, 768, %s52, [#allocation6]
    $region13: #{tpu_custom_call.1} parent=1 // pred_fallthru
      _
    // Predicated region
    $region14: #{tpu_custom_call.1} parent=1 // pred_check
      _
    $region15: #{tpu_custom_call.1} parent=1 // pred_check_branch
      %56 = sbr.rel (0) target = $region17
    $region16: #{tpu_custom_call.1} parent=1 // pred_region
      _
    $region17: #{tpu_custom_call.1} parent=1 // pred_fallthru
      _
    // Predicated region
    $region18: #{tpu_custom_call.1} parent=1 // pred_check
      _
    $region19: #{tpu_custom_call.1} parent=1 // pred_check_branch
      %58 = sbr.rel (0) target = $region21
    $region20: #{tpu_custom_call.1} parent=1 // pred_region
      _
    $region21: #{tpu_custom_call.1} parent=1 // pred_fallthru
      _
    // Predicated region
    $region22: #{tpu_custom_call.1} parent=1 // pred_check
      _
    $region23: #{tpu_custom_call.1} parent=1 // pred_check_branch
      %60 = sbr.rel (0) target = $region25
    $region24: #{tpu_custom_call.1} parent=1 // pred_region
      %s62 = ssub.s32 768, 768
      %63 = vsyncadd [#allocation9], %s62
      %s64 = sshll.u32 [#allocation8], 4
      %s65 = int_to_ptr.vmem [resolvable:$true] %s64
      %70 = dma.hbm_to_vmem [thread:$0]  %s5, 768, %s65, [#allocation9], 384, 384, 24
    $region25: #{tpu_custom_call.1} parent=1 // pred_fallthru
      _
    // Predicated region
    $region26: #{tpu_custom_call.1} parent=1 // pred_check
      _
    $region27: #{tpu_custom_call.1} parent=1 // pred_check_branch
      %72 = sbr.rel (0) target = $region29
    $region28: #{tpu_custom_call.1} parent=1 // pred_region
      %s74 = ssub.s32 12288, 12288
      %75 = vsyncadd [#allocation9], %s74
      %s76 = sshll.u32 [#allocation10], 4
      %s77 = int_to_ptr.vmem [resolvable:$true] %s76
      %82 = dma.hbm_to_vmem [thread:$0]  %s6, 12288, %s77, [#allocation9], 128, 128, 8
    $region29: #{tpu_custom_call.1} parent=1 // pred_fallthru
      _
    // Predicated region
    $region30: #{tpu_custom_call.1} parent=1 // pred_check
      _
    $region31: #{tpu_custom_call.1} parent=1 // pred_check_branch
      %84 = sbr.rel (0) target = $region33
    $region32: #{tpu_custom_call.1} parent=1 // pred_region
      _
    $region33: #{tpu_custom_call.1} parent=1 // pred_fallthru
      _
    // Predicated region
    $region34: #{tpu_custom_call.1} parent=1 // pred_check
      _
    $region35: #{tpu_custom_call.1} parent=1 // pred_check_branch
      %86 = sbr.rel (0) target = $region37
    $region36: #{tpu_custom_call.1} parent=1 // pred_region
      _
    $region37: #{tpu_custom_call.1} parent=1 // pred_fallthru
      _
    // Predicated region
    $region38: #{tpu_custom_call.1} parent=1 // pred_check
      _
    $region39: #{tpu_custom_call.1} parent=1 // pred_check_branch
      %88 = sbr.rel (0) target = $region41
    $region40: #{tpu_custom_call.1} parent=1 // pred_region
      _
    $region41: #{tpu_custom_call.1} parent=1 // pred_fallthru
      _
    // Predicated region
    $region42: #{tpu_custom_call.1} parent=1 // pred_check
      _
    $region43: #{tpu_custom_call.1} parent=1 // pred_check_branch
      %90 = sbr.rel (0) target = $region45
    $region44: #{tpu_custom_call.1} parent=1 // pred_region
      _
    $region45: #{tpu_custom_call.1} parent=1 // pred_fallthru
      _
    // Predicated region
    $region46: #{tpu_custom_call.1} parent=1 // pred_check
      _
    $region47: #{tpu_custom_call.1} parent=1 // pred_check_branch
      %92 = sbr.rel (0) target = $region49
    $region48: #{tpu_custom_call.1} parent=1 // pred_region
      _
    $region49: #{tpu_custom_call.1} parent=1 // pred_fallthru
      _
    // Predicated region
    $region50: #{tpu_custom_call.1} parent=1 // pred_check
      _
    $region51: #{tpu_custom_call.1} parent=1 // pred_check_branch
      %94 = sbr.rel (0) target = $region53
    $region52: #{tpu_custom_call.1} parent=1 // pred_region
      %95 = dma.done [#allocation3], 512
    $region53: #{tpu_custom_call.1} parent=1 // pred_fallthru
      _
    // Predicated region
    $region54: #{tpu_custom_call.1} parent=1 // pred_check
      _
    $region55: #{tpu_custom_call.1} parent=1 // pred_check_branch
      %97 = sbr.rel (0) target = $region57
    $region56: #{tpu_custom_call.1} parent=1 // pred_region
      %98 = dma.done [#allocation6], 3072
    $region57: #{tpu_custom_call.1} parent=1 // pred_fallthru
      _
    // Predicated region
    $region58: #{tpu_custom_call.1} parent=1 // pred_check
      _
    $region59: #{tpu_custom_call.1} parent=1 // pred_check_branch
      %100 = sbr.rel (0) target = $region61
    $region60: #{tpu_custom_call.1} parent=1 // pred_region
      %101 = dma.done [#allocation6], 768
    $region61: #{tpu_custom_call.1} parent=1 // pred_fallthru
      _
    // Predicated region
    $region62: #{tpu_custom_call.1} parent=1 // pred_check
      _
    $region63: #{tpu_custom_call.1} parent=1 // pred_check_branch
      %103 = sbr.rel (0) target = $region65
    $region64: #{tpu_custom_call.1} parent=1 // pred_region
      %104 = dma.done [#allocation9], 768
    $region65: #{tpu_custom_call.1} parent=1 // pred_fallthru
      _
    // Predicated region
    $region66: #{tpu_custom_call.1} parent=1 // pred_check
      _
    $region67: #{tpu_custom_call.1} parent=1 // pred_check_branch
      %106 = sbr.rel (0) target = $region69
    $region68: #{tpu_custom_call.1} parent=1 // pred_region
      %107 = dma.done [#allocation9], 12288
    $region69: #{tpu_custom_call.1} parent=1 // pred_fallthru
      _
    %v109 = vld [vmem:[#allocation2] sm:$0xff]
    %v110 = vld [vmem:[#allocation2 + $0x8] sm:$0xff]
    %v111 = vld [vmem:[#allocation2 + $0x10] sm:$0xff]
    %v112 = vld [vmem:[#allocation2 + $0x18] sm:$0xff]
    %v113 = vld [vmem:[#allocation7] sm:$0x1f]
    %v114 = vld [vmem:[#allocation7 + $0x8] sm:$0x1f]
    %v115 = vld [vmem:[#allocation7 + $0x10] sm:$0x1f]
    %v116 = vld [vmem:[#allocation7 + $0x18] sm:$0x1f]
    %v117 = vld [vmem:[#allocation7 + $0x20] sm:$0x1f]
    %v118 = vld [vmem:[#allocation7 + $0x28] sm:$0x1f]
    %v119 = vpack.c.bf16 %v110, %v109
    %v120 = vpack.c.bf16 %v112, %v111
    %v121 = vld [vmem:[#allocation5] sm:$0xff]
    %v122 = vld [vmem:[#allocation5 + $0x8] sm:$0xff]
    %v123 = vld [vmem:[#allocation5 + $0x10] sm:$0xff]
    %v124 = vld [vmem:[#allocation5 + $0x18] sm:$0xff]
    %v125 = vld [vmem:[#allocation5 + $0x20] sm:$0xff]
    %v126 = vld [vmem:[#allocation5 + $0x28] sm:$0xff]
    %v127 = vld [vmem:[#allocation5 + $0x30] sm:$0xff]
    %v128 = vld [vmem:[#allocation5 + $0x38] sm:$0xff]
    %v129 = vld [vmem:[#allocation5 + $0x40] sm:$0xff]
    %v130 = vld [vmem:[#allocation5 + $0x48] sm:$0xff]
    %v131 = vld [vmem:[#allocation5 + $0x50] sm:$0xff]
    %v132 = vld [vmem:[#allocation5 + $0x58] sm:$0xff]
    %v133 = vld [vmem:[#allocation5 + $0x60] sm:$0xff]
    %v134 = vld [vmem:[#allocation5 + $0x68] sm:$0xff]
    %v135 = vld [vmem:[#allocation5 + $0x70] sm:$0xff]
    %v136 = vld [vmem:[#allocation5 + $0x78] sm:$0xff]
    %v137 = vld [vmem:[#allocation5 + $0x80] sm:$0xff]
    %v138 = vld [vmem:[#allocation5 + $0x88] sm:$0xff]
    %v139 = vld [vmem:[#allocation5 + $0x90] sm:$0xff]
    %v140 = vld [vmem:[#allocation5 + $0x98] sm:$0xff]
    %v141 = vld [vmem:[#allocation5 + $0xa0] sm:$0xff]
    %v142 = vld [vmem:[#allocation5 + $0xa8] sm:$0xff]
    %v143 = vld [vmem:[#allocation5 + $0xb0] sm:$0xff]
    %v144 = vld [vmem:[#allocation5 + $0xb8] sm:$0xff]
    %v169 = vunpack.c.l.b16 %v121
    %v170 = vunpack.c.h.b16 %v121
    %v171 = vunpack.c.l.b16 %v122
    %v172 = vunpack.c.h.b16 %v122
    %v173 = vunpack.c.l.b16 %v123
    %v174 = vunpack.c.h.b16 %v123
    %v175 = vunpack.c.l.b16 %v124
    %v176 = vunpack.c.h.b16 %v124
    %v177 = vunpack.c.l.b16 %v125
    %v178 = vunpack.c.h.b16 %v125
    %v179 = vunpack.c.l.b16 %v126
    %v180 = vunpack.c.h.b16 %v126
    %v181 = vunpack.c.l.b16 %v127
    %v182 = vunpack.c.h.b16 %v127
    %v183 = vunpack.c.l.b16 %v128
    %v184 = vunpack.c.h.b16 %v128
    %v185 = vunpack.c.l.b16 %v129
    %v186 = vunpack.c.h.b16 %v129
    %v187 = vunpack.c.l.b16 %v130
    %v188 = vunpack.c.h.b16 %v130
    %v189 = vunpack.c.l.b16 %v131
    %v190 = vunpack.c.h.b16 %v131
    %v191 = vunpack.c.l.b16 %v132
    %v192 = vunpack.c.h.b16 %v132
    %v193 = vunpack.c.l.b16 %v133
    %v194 = vunpack.c.h.b16 %v133
    %v195 = vunpack.c.l.b16 %v134
    %v196 = vunpack.c.h.b16 %v134
    %v197 = vunpack.c.l.b16 %v135
    %v198 = vunpack.c.h.b16 %v135
    %v199 = vunpack.c.l.b16 %v136
    %v200 = vunpack.c.h.b16 %v136
    %v201 = vunpack.c.l.b16 %v137
    %v202 = vunpack.c.h.b16 %v137
    %v203 = vunpack.c.l.b16 %v138
    %v204 = vunpack.c.h.b16 %v138
    %v205 = vunpack.c.l.b16 %v139
    %v206 = vunpack.c.h.b16 %v139
    %v207 = vunpack.c.l.b16 %v140
    %v208 = vunpack.c.h.b16 %v140
    %v209 = vunpack.c.l.b16 %v141
    %v210 = vunpack.c.h.b16 %v141
    %v211 = vunpack.c.l.b16 %v142
    %v212 = vunpack.c.h.b16 %v142
    %v213 = vunpack.c.l.b16 %v143
    %v214 = vunpack.c.h.b16 %v143
    %v215 = vunpack.c.l.b16 %v144
    %v216 = vunpack.c.h.b16 %v144
    %v217 = vpack.c.b16 %v175, %v169
    %v218 = vpack.c.b16 %v176, %v170
    %v219 = vpack.c.b16 %v177, %v171
    %v220 = vpack.c.b16 %v178, %v172
    %v221 = vpack.c.b16 %v179, %v173
    %v222 = vpack.c.b16 %v180, %v174
    %v223 = vpack.c.b16 %v187, %v181
    %v224 = vpack.c.b16 %v188, %v182
    %v225 = vpack.c.b16 %v189, %v183
    %v226 = vpack.c.b16 %v190, %v184
    %v227 = vpack.c.b16 %v191, %v185
    %v228 = vpack.c.b16 %v192, %v186
    %v229 = vpack.c.b16 %v199, %v193
    %v230 = vpack.c.b16 %v200, %v194
    %v231 = vpack.c.b16 %v201, %v195
    %v232 = vpack.c.b16 %v202, %v196
    %v233 = vpack.c.b16 %v203, %v197
    %v234 = vpack.c.b16 %v204, %v198
    %v235 = vpack.c.b16 %v211, %v205
    %v236 = vpack.c.b16 %v212, %v206
    %v237 = vpack.c.b16 %v213, %v207
    %v238 = vpack.c.b16 %v214, %v208
    %v239 = vpack.c.b16 %v215, %v209
    %v240 = vpack.c.b16 %v216, %v210
    %vm265 = vcmask 523264
    %v267 = vsel %vm265, %v119, 0
    %v270 = vsel %vm265, %v120, 0
    %272 = vmatprep.subr.bf16.mxu0 0
    %273 = vmatpush1.bf16.msra.mxu0 0
    %274 = vmatprep.subr.bf16.mxu0 0
    %275 = vmatpush1.bf16.msra.mxu0 0
    %276 = vmatprep.subr.bf16.mxu0 0
    %277 = vmatpush1.bf16.msra.mxu0 0
    %278 = vmatprep.subr.bf16.mxu0 0
    %279 = vmatpush1.bf16.msra.mxu0 0
    %280 = vmatprep.subr.bf16.mxu0 %v236
    %281 = vmatpush1.bf16.msra.mxu0 %v235
    %282 = vmatprep.subr.bf16.mxu0 %v230
    %283 = vmatpush1.bf16.msra.mxu0 %v229
    %284 = vmatprep.subr.bf16.mxu0 %v224
    %285 = vmatpush1.bf16.msra.mxu0 %v223
    %286 = vmatprep.subr.bf16.mxu0 %v218
    %287 = vmatpush1.bf16.msra.mxu0 %v217
    %288 = vmatprep.subr.bf16.mxu0 0
    %289 = vmatpush2.bf16.msra.mxu0 0
    %290 = vmatprep.subr.bf16.mxu0 0
    %291 = vmatpush2.bf16.msra.mxu0 0
    %292 = vmatprep.subr.bf16.mxu0 0
    %293 = vmatpush2.bf16.msra.mxu0 0
    %294 = vmatprep.subr.bf16.mxu0 0
    %295 = vmatpush2.bf16.msra.mxu0 0
    %296 = vmatprep.subr.bf16.mxu0 0
    %297 = vmatpush2.bf16.msra.mxu0 0
    %298 = vmatprep.subr.bf16.mxu0 0
    %299 = vmatpush2.bf16.msra.mxu0 0
    %300 = vmatprep.subr.bf16.mxu0 0
    %301 = vmatpush2.bf16.msra.mxu0 0
    %302 = vmatprep.subr.bf16.mxu0 0
    %303 = vmatpush2.bf16.msra.mxu0 0
    %304 = vmatprep.mubr.bf16.mxu0 0
    %305 = vmatmul.mubr.bf16.gmra.mxu0 %v267
    %v306 = vpop.f32.mrf.mxu0
    %v307 = vadd.f32 0.0, %v306
    %v308 = vpop.f32.mrf.mxu0
    %v309 = vadd.f32 0.0, %v308
    %v310 = vpop.f32.mrf.mxu0
    %v311 = vadd.f32 0.0, %v310
    %v312 = vpop.f32.mrf.mxu0
    %v313 = vadd.f32 0.0, %v312
    %314 = vmatprep.mubr.bf16.mxu0 0
    %315 = vmatmul.mubr.bf16.gmra.mxu0 %v270
    %v316 = vpop.f32.mrf.mxu0
    %v317 = vadd.f32 0.0, %v316
    %v318 = vpop.f32.mrf.mxu0
    %v319 = vadd.f32 0.0, %v318
    %v320 = vpop.f32.mrf.mxu0
    %v321 = vadd.f32 0.0, %v320
    %v322 = vpop.f32.mrf.mxu0
    %v323 = vadd.f32 0.0, %v322
    %324 = vdwg.mxu0
    %325 = vmatprep.subr.bf16.mxu0 0
    %326 = vmatpush1.bf16.msra.mxu0 0
    %327 = vmatprep.subr.bf16.mxu0 0
    %328 = vmatpush1.bf16.msra.mxu0 0
    %329 = vmatprep.subr.bf16.mxu0 0
    %330 = vmatpush1.bf16.msra.mxu0 0
    %331 = vmatprep.subr.bf16.mxu0 0
    %332 = vmatpush1.bf16.msra.mxu0 0
    %333 = vmatprep.subr.bf16.mxu0 %v238
    %334 = vmatpush1.bf16.msra.mxu0 %v237
    %335 = vmatprep.subr.bf16.mxu0 %v232
    %336 = vmatpush1.bf16.msra.mxu0 %v231
    %337 = vmatprep.subr.bf16.mxu0 %v226
    %338 = vmatpush1.bf16.msra.mxu0 %v225
    %339 = vmatprep.subr.bf16.mxu0 %v220
    %340 = vmatpush1.bf16.msra.mxu0 %v219
    %341 = vmatprep.subr.bf16.mxu0 0
    %342 = vmatpush2.bf16.msra.mxu0 0
    %343 = vmatprep.subr.bf16.mxu0 0
    %344 = vmatpush2.bf16.msra.mxu0 0
    %345 = vmatprep.subr.bf16.mxu0 0
    %346 = vmatpush2.bf16.msra.mxu0 0
    %347 = vmatprep.subr.bf16.mxu0 0
    %348 = vmatpush2.bf16.msra.mxu0 0
    %349 = vmatprep.subr.bf16.mxu0 0
    %350 = vmatpush2.bf16.msra.mxu0 0
    %351 = vmatprep.subr.bf16.mxu0 0
    %352 = vmatpush2.bf16.msra.mxu0 0
    %353 = vmatprep.subr.bf16.mxu0 0
    %354 = vmatpush2.bf16.msra.mxu0 0
    %355 = vmatprep.subr.bf16.mxu0 0
    %356 = vmatpush2.bf16.msra.mxu0 0
    %357 = vmatprep.mubr.bf16.mxu0 0
    %358 = vmatmul.mubr.bf16.gmra.mxu0 %v267
    %v359 = vpop.f32.mrf.mxu0
    %v360 = vadd.f32 0.0, %v359
    %v361 = vpop.f32.mrf.mxu0
    %v362 = vadd.f32 0.0, %v361
    %v363 = vpop.f32.mrf.mxu0
    %v364 = vadd.f32 0.0, %v363
    %v365 = vpop.f32.mrf.mxu0
    %v366 = vadd.f32 0.0, %v365
    %367 = vmatprep.mubr.bf16.mxu0 0
    %368 = vmatmul.mubr.bf16.gmra.mxu0 %v270
    %v369 = vpop.f32.mrf.mxu0
    %v370 = vadd.f32 0.0, %v369
    %v371 = vpop.f32.mrf.mxu0
    %v372 = vadd.f32 0.0, %v371
    %v373 = vpop.f32.mrf.mxu0
    %v374 = vadd.f32 0.0, %v373
    %v375 = vpop.f32.mrf.mxu0
    %v376 = vadd.f32 0.0, %v375
    %377 = vdwg.mxu0
    %378 = vmatprep.subr.bf16.mxu0 0
    %379 = vmatpush1.bf16.msra.mxu0 0
    %380 = vmatprep.subr.bf16.mxu0 0
    %381 = vmatpush1.bf16.msra.mxu0 0
    %382 = vmatprep.subr.bf16.mxu0 0
    %383 = vmatpush1.bf16.msra.mxu0 0
    %384 = vmatprep.subr.bf16.mxu0 0
    %385 = vmatpush1.bf16.msra.mxu0 0
    %386 = vmatprep.subr.bf16.mxu0 %v240
    %387 = vmatpush1.bf16.msra.mxu0 %v239
    %388 = vmatprep.subr.bf16.mxu0 %v234
    %389 = vmatpush1.bf16.msra.mxu0 %v233
    %390 = vmatprep.subr.bf16.mxu0 %v228
    %391 = vmatpush1.bf16.msra.mxu0 %v227
    %392 = vmatprep.subr.bf16.mxu0 %v222
    %393 = vmatpush1.bf16.msra.mxu0 %v221
    %394 = vmatprep.subr.bf16.mxu0 0
    %395 = vmatpush2.bf16.msra.mxu0 0
    %396 = vmatprep.subr.bf16.mxu0 0
    %397 = vmatpush2.bf16.msra.mxu0 0
    %398 = vmatprep.subr.bf16.mxu0 0
    %399 = vmatpush2.bf16.msra.mxu0 0
    %400 = vmatprep.subr.bf16.mxu0 0
    %401 = vmatpush2.bf16.msra.mxu0 0
    %402 = vmatprep.subr.bf16.mxu0 0
    %403 = vmatpush2.bf16.msra.mxu0 0
    %404 = vmatprep.subr.bf16.mxu0 0
    %405 = vmatpush2.bf16.msra.mxu0 0
    %406 = vmatprep.subr.bf16.mxu0 0
    %407 = vmatpush2.bf16.msra.mxu0 0
    %408 = vmatprep.subr.bf16.mxu0 0
    %409 = vmatpush2.bf16.msra.mxu0 0
    %410 = vmatprep.mubr.bf16.mxu0 0
    %411 = vmatmul.mubr.bf16.gmra.mxu0 %v267
    %v412 = vpop.f32.mrf.mxu0
    %v413 = vadd.f32 0.0, %v412
    %v414 = vpop.f32.mrf.mxu0
    %v415 = vadd.f32 0.0, %v414
    %v416 = vpop.f32.mrf.mxu0
    %v417 = vadd.f32 0.0, %v416
    %v418 = vpop.f32.mrf.mxu0
    %v419 = vadd.f32 0.0, %v418
    %420 = vmatprep.mubr.bf16.mxu0 0
    %421 = vmatmul.mubr.bf16.gmra.mxu0 %v270
    %v422 = vpop.f32.mrf.mxu0
    %v423 = vadd.f32 0.0, %v422
    %v424 = vpop.f32.mrf.mxu0
    %v425 = vadd.f32 0.0, %v424
    %v426 = vpop.f32.mrf.mxu0
    %v427 = vadd.f32 0.0, %v426
    %v428 = vpop.f32.mrf.mxu0
    %v429 = vadd.f32 0.0, %v428
    %430 = vdwg.mxu0
    %v431 = vlaneseq
    %v432 = vshrl.u32 %v431, 7
    %v433 = vsub.s32 0, %v432
    %v434 = vrot.slane %v113, %v433
    %v435 = vlaneseq
    %v436 = vshrl.u32 %v435, 7
    %v437 = vsub.s32 0, %v436
    %v438 = vrot.slane %v114, %v437
    %v439 = vlaneseq
    %v440 = vshrl.u32 %v439, 7
    %v441 = vsub.s32 0, %v440
    %v442 = vrot.slane %v115, %v441
    %v443 = vlaneseq
    %v444 = vshrl.u32 %v443, 7
    %v445 = vsub.s32 0, %v444
    %v446 = vrot.slane %v116, %v445
    %v447 = vlaneseq
    %v448 = vshrl.u32 %v447, 7
    %v449 = vsub.s32 0, %v448
    %v450 = vrot.slane %v117, %v449
    %v451 = vlaneseq
    %v452 = vshrl.u32 %v451, 7
    %v453 = vsub.s32 0, %v452
    %v454 = vrot.slane %v118, %v453
    %v455 = vmul.f32 %v307, %v434
    %v456 = vmul.f32 %v309, %v438
    %v457 = vmul.f32 %v360, %v442
    %v458 = vmul.f32 %v362, %v446
    %v459 = vmul.f32 %v413, %v450
    %v460 = vmul.f32 %v415, %v454
    %v461 = vmul.f32 %v311, %v434
    %v462 = vmul.f32 %v313, %v438
    %v463 = vmul.f32 %v364, %v442
    %v464 = vmul.f32 %v366, %v446
    %v465 = vmul.f32 %v417, %v450
    %v466 = vmul.f32 %v419, %v454
    %v467 = vmul.f32 %v317, %v434
    %v468 = vmul.f32 %v319, %v438
    %v469 = vmul.f32 %v370, %v442
    %v470 = vmul.f32 %v372, %v446
    %v471 = vmul.f32 %v423, %v450
    %v472 = vmul.f32 %v425, %v454
    %v473 = vmul.f32 %v321, %v434
    %v474 = vmul.f32 %v323, %v438
    %v475 = vmul.f32 %v374, %v442
    %v476 = vmul.f32 %v376, %v446
    %v477 = vmul.f32 %v427, %v450
    %v478 = vmul.f32 %v429, %v454
    %v479 = vlaneseq
    %v480 = vshrl.u32 %v479, 7
    %v481 = vsub.s32 1, %v480
    %v482 = vrot.slane %v113, %v481
    %v483 = vlaneseq
    %v484 = vshrl.u32 %v483, 7
    %v485 = vsub.s32 1, %v484
    %v486 = vrot.slane %v114, %v485
    %v487 = vlaneseq
    %v488 = vshrl.u32 %v487, 7
    %v489 = vsub.s32 1, %v488
    %v490 = vrot.slane %v115, %v489
    %v491 = vlaneseq
    %v492 = vshrl.u32 %v491, 7
    %v493 = vsub.s32 1, %v492
    %v494 = vrot.slane %v116, %v493
    %v495 = vlaneseq
    %v496 = vshrl.u32 %v495, 7
    %v497 = vsub.s32 1, %v496
    %v498 = vrot.slane %v117, %v497
    %v499 = vlaneseq
    %v500 = vshrl.u32 %v499, 7
    %v501 = vsub.s32 1, %v500
    %v502 = vrot.slane %v118, %v501
    %v503 = vadd.f32 %v455, %v482
    %v504 = vadd.f32 %v456, %v486
    %v505 = vadd.f32 %v457, %v490
    %v506 = vadd.f32 %v458, %v494
    %v507 = vadd.f32 %v459, %v498
    %v508 = vadd.f32 %v460, %v502
    %v509 = vadd.f32 %v461, %v482
    %v510 = vadd.f32 %v462, %v486
    %v511 = vadd.f32 %v463, %v490
    %v512 = vadd.f32 %v464, %v494
    %v513 = vadd.f32 %v465, %v498
    %v514 = vadd.f32 %v466, %v502
    %v515 = vadd.f32 %v467, %v482
    %v516 = vadd.f32 %v468, %v486
    %v517 = vadd.f32 %v469, %v490
    %v518 = vadd.f32 %v470, %v494
    %v519 = vadd.f32 %v471, %v498
    %v520 = vadd.f32 %v472, %v502
    %v521 = vadd.f32 %v473, %v482
    %v522 = vadd.f32 %v474, %v486
    %v523 = vadd.f32 %v475, %v490
    %v524 = vadd.f32 %v476, %v494
    %v525 = vadd.f32 %v477, %v498
    %v526 = vadd.f32 %v478, %v502
    %v527 = vadd.f32 %v503, 3.0
    %v528 = vadd.f32 %v504, 3.0
    %v529 = vadd.f32 %v505, 3.0
    %v530 = vadd.f32 %v506, 3.0
    %v531 = vadd.f32 %v507, 3.0
    %v532 = vadd.f32 %v508, 3.0
    %v533 = vadd.f32 %v509, 3.0
    %v534 = vadd.f32 %v510, 3.0
    %v535 = vadd.f32 %v511, 3.0
    %v536 = vadd.f32 %v512, 3.0
    %v537 = vadd.f32 %v513, 3.0
    %v538 = vadd.f32 %v514, 3.0
    %v539 = vadd.f32 %v515, 3.0
    %v540 = vadd.f32 %v516, 3.0
    %v541 = vadd.f32 %v517, 3.0
    %v542 = vadd.f32 %v518, 3.0
    %v543 = vadd.f32 %v519, 3.0
    %v544 = vadd.f32 %v520, 3.0
    %v545 = vadd.f32 %v521, 3.0
    %v546 = vadd.f32 %v522, 3.0
    %v547 = vadd.f32 %v523, 3.0
    %v548 = vadd.f32 %v524, 3.0
    %v549 = vadd.f32 %v525, 3.0
    %v550 = vadd.f32 %v526, 3.0
    %v551 = vmax.f32 %v527, 0.0
    %v552 = vmax.f32 %v528, 0.0
    %v553 = vmax.f32 %v529, 0.0
    %v554 = vmax.f32 %v530, 0.0
    %v555 = vmax.f32 %v531, 0.0
    %v556 = vmax.f32 %v532, 0.0
    %v557 = vmax.f32 %v533, 0.0
    %v558 = vmax.f32 %v534, 0.0
    %v559 = vmax.f32 %v535, 0.0
    %v560 = vmax.f32 %v536, 0.0
    %v561 = vmax.f32 %v537, 0.0
    %v562 = vmax.f32 %v538, 0.0
    %v563 = vmax.f32 %v539, 0.0
    %v564 = vmax.f32 %v540, 0.0
    %v565 = vmax.f32 %v541, 0.0
    %v566 = vmax.f32 %v542, 0.0
    %v567 = vmax.f32 %v543, 0.0
    %v568 = vmax.f32 %v544, 0.0
    %v569 = vmax.f32 %v545, 0.0
    %v570 = vmax.f32 %v546, 0.0
    %v571 = vmax.f32 %v547, 0.0
    %v572 = vmax.f32 %v548, 0.0
    %v573 = vmax.f32 %v549, 0.0
    %v574 = vmax.f32 %v550, 0.0
    %v575 = vmin.f32 %v551, 6.0
    %v576 = vmin.f32 %v552, 6.0
    %v577 = vmin.f32 %v553, 6.0
    %v578 = vmin.f32 %v554, 6.0
    %v579 = vmin.f32 %v555, 6.0
    %v580 = vmin.f32 %v556, 6.0
    %v581 = vmin.f32 %v557, 6.0
    %v582 = vmin.f32 %v558, 6.0
    %v583 = vmin.f32 %v559, 6.0
    %v584 = vmin.f32 %v560, 6.0
    %v585 = vmin.f32 %v561, 6.0
    %v586 = vmin.f32 %v562, 6.0
    %v587 = vmin.f32 %v563, 6.0
    %v588 = vmin.f32 %v564, 6.0
    %v589 = vmin.f32 %v565, 6.0
    %v590 = vmin.f32 %v566, 6.0
    %v591 = vmin.f32 %v567, 6.0
    %v592 = vmin.f32 %v568, 6.0
    %v593 = vmin.f32 %v569, 6.0
    %v594 = vmin.f32 %v570, 6.0
    %v595 = vmin.f32 %v571, 6.0
    %v596 = vmin.f32 %v572, 6.0
    %v597 = vmin.f32 %v573, 6.0
    %v598 = vmin.f32 %v574, 6.0
    %v599 = vmul.f32 %v503, %v575
    %v600 = vmul.f32 %v504, %v576
    %v601 = vmul.f32 %v505, %v577
    %v602 = vmul.f32 %v506, %v578
    %v603 = vmul.f32 %v507, %v579
    %v604 = vmul.f32 %v508, %v580
    %v605 = vmul.f32 %v509, %v581
    %v606 = vmul.f32 %v510, %v582
    %v607 = vmul.f32 %v511, %v583
    %v608 = vmul.f32 %v512, %v584
    %v609 = vmul.f32 %v513, %v585
    %v610 = vmul.f32 %v514, %v586
    %v611 = vmul.f32 %v515, %v587
    %v612 = vmul.f32 %v516, %v588
    %v613 = vmul.f32 %v517, %v589
    %v614 = vmul.f32 %v518, %v590
    %v615 = vmul.f32 %v519, %v591
    %v616 = vmul.f32 %v520, %v592
    %v617 = vmul.f32 %v521, %v593
    %v618 = vmul.f32 %v522, %v594
    %v619 = vmul.f32 %v523, %v595
    %v620 = vmul.f32 %v524, %v596
    %v621 = vmul.f32 %v525, %v597
    %v622 = vmul.f32 %v526, %v598
    %v623 = vmul.f32 %v599, 0.16666667
    %v624 = vmul.f32 %v600, 0.16666667
    %v625 = vmul.f32 %v601, 0.16666667
    %v626 = vmul.f32 %v602, 0.16666667
    %v627 = vmul.f32 %v603, 0.16666667
    %v628 = vmul.f32 %v604, 0.16666667
    %v629 = vmul.f32 %v605, 0.16666667
    %v630 = vmul.f32 %v606, 0.16666667
    %v631 = vmul.f32 %v607, 0.16666667
    %v632 = vmul.f32 %v608, 0.16666667
    %v633 = vmul.f32 %v609, 0.16666667
    %v634 = vmul.f32 %v610, 0.16666667
    %v635 = vmul.f32 %v611, 0.16666667
    %v636 = vmul.f32 %v612, 0.16666667
    %v637 = vmul.f32 %v613, 0.16666667
    %v638 = vmul.f32 %v614, 0.16666667
    %v639 = vmul.f32 %v615, 0.16666667
    %v640 = vmul.f32 %v616, 0.16666667
    %v641 = vmul.f32 %v617, 0.16666667
    %v642 = vmul.f32 %v618, 0.16666667
    %v643 = vmul.f32 %v619, 0.16666667
    %v644 = vmul.f32 %v620, 0.16666667
    %v645 = vmul.f32 %v621, 0.16666667
    %v646 = vmul.f32 %v622, 0.16666667
    %v647 = vlaneseq
    %v648 = vshrl.u32 %v647, 7
    %v649 = vsub.s32 2, %v648
    %v650 = vrot.slane %v113, %v649
    %v651 = vlaneseq
    %v652 = vshrl.u32 %v651, 7
    %v653 = vsub.s32 2, %v652
    %v654 = vrot.slane %v114, %v653
    %v655 = vlaneseq
    %v656 = vshrl.u32 %v655, 7
    %v657 = vsub.s32 2, %v656
    %v658 = vrot.slane %v115, %v657
    %v659 = vlaneseq
    %v660 = vshrl.u32 %v659, 7
    %v661 = vsub.s32 2, %v660
    %v662 = vrot.slane %v116, %v661
    %v663 = vlaneseq
    %v664 = vshrl.u32 %v663, 7
    %v665 = vsub.s32 2, %v664
    %v666 = vrot.slane %v117, %v665
    %v667 = vlaneseq
    %v668 = vshrl.u32 %v667, 7
    %v669 = vsub.s32 2, %v668
    %v670 = vrot.slane %v118, %v669
    %v671 = vmul.f32 %v623, %v650
    %v672 = vmul.f32 %v624, %v654
    %v673 = vmul.f32 %v625, %v658
    %v674 = vmul.f32 %v626, %v662
    %v675 = vmul.f32 %v627, %v666
    %v676 = vmul.f32 %v628, %v670
    %v677 = vmul.f32 %v629, %v650
    %v678 = vmul.f32 %v630, %v654
    %v679 = vmul.f32 %v631, %v658
    %v680 = vmul.f32 %v632, %v662
    %v681 = vmul.f32 %v633, %v666
    %v682 = vmul.f32 %v634, %v670
    %v683 = vmul.f32 %v635, %v650
    %v684 = vmul.f32 %v636, %v654
    %v685 = vmul.f32 %v637, %v658
    %v686 = vmul.f32 %v638, %v662
    %v687 = vmul.f32 %v639, %v666
    %v688 = vmul.f32 %v640, %v670
    %v689 = vmul.f32 %v641, %v650
    %v690 = vmul.f32 %v642, %v654
    %v691 = vmul.f32 %v643, %v658
    %v692 = vmul.f32 %v644, %v662
    %v693 = vmul.f32 %v645, %v666
    %v694 = vmul.f32 %v646, %v670
    %v695 = vlaneseq
    %v696 = vshrl.u32 %v695, 7
    %v697 = vsub.s32 3, %v696
    %v698 = vrot.slane %v113, %v697
    %v699 = vlaneseq
    %v700 = vshrl.u32 %v699, 7
    %v701 = vsub.s32 3, %v700
    %v702 = vrot.slane %v114, %v701
    %v703 = vlaneseq
    %v704 = vshrl.u32 %v703, 7
    %v705 = vsub.s32 3, %v704
    %v706 = vrot.slane %v115, %v705
    %v707 = vlaneseq
    %v708 = vshrl.u32 %v707, 7
    %v709 = vsub.s32 3, %v708
    %v710 = vrot.slane %v116, %v709
    %v711 = vlaneseq
    %v712 = vshrl.u32 %v711, 7
    %v713 = vsub.s32 3, %v712
    %v714 = vrot.slane %v117, %v713
    %v715 = vlaneseq
    %v716 = vshrl.u32 %v715, 7
    %v717 = vsub.s32 3, %v716
    %v718 = vrot.slane %v118, %v717
    %v719 = vadd.f32 %v671, %v698
    %v720 = vadd.f32 %v672, %v702
    %v721 = vadd.f32 %v673, %v706
    %v722 = vadd.f32 %v674, %v710
    %v723 = vadd.f32 %v675, %v714
    %v724 = vadd.f32 %v676, %v718
    %v725 = vadd.f32 %v677, %v698
    %v726 = vadd.f32 %v678, %v702
    %v727 = vadd.f32 %v679, %v706
    %v728 = vadd.f32 %v680, %v710
    %v729 = vadd.f32 %v681, %v714
    %v730 = vadd.f32 %v682, %v718
    %v731 = vadd.f32 %v683, %v698
    %v732 = vadd.f32 %v684, %v702
    %v733 = vadd.f32 %v685, %v706
    %v734 = vadd.f32 %v686, %v710
    %v735 = vadd.f32 %v687, %v714
    %v736 = vadd.f32 %v688, %v718
    %v737 = vadd.f32 %v689, %v698
    %v738 = vadd.f32 %v690, %v702
    %v739 = vadd.f32 %v691, %v706
    %v740 = vadd.f32 %v692, %v710
    %v741 = vadd.f32 %v693, %v714
    %v742 = vadd.f32 %v694, %v718
    %v743 = vadd.f32 %v719, 3.0
    %v744 = vadd.f32 %v720, 3.0
    %v745 = vadd.f32 %v721, 3.0
    %v746 = vadd.f32 %v722, 3.0
    %v747 = vadd.f32 %v723, 3.0
    %v748 = vadd.f32 %v724, 3.0
    %v749 = vadd.f32 %v725, 3.0
    %v750 = vadd.f32 %v726, 3.0
    %v751 = vadd.f32 %v727, 3.0
    %v752 = vadd.f32 %v728, 3.0
    %v753 = vadd.f32 %v729, 3.0
    %v754 = vadd.f32 %v730, 3.0
    %v755 = vadd.f32 %v731, 3.0
    %v756 = vadd.f32 %v732, 3.0
    %v757 = vadd.f32 %v733, 3.0
    %v758 = vadd.f32 %v734, 3.0
    %v759 = vadd.f32 %v735, 3.0
    %v760 = vadd.f32 %v736, 3.0
    %v761 = vadd.f32 %v737, 3.0
    %v762 = vadd.f32 %v738, 3.0
    %v763 = vadd.f32 %v739, 3.0
    %v764 = vadd.f32 %v740, 3.0
    %v765 = vadd.f32 %v741, 3.0
    %v766 = vadd.f32 %v742, 3.0
    %v767 = vmax.f32 %v743, 0.0
    %v768 = vmax.f32 %v744, 0.0
    %v769 = vmax.f32 %v745, 0.0
    %v770 = vmax.f32 %v746, 0.0
    %v771 = vmax.f32 %v747, 0.0
    %v772 = vmax.f32 %v748, 0.0
    %v773 = vmax.f32 %v749, 0.0
    %v774 = vmax.f32 %v750, 0.0
    %v775 = vmax.f32 %v751, 0.0
    %v776 = vmax.f32 %v752, 0.0
    %v777 = vmax.f32 %v753, 0.0
    %v778 = vmax.f32 %v754, 0.0
    %v779 = vmax.f32 %v755, 0.0
    %v780 = vmax.f32 %v756, 0.0
    %v781 = vmax.f32 %v757, 0.0
    %v782 = vmax.f32 %v758, 0.0
    %v783 = vmax.f32 %v759, 0.0
    %v784 = vmax.f32 %v760, 0.0
    %v785 = vmax.f32 %v761, 0.0
    %v786 = vmax.f32 %v762, 0.0
    %v787 = vmax.f32 %v763, 0.0
    %v788 = vmax.f32 %v764, 0.0
    %v789 = vmax.f32 %v765, 0.0
    %v790 = vmax.f32 %v766, 0.0
    %v791 = vmin.f32 %v767, 6.0
    %v792 = vmin.f32 %v768, 6.0
    %v793 = vmin.f32 %v769, 6.0
    %v794 = vmin.f32 %v770, 6.0
    %v795 = vmin.f32 %v771, 6.0
    %v796 = vmin.f32 %v772, 6.0
    %v797 = vmin.f32 %v773, 6.0
    %v798 = vmin.f32 %v774, 6.0
    %v799 = vmin.f32 %v775, 6.0
    %v800 = vmin.f32 %v776, 6.0
    %v801 = vmin.f32 %v777, 6.0
    %v802 = vmin.f32 %v778, 6.0
    %v803 = vmin.f32 %v779, 6.0
    %v804 = vmin.f32 %v780, 6.0
    %v805 = vmin.f32 %v781, 6.0
    %v806 = vmin.f32 %v782, 6.0
    %v807 = vmin.f32 %v783, 6.0
    %v808 = vmin.f32 %v784, 6.0
    %v809 = vmin.f32 %v785, 6.0
    %v810 = vmin.f32 %v786, 6.0
    %v811 = vmin.f32 %v787, 6.0
    %v812 = vmin.f32 %v788, 6.0
    %v813 = vmin.f32 %v789, 6.0
    %v814 = vmin.f32 %v790, 6.0
    %v815 = vmul.f32 %v719, %v791
    %v816 = vmul.f32 %v720, %v792
    %v817 = vmul.f32 %v721, %v793
    %v818 = vmul.f32 %v722, %v794
    %v819 = vmul.f32 %v723, %v795
    %v820 = vmul.f32 %v724, %v796
    %v821 = vmul.f32 %v725, %v797
    %v822 = vmul.f32 %v726, %v798
    %v823 = vmul.f32 %v727, %v799
    %v824 = vmul.f32 %v728, %v800
    %v825 = vmul.f32 %v729, %v801
    %v826 = vmul.f32 %v730, %v802
    %v827 = vmul.f32 %v731, %v803
    %v828 = vmul.f32 %v732, %v804
    %v829 = vmul.f32 %v733, %v805
    %v830 = vmul.f32 %v734, %v806
    %v831 = vmul.f32 %v735, %v807
    %v832 = vmul.f32 %v736, %v808
    %v833 = vmul.f32 %v737, %v809
    %v834 = vmul.f32 %v738, %v810
    %v835 = vmul.f32 %v739, %v811
    %v836 = vmul.f32 %v740, %v812
    %v837 = vmul.f32 %v741, %v813
    %v838 = vmul.f32 %v742, %v814
    %v839 = vmul.f32 %v815, 0.16666667
    %v840 = vmul.f32 %v816, 0.16666667
    %v841 = vmul.f32 %v817, 0.16666667
    %v842 = vmul.f32 %v818, 0.16666667
    %v843 = vmul.f32 %v819, 0.16666667
    %v844 = vmul.f32 %v820, 0.16666667
    %v845 = vmul.f32 %v821, 0.16666667
    %v846 = vmul.f32 %v822, 0.16666667
    %v847 = vmul.f32 %v823, 0.16666667
    %v848 = vmul.f32 %v824, 0.16666667
    %v849 = vmul.f32 %v825, 0.16666667
    %v850 = vmul.f32 %v826, 0.16666667
    %v851 = vmul.f32 %v827, 0.16666667
    %v852 = vmul.f32 %v828, 0.16666667
    %v853 = vmul.f32 %v829, 0.16666667
    %v854 = vmul.f32 %v830, 0.16666667
    %v855 = vmul.f32 %v831, 0.16666667
    %v856 = vmul.f32 %v832, 0.16666667
    %v857 = vmul.f32 %v833, 0.16666667
    %v858 = vmul.f32 %v834, 0.16666667
    %v859 = vmul.f32 %v835, 0.16666667
    %v860 = vmul.f32 %v836, 0.16666667
    %v861 = vmul.f32 %v837, 0.16666667
    %v862 = vmul.f32 %v838, 0.16666667
    %v863 = vld [vmem:[%s10] sm:$0x3]
    %vm864 = vcmask 261120
    %v866 = vsel %vm864, %v863, 0
    %868 = vmatprep.subr.mxu0 0.0
    %869 = vmatpush1.msra.mxu0 0.0
    %870 = vmatprep.subr.mxu0 0.0
    %871 = vmatpush1.msra.mxu0 0.0
    %872 = vmatprep.subr.mxu0 0.0
    %873 = vmatpush1.msra.mxu0 0.0
    %874 = vmatprep.subr.mxu0 0.0
    %875 = vmatpush1.msra.mxu0 0.0
    %876 = vmatprep.subr.mxu0 0.0
    %877 = vmatpush1.msra.mxu0 0.0
    %878 = vmatprep.subr.mxu0 0.0
    %879 = vmatpush1.msra.mxu0 0.0
    %880 = vmatprep.subr.mxu0 0.0
    %881 = vmatpush1.msra.mxu0 0.0
    %882 = vmatprep.subr.mxu0 0.0
    %883 = vmatpush1.msra.mxu0 0.0
    %884 = vmatprep.subr.mxu0 0.0
    %885 = vmatpush1.msra.mxu0 0.0
    %886 = vmatprep.subr.mxu0 0.0
    %887 = vmatpush1.msra.mxu0 0.0
    %888 = vmatprep.subr.mxu0 0.0
    %889 = vmatpush1.msra.mxu0 0.0
    %890 = vmatprep.subr.mxu0 0.0
    %891 = vmatpush1.msra.mxu0 0.0
    %892 = vmatprep.subr.mxu0 %v858
    %893 = vmatpush1.msra.mxu0 %v857
    %894 = vmatprep.subr.mxu0 %v852
    %895 = vmatpush1.msra.mxu0 %v851
    %896 = vmatprep.subr.mxu0 %v846
    %897 = vmatpush1.msra.mxu0 %v845
    %898 = vmatprep.subr.mxu0 %v840
    %899 = vmatpush1.msra.mxu0 %v839
    %900 = vmatprep.subr.mxu0 0.0
    %901 = vmatpush2.msra.mxu0 0.0
    %902 = vmatprep.subr.mxu0 0.0
    %903 = vmatpush2.msra.mxu0 0.0
    %904 = vmatprep.subr.mxu0 0.0
    %905 = vmatpush2.msra.mxu0 0.0
    %906 = vmatprep.subr.mxu0 0.0
    %907 = vmatpush2.msra.mxu0 0.0
    %908 = vmatprep.subr.mxu0 0.0
    %909 = vmatpush2.msra.mxu0 0.0
    %910 = vmatprep.subr.mxu0 0.0
    %911 = vmatpush2.msra.mxu0 0.0
    %912 = vmatprep.subr.mxu0 0.0
    %913 = vmatpush2.msra.mxu0 0.0
    %914 = vmatprep.subr.mxu0 0.0
    %915 = vmatpush2.msra.mxu0 0.0
    %916 = vmatprep.subr.mxu0 0.0
    %917 = vmatpush2.msra.mxu0 0.0
    %918 = vmatprep.subr.mxu0 0.0
    %919 = vmatpush2.msra.mxu0 0.0
    %920 = vmatprep.subr.mxu0 0.0
    %921 = vmatpush2.msra.mxu0 0.0
    %922 = vmatprep.subr.mxu0 0.0
    %923 = vmatpush2.msra.mxu0 0.0
    %924 = vmatprep.subr.mxu0 0.0
    %925 = vmatpush2.msra.mxu0 0.0
    %926 = vmatprep.subr.mxu0 0.0
    %927 = vmatpush2.msra.mxu0 0.0
    %928 = vmatprep.subr.mxu0 0.0
    %929 = vmatpush2.msra.mxu0 0.0
    %930 = vmatprep.subr.mxu0 0.0
    %931 = vmatpush2.msra.mxu0 0.0
    %932 = vmatprep.mubr.f32.mxu0 0.0
    %933 = vmatmul.mubr.f32.gmra.mxu0 %v866
    %v934 = vpop.f32.mrf.mxu0
    %v935 = vadd.f32 0.0, %v934
    %v936 = vpop.f32.mrf.mxu0
    %v937 = vadd.f32 0.0, %v936
    %938 = vdwg.mxu0
    %939 = vmatprep.subr.mxu0 0.0
    %940 = vmatpush1.msra.mxu0 0.0
    %941 = vmatprep.subr.mxu0 0.0
    %942 = vmatpush1.msra.mxu0 0.0
    %943 = vmatprep.subr.mxu0 0.0
    %944 = vmatpush1.msra.mxu0 0.0
    %945 = vmatprep.subr.mxu0 0.0
    %946 = vmatpush1.msra.mxu0 0.0
    %947 = vmatprep.subr.mxu0 0.0
    %948 = vmatpush1.msra.mxu0 0.0
    %949 = vmatprep.subr.mxu0 0.0
    %950 = vmatpush1.msra.mxu0 0.0
    %951 = vmatprep.subr.mxu0 0.0
    %952 = vmatpush1.msra.mxu0 0.0
    %953 = vmatprep.subr.mxu0 0.0
    %954 = vmatpush1.msra.mxu0 0.0
    %955 = vmatprep.subr.mxu0 0.0
    %956 = vmatpush1.msra.mxu0 0.0
    %957 = vmatprep.subr.mxu0 0.0
    %958 = vmatpush1.msra.mxu0 0.0
    %959 = vmatprep.subr.mxu0 0.0
    %960 = vmatpush1.msra.mxu0 0.0
    %961 = vmatprep.subr.mxu0 0.0
    %962 = vmatpush1.msra.mxu0 0.0
    %963 = vmatprep.subr.mxu0 %v860
    %964 = vmatpush1.msra.mxu0 %v859
    %965 = vmatprep.subr.mxu0 %v854
    %966 = vmatpush1.msra.mxu0 %v853
    %967 = vmatprep.subr.mxu0 %v848
    %968 = vmatpush1.msra.mxu0 %v847
    %969 = vmatprep.subr.mxu0 %v842
    %970 = vmatpush1.msra.mxu0 %v841
    %971 = vmatprep.subr.mxu0 0.0
    %972 = vmatpush2.msra.mxu0 0.0
    %973 = vmatprep.subr.mxu0 0.0
    %974 = vmatpush2.msra.mxu0 0.0
    %975 = vmatprep.subr.mxu0 0.0
    %976 = vmatpush2.msra.mxu0 0.0
    %977 = vmatprep.subr.mxu0 0.0
    %978 = vmatpush2.msra.mxu0 0.0
    %979 = vmatprep.subr.mxu0 0.0
    %980 = vmatpush2.msra.mxu0 0.0
    %981 = vmatprep.subr.mxu0 0.0
    %982 = vmatpush2.msra.mxu0 0.0
    %983 = vmatprep.subr.mxu0 0.0
    %984 = vmatpush2.msra.mxu0 0.0
    %985 = vmatprep.subr.mxu0 0.0
    %986 = vmatpush2.msra.mxu0 0.0
    %987 = vmatprep.subr.mxu0 0.0
    %988 = vmatpush2.msra.mxu0 0.0
    %989 = vmatprep.subr.mxu0 0.0
    %990 = vmatpush2.msra.mxu0 0.0
    %991 = vmatprep.subr.mxu0 0.0
    %992 = vmatpush2.msra.mxu0 0.0
    %993 = vmatprep.subr.mxu0 0.0
    %994 = vmatpush2.msra.mxu0 0.0
    %995 = vmatprep.subr.mxu0 0.0
    %996 = vmatpush2.msra.mxu0 0.0
    %997 = vmatprep.subr.mxu0 0.0
    %998 = vmatpush2.msra.mxu0 0.0
    %999 = vmatprep.subr.mxu0 0.0
    %1000 = vmatpush2.msra.mxu0 0.0
    %1001 = vmatprep.subr.mxu0 0.0
    %1002 = vmatpush2.msra.mxu0 0.0
    %1003 = vmatprep.mubr.f32.mxu0 0.0
    %1004 = vmatmul.mubr.f32.gmra.mxu0 %v866
    %v1005 = vpop.f32.mrf.mxu0
    %v1006 = vadd.f32 0.0, %v1005
    %v1007 = vpop.f32.mrf.mxu0
    %v1008 = vadd.f32 0.0, %v1007
    %1009 = vdwg.mxu0
    %1010 = vmatprep.subr.mxu0 0.0
    %1011 = vmatpush1.msra.mxu0 0.0
    %1012 = vmatprep.subr.mxu0 0.0
    %1013 = vmatpush1.msra.mxu0 0.0
    %1014 = vmatprep.subr.mxu0 0.0
    %1015 = vmatpush1.msra.mxu0 0.0
    %1016 = vmatprep.subr.mxu0 0.0
    %1017 = vmatpush1.msra.mxu0 0.0
    %1018 = vmatprep.subr.mxu0 0.0
    %1019 = vmatpush1.msra.mxu0 0.0
    %1020 = vmatprep.subr.mxu0 0.0
    %1021 = vmatpush1.msra.mxu0 0.0
    %1022 = vmatprep.subr.mxu0 0.0
    %1023 = vmatpush1.msra.mxu0 0.0
    %1024 = vmatprep.subr.mxu0 0.0
    %1025 = vmatpush1.msra.mxu0 0.0
    %1026 = vmatprep.subr.mxu0 0.0
    %1027 = vmatpush1.msra.mxu0 0.0
    %1028 = vmatprep.subr.mxu0 0.0
    %1029 = vmatpush1.msra.mxu0 0.0
    %1030 = vmatprep.subr.mxu0 0.0
    %1031 = vmatpush1.msra.mxu0 0.0
    %1032 = vmatprep.subr.mxu0 0.0
    %1033 = vmatpush1.msra.mxu0 0.0
    %1034 = vmatprep.subr.mxu0 %v862
    %1035 = vmatpush1.msra.mxu0 %v861
    %1036 = vmatprep.subr.mxu0 %v856
    %1037 = vmatpush1.msra.mxu0 %v855
    %1038 = vmatprep.subr.mxu0 %v850
    %1039 = vmatpush1.msra.mxu0 %v849
    %1040 = vmatprep.subr.mxu0 %v844
    %1041 = vmatpush1.msra.mxu0 %v843
    %1042 = vmatprep.subr.mxu0 0.0
    %1043 = vmatpush2.msra.mxu0 0.0
    %1044 = vmatprep.subr.mxu0 0.0
    %1045 = vmatpush2.msra.mxu0 0.0
    %1046 = vmatprep.subr.mxu0 0.0
    %1047 = vmatpush2.msra.mxu0 0.0
    %1048 = vmatprep.subr.mxu0 0.0
    %1049 = vmatpush2.msra.mxu0 0.0
    %1050 = vmatprep.subr.mxu0 0.0
    %1051 = vmatpush2.msra.mxu0 0.0
    %1052 = vmatprep.subr.mxu0 0.0
    %1053 = vmatpush2.msra.mxu0 0.0
    %1054 = vmatprep.subr.mxu0 0.0
    %1055 = vmatpush2.msra.mxu0 0.0
    %1056 = vmatprep.subr.mxu0 0.0
    %1057 = vmatpush2.msra.mxu0 0.0
    %1058 = vmatprep.subr.mxu0 0.0
    %1059 = vmatpush2.msra.mxu0 0.0
    %1060 = vmatprep.subr.mxu0 0.0
    %1061 = vmatpush2.msra.mxu0 0.0
    %1062 = vmatprep.subr.mxu0 0.0
    %1063 = vmatpush2.msra.mxu0 0.0
    %1064 = vmatprep.subr.mxu0 0.0
    %1065 = vmatpush2.msra.mxu0 0.0
    %1066 = vmatprep.subr.mxu0 0.0
    %1067 = vmatpush2.msra.mxu0 0.0
    %1068 = vmatprep.subr.mxu0 0.0
    %1069 = vmatpush2.msra.mxu0 0.0
    %1070 = vmatprep.subr.mxu0 0.0
    %1071 = vmatpush2.msra.mxu0 0.0
    %1072 = vmatprep.subr.mxu0 0.0
    %1073 = vmatpush2.msra.mxu0 0.0
    %1074 = vmatprep.mubr.f32.mxu0 0.0
    %1075 = vmatmul.mubr.f32.gmra.mxu0 %v866
    %v1076 = vpop.f32.mrf.mxu0
    %v1077 = vadd.f32 0.0, %v1076
    %v1078 = vpop.f32.mrf.mxu0
    %v1079 = vadd.f32 0.0, %v1078
    %1080 = vdwg.mxu0
    %v1081 = vpack.c.bf16 %v935, %v935
    %v1082 = vpack.c.bf16 %v937, %v937
    %v1083 = vpack.c.bf16 %v1006, %v1006
    %v1084 = vpack.c.bf16 %v1008, %v1008
    %v1085 = vpack.c.bf16 %v1077, %v1077
    %v1086 = vpack.c.bf16 %v1079, %v1079
    %v1087 = vld [vmem:[%s3] sm:$0xf]
    %v1088 = vld [vmem:[%s3 + $0x4] sm:$0xf]
    %v1089 = vld [vmem:[%s3 + $0x8] sm:$0xf]
    %v1090 = vld [vmem:[%s3 + $0xc] sm:$0xf]
    %v1091 = vld [vmem:[%s3 + $0x10] sm:$0xf]
    %v1092 = vld [vmem:[%s3 + $0x14] sm:$0xf]
    %v1093 = vld [vmem:[%s3 + $0x18] sm:$0xf]
    %v1094 = vld [vmem:[%s3 + $0x1c] sm:$0xf]
    %v1095 = vld [vmem:[%s3 + $0x20] sm:$0xf]
    %v1096 = vld [vmem:[%s3 + $0x24] sm:$0xf]
    %v1097 = vld [vmem:[%s3 + $0x28] sm:$0xf]
    %v1098 = vld [vmem:[%s3 + $0x2c] sm:$0xf]
    %v1099 = vld [vmem:[%s3 + $0x30] sm:$0xf]
    %v1100 = vld [vmem:[%s3 + $0x34] sm:$0xf]
    %v1101 = vld [vmem:[%s3 + $0x38] sm:$0xf]
    %v1102 = vld [vmem:[%s3 + $0x3c] sm:$0xf]
    %v1103 = vld [vmem:[%s3 + $0x40] sm:$0xf]
    %v1104 = vld [vmem:[%s3 + $0x44] sm:$0xf]
    %v1105 = vld [vmem:[%s3 + $0x48] sm:$0xf]
    %v1106 = vld [vmem:[%s3 + $0x4c] sm:$0xf]
    %v1107 = vld [vmem:[%s3 + $0x50] sm:$0xf]
    %v1108 = vld [vmem:[%s3 + $0x54] sm:$0xf]
    %v1109 = vld [vmem:[%s3 + $0x58] sm:$0xf]
    %v1110 = vld [vmem:[%s3 + $0x5c] sm:$0xf]
    %v1111 = vld [vmem:[%s3 + $0x60] sm:$0xf]
    %v1112 = vld [vmem:[%s3 + $0x64] sm:$0xf]
    %v1113 = vld [vmem:[%s3 + $0x68] sm:$0xf]
    %v1114 = vld [vmem:[%s3 + $0x6c] sm:$0xf]
    %v1115 = vld [vmem:[%s3 + $0x70] sm:$0xf]
    %v1116 = vld [vmem:[%s3 + $0x74] sm:$0xf]
    %v1117 = vld [vmem:[%s3 + $0x78] sm:$0xf]
    %v1118 = vld [vmem:[%s3 + $0x7c] sm:$0xf]
    %v1119 = vld [vmem:[%s3 + $0x80] sm:$0xf]
    %v1120 = vld [vmem:[%s3 + $0x84] sm:$0xf]
    %v1121 = vld [vmem:[%s3 + $0x88] sm:$0xf]
    %v1122 = vld [vmem:[%s3 + $0x8c] sm:$0xf]
    %v1123 = vld [vmem:[%s3 + $0x90] sm:$0xf]
    %v1124 = vld [vmem:[%s3 + $0x94] sm:$0xf]
    %v1125 = vld [vmem:[%s3 + $0x98] sm:$0xf]
    %v1126 = vld [vmem:[%s3 + $0x9c] sm:$0xf]
    %v1127 = vld [vmem:[%s3 + $0xa0] sm:$0xf]
    %v1128 = vld [vmem:[%s3 + $0xa4] sm:$0xf]
    %v1129 = vld [vmem:[%s3 + $0xa8] sm:$0xf]
    %v1130 = vld [vmem:[%s3 + $0xac] sm:$0xf]
    %v1131 = vld [vmem:[%s3 + $0xb0] sm:$0xf]
    %v1132 = vld [vmem:[%s3 + $0xb4] sm:$0xf]
    %v1133 = vld [vmem:[%s3 + $0xb8] sm:$0xf]
    %v1134 = vld [vmem:[%s3 + $0xbc] sm:$0xf]
    %v1135 = vld [vmem:[%s3 + $0xc0] sm:$0xf]
    %v1136 = vld [vmem:[%s3 + $0xc4] sm:$0xf]
    %v1137 = vld [vmem:[%s3 + $0xc8] sm:$0xf]
    %v1138 = vld [vmem:[%s3 + $0xcc] sm:$0xf]
    %v1139 = vld [vmem:[%s3 + $0xd0] sm:$0xf]
    %v1140 = vld [vmem:[%s3 + $0xd4] sm:$0xf]
    %v1141 = vld [vmem:[%s3 + $0xd8] sm:$0xf]
    %v1142 = vld [vmem:[%s3 + $0xdc] sm:$0xf]
    %v1143 = vld [vmem:[%s3 + $0xe0] sm:$0xf]
    %v1144 = vld [vmem:[%s3 + $0xe4] sm:$0xf]
    %v1145 = vld [vmem:[%s3 + $0xe8] sm:$0xf]
    %v1146 = vld [vmem:[%s3 + $0xec] sm:$0xf]
    %v1147 = vld [vmem:[%s3 + $0xf0] sm:$0xf]
    %v1148 = vld [vmem:[%s3 + $0xf4] sm:$0xf]
    %v1149 = vld [vmem:[%s3 + $0xf8] sm:$0xf]
    %v1150 = vld [vmem:[%s3 + $0xfc] sm:$0xf]
    %v1151 = vld [vmem:[%s3 + $0x100] sm:$0xf]
    %v1152 = vld [vmem:[%s3 + $0x104] sm:$0xf]
    %v1153 = vld [vmem:[%s3 + $0x108] sm:$0xf]
    %v1154 = vld [vmem:[%s3 + $0x10c] sm:$0xf]
    %v1155 = vld [vmem:[%s3 + $0x110] sm:$0xf]
    %v1156 = vld [vmem:[%s3 + $0x114] sm:$0xf]
    %v1157 = vld [vmem:[%s3 + $0x118] sm:$0xf]
    %v1158 = vld [vmem:[%s3 + $0x11c] sm:$0xf]
    %v1159 = vld [vmem:[%s3 + $0x120] sm:$0xf]
    %v1160 = vld [vmem:[%s3 + $0x124] sm:$0xf]
    %v1161 = vld [vmem:[%s3 + $0x128] sm:$0xf]
    %v1162 = vld [vmem:[%s3 + $0x12c] sm:$0xf]
    %v1163 = vld [vmem:[%s3 + $0x130] sm:$0xf]
    %v1164 = vld [vmem:[%s3 + $0x134] sm:$0xf]
    %v1165 = vld [vmem:[%s3 + $0x138] sm:$0xf]
    %v1166 = vld [vmem:[%s3 + $0x13c] sm:$0xf]
    %v1167 = vld [vmem:[%s3 + $0x140] sm:$0xf]
    %v1168 = vld [vmem:[%s3 + $0x144] sm:$0xf]
    %v1169 = vld [vmem:[%s3 + $0x148] sm:$0xf]
    %v1170 = vld [vmem:[%s3 + $0x14c] sm:$0xf]
    %v1171 = vld [vmem:[%s3 + $0x150] sm:$0xf]
    %v1172 = vld [vmem:[%s3 + $0x154] sm:$0xf]
    %v1173 = vld [vmem:[%s3 + $0x158] sm:$0xf]
    %v1174 = vld [vmem:[%s3 + $0x15c] sm:$0xf]
    %v1175 = vld [vmem:[%s3 + $0x160] sm:$0xf]
    %v1176 = vld [vmem:[%s3 + $0x164] sm:$0xf]
    %v1177 = vld [vmem:[%s3 + $0x168] sm:$0xf]
    %v1178 = vld [vmem:[%s3 + $0x16c] sm:$0xf]
    %v1179 = vld [vmem:[%s3 + $0x170] sm:$0xf]
    %v1180 = vld [vmem:[%s3 + $0x174] sm:$0xf]
    %v1181 = vld [vmem:[%s3 + $0x178] sm:$0xf]
    %v1182 = vld [vmem:[%s3 + $0x17c] sm:$0xf]
    %v1183 = vld [vmem:[%s4] sm:$0x1]
    %v1185 = vlaneseq
    %v1186 = vshrl.u32 %v1185, 7
    %v1187 = vsub.s32 0, %v1186
    %v1188 = vrot.slane %v1183, %v1187
    %v1286 = vunpack.c.l.b16 %v1087
    %v1287 = vunpack.c.l.b16 %v1088
    %v1288 = vunpack.c.l.b16 %v1089
    %v1289 = vunpack.c.l.b16 %v1090
    %v1290 = vunpack.c.l.b16 %v1091
    %v1291 = vunpack.c.l.b16 %v1092
    %v1292 = vunpack.c.l.b16 %v1093
    %v1293 = vunpack.c.l.b16 %v1094
    %v1294 = vunpack.c.l.b16 %v1095
    %v1295 = vunpack.c.l.b16 %v1096
    %v1296 = vunpack.c.l.b16 %v1097
    %v1297 = vunpack.c.l.b16 %v1098
    %v1298 = vunpack.c.l.b16 %v1099
    %v1299 = vunpack.c.l.b16 %v1100
    %v1300 = vunpack.c.l.b16 %v1101
    %v1301 = vunpack.c.l.b16 %v1102
    %v1302 = vunpack.c.l.b16 %v1103
    %v1303 = vunpack.c.l.b16 %v1104
    %v1304 = vunpack.c.l.b16 %v1105
    %v1305 = vunpack.c.l.b16 %v1106
    %v1306 = vunpack.c.l.b16 %v1107
    %v1307 = vunpack.c.l.b16 %v1108
    %v1308 = vunpack.c.l.b16 %v1109
    %v1309 = vunpack.c.l.b16 %v1110
    %v1310 = vunpack.c.l.b16 %v1111
    %v1311 = vunpack.c.l.b16 %v1112
    %v1312 = vunpack.c.l.b16 %v1113
    %v1313 = vunpack.c.l.b16 %v1114
    %v1314 = vunpack.c.l.b16 %v1115
    %v1315 = vunpack.c.l.b16 %v1116
    %v1316 = vunpack.c.l.b16 %v1117
    %v1317 = vunpack.c.l.b16 %v1118
    %v1318 = vunpack.c.l.b16 %v1119
    %v1319 = vunpack.c.l.b16 %v1120
    %v1320 = vunpack.c.l.b16 %v1121
    %v1321 = vunpack.c.l.b16 %v1122
    %v1322 = vunpack.c.l.b16 %v1123
    %v1323 = vunpack.c.l.b16 %v1124
    %v1324 = vunpack.c.l.b16 %v1125
    %v1325 = vunpack.c.l.b16 %v1126
    %v1326 = vunpack.c.l.b16 %v1127
    %v1327 = vunpack.c.l.b16 %v1128
    %v1328 = vunpack.c.l.b16 %v1129
    %v1329 = vunpack.c.l.b16 %v1130
    %v1330 = vunpack.c.l.b16 %v1131
    %v1331 = vunpack.c.l.b16 %v1132
    %v1332 = vunpack.c.l.b16 %v1133
    %v1333 = vunpack.c.l.b16 %v1134
    %v1334 = vunpack.c.l.b16 %v1135
    %v1335 = vunpack.c.l.b16 %v1136
    %v1336 = vunpack.c.l.b16 %v1137
    %v1337 = vunpack.c.l.b16 %v1138
    %v1338 = vunpack.c.l.b16 %v1139
    %v1339 = vunpack.c.l.b16 %v1140
    %v1340 = vunpack.c.l.b16 %v1141
    %v1341 = vunpack.c.l.b16 %v1142
    %v1342 = vunpack.c.l.b16 %v1143
    %v1343 = vunpack.c.l.b16 %v1144
    %v1344 = vunpack.c.l.b16 %v1145
    %v1345 = vunpack.c.l.b16 %v1146
    %v1346 = vunpack.c.l.b16 %v1147
    %v1347 = vunpack.c.l.b16 %v1148
    %v1348 = vunpack.c.l.b16 %v1149
    %v1349 = vunpack.c.l.b16 %v1150
    %v1350 = vunpack.c.l.b16 %v1151
    %v1351 = vunpack.c.l.b16 %v1152
    %v1352 = vunpack.c.l.b16 %v1153
    %v1353 = vunpack.c.l.b16 %v1154
    %v1354 = vunpack.c.l.b16 %v1155
    %v1355 = vunpack.c.l.b16 %v1156
    %v1356 = vunpack.c.l.b16 %v1157
    %v1357 = vunpack.c.l.b16 %v1158
    %v1358 = vunpack.c.l.b16 %v1159
    %v1359 = vunpack.c.l.b16 %v1160
    %v1360 = vunpack.c.l.b16 %v1161
    %v1361 = vunpack.c.l.b16 %v1162
    %v1362 = vunpack.c.l.b16 %v1163
    %v1363 = vunpack.c.l.b16 %v1164
    %v1364 = vunpack.c.l.b16 %v1165
    %v1365 = vunpack.c.l.b16 %v1166
    %v1366 = vunpack.c.l.b16 %v1167
    %v1367 = vunpack.c.l.b16 %v1168
    %v1368 = vunpack.c.l.b16 %v1169
    %v1369 = vunpack.c.l.b16 %v1170
    %v1370 = vunpack.c.l.b16 %v1171
    %v1371 = vunpack.c.l.b16 %v1172
    %v1372 = vunpack.c.l.b16 %v1173
    %v1373 = vunpack.c.l.b16 %v1174
    %v1374 = vunpack.c.l.b16 %v1175
    %v1375 = vunpack.c.l.b16 %v1176
    %v1376 = vunpack.c.l.b16 %v1177
    %v1377 = vunpack.c.l.b16 %v1178
    %v1378 = vunpack.c.l.b16 %v1179
    %v1379 = vunpack.c.l.b16 %v1180
    %v1380 = vunpack.c.l.b16 %v1181
    %v1381 = vunpack.c.l.b16 %v1182
    %v1382 = vpack.c.b16 %v1287, %v1286
    %v1383 = vpack.c.b16 %v1289, %v1288
    %v1384 = vpack.c.b16 %v1291, %v1290
    %v1385 = vpack.c.b16 %v1293, %v1292
    %v1386 = vpack.c.b16 %v1295, %v1294
    %v1387 = vpack.c.b16 %v1297, %v1296
    %v1388 = vpack.c.b16 %v1299, %v1298
    %v1389 = vpack.c.b16 %v1301, %v1300
    %v1390 = vpack.c.b16 %v1303, %v1302
    %v1391 = vpack.c.b16 %v1305, %v1304
    %v1392 = vpack.c.b16 %v1307, %v1306
    %v1393 = vpack.c.b16 %v1309, %v1308
    %v1394 = vpack.c.b16 %v1311, %v1310
    %v1395 = vpack.c.b16 %v1313, %v1312
    %v1396 = vpack.c.b16 %v1315, %v1314
    %v1397 = vpack.c.b16 %v1317, %v1316
    %v1398 = vpack.c.b16 %v1319, %v1318
    %v1399 = vpack.c.b16 %v1321, %v1320
    %v1400 = vpack.c.b16 %v1323, %v1322
    %v1401 = vpack.c.b16 %v1325, %v1324
    %v1402 = vpack.c.b16 %v1327, %v1326
    %v1403 = vpack.c.b16 %v1329, %v1328
    %v1404 = vpack.c.b16 %v1331, %v1330
    %v1405 = vpack.c.b16 %v1333, %v1332
    %v1406 = vpack.c.b16 %v1335, %v1334
    %v1407 = vpack.c.b16 %v1337, %v1336
    %v1408 = vpack.c.b16 %v1339, %v1338
    %v1409 = vpack.c.b16 %v1341, %v1340
    %v1410 = vpack.c.b16 %v1343, %v1342
    %v1411 = vpack.c.b16 %v1345, %v1344
    %v1412 = vpack.c.b16 %v1347, %v1346
    %v1413 = vpack.c.b16 %v1349, %v1348
    %v1414 = vpack.c.b16 %v1351, %v1350
    %v1415 = vpack.c.b16 %v1353, %v1352
    %v1416 = vpack.c.b16 %v1355, %v1354
    %v1417 = vpack.c.b16 %v1357, %v1356
    %v1418 = vpack.c.b16 %v1359, %v1358
    %v1419 = vpack.c.b16 %v1361, %v1360
    %v1420 = vpack.c.b16 %v1363, %v1362
    %v1421 = vpack.c.b16 %v1365, %v1364
    %v1422 = vpack.c.b16 %v1367, %v1366
    %v1423 = vpack.c.b16 %v1369, %v1368
    %v1424 = vpack.c.b16 %v1371, %v1370
    %v1425 = vpack.c.b16 %v1373, %v1372
    %v1426 = vpack.c.b16 %v1375, %v1374
    %v1427 = vpack.c.b16 %v1377, %v1376
    %v1428 = vpack.c.b16 %v1379, %v1378
    %v1429 = vpack.c.b16 %v1381, %v1380
    %1478 = vmatprep.subr.bf16.mxu0 0
    %1479 = vmatpush1.bf16.msra.mxu0 %v1389
    %1480 = vmatprep.subr.bf16.mxu0 0
    %1481 = vmatpush1.bf16.msra.mxu0 %v1388
    %1482 = vmatprep.subr.bf16.mxu0 0
    %1483 = vmatpush1.bf16.msra.mxu0 %v1387
    %1484 = vmatprep.subr.bf16.mxu0 0
    %1485 = vmatpush1.bf16.msra.mxu0 %v1386
    %1486 = vmatprep.subr.bf16.mxu0 0
    %1487 = vmatpush1.bf16.msra.mxu0 %v1385
    %1488 = vmatprep.subr.bf16.mxu0 0
    %1489 = vmatpush1.bf16.msra.mxu0 %v1384
    %1490 = vmatprep.subr.bf16.mxu0 0
    %1491 = vmatpush1.bf16.msra.mxu0 %v1383
    %1492 = vmatprep.subr.bf16.mxu0 0
    %1493 = vmatpush1.bf16.msra.mxu0 %v1382
    %1494 = vmatprep.subr.bf16.mxu0 0
    %1495 = vmatpush2.bf16.msra.mxu0 %v1397
    %1496 = vmatprep.subr.bf16.mxu0 0
    %1497 = vmatpush2.bf16.msra.mxu0 %v1396
    %1498 = vmatprep.subr.bf16.mxu0 0
    %1499 = vmatpush2.bf16.msra.mxu0 %v1395
    %1500 = vmatprep.subr.bf16.mxu0 0
    %1501 = vmatpush2.bf16.msra.mxu0 %v1394
    %1502 = vmatprep.subr.bf16.mxu0 0
    %1503 = vmatpush2.bf16.msra.mxu0 %v1393
    %1504 = vmatprep.subr.bf16.mxu0 0
    %1505 = vmatpush2.bf16.msra.mxu0 %v1392
    %1506 = vmatprep.subr.bf16.mxu0 0
    %1507 = vmatpush2.bf16.msra.mxu0 %v1391
    %1508 = vmatprep.subr.bf16.mxu0 0
    %1509 = vmatpush2.bf16.msra.mxu0 %v1390
    %1510 = vmatprep.mubr.bf16.mxu0 %v1082
    %1511 = vmatmul.mubr.bf16.gmra.mxu0 %v1081
    %v1512 = vpop.f32.mrf.mxu0
    %v1513 = vadd.f32 %v1188, %v1512
    %v1514 = vpop.f32.mrf.mxu0
    %v1515 = vpop.f32.mrf.mxu0
    %v1516 = vpop.f32.mrf.mxu0
    %1517 = vdwg.mxu0
    %1518 = vmatprep.subr.bf16.mxu0 0
    %1519 = vmatpush1.bf16.msra.mxu0 %v1405
    %1520 = vmatprep.subr.bf16.mxu0 0
    %1521 = vmatpush1.bf16.msra.mxu0 %v1404
    %1522 = vmatprep.subr.bf16.mxu0 0
    %1523 = vmatpush1.bf16.msra.mxu0 %v1403
    %1524 = vmatprep.subr.bf16.mxu0 0
    %1525 = vmatpush1.bf16.msra.mxu0 %v1402
    %1526 = vmatprep.subr.bf16.mxu0 0
    %1527 = vmatpush1.bf16.msra.mxu0 %v1401
    %1528 = vmatprep.subr.bf16.mxu0 0
    %1529 = vmatpush1.bf16.msra.mxu0 %v1400
    %1530 = vmatprep.subr.bf16.mxu0 0
    %1531 = vmatpush1.bf16.msra.mxu0 %v1399
    %1532 = vmatprep.subr.bf16.mxu0 0
    %1533 = vmatpush1.bf16.msra.mxu0 %v1398
    %1534 = vmatprep.subr.bf16.mxu0 0
    %1535 = vmatpush2.bf16.msra.mxu0 %v1413
    %1536 = vmatprep.subr.bf16.mxu0 0
    %1537 = vmatpush2.bf16.msra.mxu0 %v1412
    %1538 = vmatprep.subr.bf16.mxu0 0
    %1539 = vmatpush2.bf16.msra.mxu0 %v1411
    %1540 = vmatprep.subr.bf16.mxu0 0
    %1541 = vmatpush2.bf16.msra.mxu0 %v1410
    %1542 = vmatprep.subr.bf16.mxu0 0
    %1543 = vmatpush2.bf16.msra.mxu0 %v1409
    %1544 = vmatprep.subr.bf16.mxu0 0
    %1545 = vmatpush2.bf16.msra.mxu0 %v1408
    %1546 = vmatprep.subr.bf16.mxu0 0
    %1547 = vmatpush2.bf16.msra.mxu0 %v1407
    %1548 = vmatprep.subr.bf16.mxu0 0
    %1549 = vmatpush2.bf16.msra.mxu0 %v1406
    %1550 = vmatprep.mubr.bf16.mxu0 %v1084
    %1551 = vmatmul.mubr.bf16.gmra.mxu0 %v1083
    %v1552 = vpop.f32.mrf.mxu0
    %v1553 = vadd.f32 %v1513, %v1552
    %v1554 = vpop.f32.mrf.mxu0
    %v1555 = vpop.f32.mrf.mxu0
    %v1556 = vpop.f32.mrf.mxu0
    %1557 = vdwg.mxu0
    %1558 = vmatprep.subr.bf16.mxu0 0
    %1559 = vmatpush1.bf16.msra.mxu0 %v1421
    %1560 = vmatprep.subr.bf16.mxu0 0
    %1561 = vmatpush1.bf16.msra.mxu0 %v1420
    %1562 = vmatprep.subr.bf16.mxu0 0
    %1563 = vmatpush1.bf16.msra.mxu0 %v1419
    %1564 = vmatprep.subr.bf16.mxu0 0
    %1565 = vmatpush1.bf16.msra.mxu0 %v1418
    %1566 = vmatprep.subr.bf16.mxu0 0
    %1567 = vmatpush1.bf16.msra.mxu0 %v1417
    %1568 = vmatprep.subr.bf16.mxu0 0
    %1569 = vmatpush1.bf16.msra.mxu0 %v1416
    %1570 = vmatprep.subr.bf16.mxu0 0
    %1571 = vmatpush1.bf16.msra.mxu0 %v1415
    %1572 = vmatprep.subr.bf16.mxu0 0
    %1573 = vmatpush1.bf16.msra.mxu0 %v1414
    %1574 = vmatprep.subr.bf16.mxu0 0
    %1575 = vmatpush2.bf16.msra.mxu0 %v1429
    %1576 = vmatprep.subr.bf16.mxu0 0
    %1577 = vmatpush2.bf16.msra.mxu0 %v1428
    %1578 = vmatprep.subr.bf16.mxu0 0
    %1579 = vmatpush2.bf16.msra.mxu0 %v1427
    %1580 = vmatprep.subr.bf16.mxu0 0
    %1581 = vmatpush2.bf16.msra.mxu0 %v1426
    %1582 = vmatprep.subr.bf16.mxu0 0
    %1583 = vmatpush2.bf16.msra.mxu0 %v1425
    %1584 = vmatprep.subr.bf16.mxu0 0
    %1585 = vmatpush2.bf16.msra.mxu0 %v1424
    %1586 = vmatprep.subr.bf16.mxu0 0
    %1587 = vmatpush2.bf16.msra.mxu0 %v1423
    %1588 = vmatprep.subr.bf16.mxu0 0
    %1589 = vmatpush2.bf16.msra.mxu0 %v1422
    %1590 = vmatprep.mubr.bf16.mxu0 %v1086
    %1591 = vmatmul.mubr.bf16.gmra.mxu0 %v1085
    %v1592 = vpop.f32.mrf.mxu0
    %v1593 = vadd.f32 %v1553, %v1592
    %v1594 = vpop.f32.mrf.mxu0
    %v1595 = vpop.f32.mrf.mxu0
    %v1596 = vpop.f32.mrf.mxu0
    %1597 = vdwg.mxu0
    %v1598 = vmax.f32 %v1593, 0.0
    %v1599 = vpack.c.bf16 %v1598, %v1598
    %v1600 = vld [vmem:[#allocation8] sm:$0xff]
    %v1601 = vld [vmem:[#allocation8 + $0x8] sm:$0xff]
    %v1602 = vld [vmem:[#allocation8 + $0x10] sm:$0xff]
    %v1603 = vld [vmem:[#allocation8 + $0x18] sm:$0x33]
    %v1604 = vld [vmem:[#allocation8 + $0x20] sm:$0x33]
    %v1605 = vld [vmem:[#allocation8 + $0x28] sm:$0x33]
    %v1606 = vlaneseq
    %v1607 = vshrl.u32 %v1606, 7
    %v1608 = vsub.s32 4, %v1607
    %v1609 = vrot.slane %v113, %v1608
    %v1610 = vlaneseq
    %v1611 = vshrl.u32 %v1610, 7
    %v1612 = vsub.s32 4, %v1611
    %v1613 = vrot.slane %v114, %v1612
    %v1614 = vlaneseq
    %v1615 = vshrl.u32 %v1614, 7
    %v1616 = vsub.s32 4, %v1615
    %v1617 = vrot.slane %v115, %v1616
    %v1618 = vlaneseq
    %v1619 = vshrl.u32 %v1618, 7
    %v1620 = vsub.s32 4, %v1619
    %v1621 = vrot.slane %v116, %v1620
    %v1622 = vlaneseq
    %v1623 = vshrl.u32 %v1622, 7
    %v1624 = vsub.s32 4, %v1623
    %v1625 = vrot.slane %v117, %v1624
    %v1626 = vlaneseq
    %v1627 = vshrl.u32 %v1626, 7
    %v1628 = vsub.s32 4, %v1627
    %v1629 = vrot.slane %v118, %v1628
    %v1636 = vunpack.c.l.b16 %v1600
    %v1637 = vunpack.c.h.b16 %v1600
    %v1638 = vunpack.c.l.b16 %v1601
    %v1639 = vunpack.c.h.b16 %v1601
    %v1640 = vunpack.c.l.b16 %v1602
    %v1641 = vunpack.c.h.b16 %v1602
    %v1642 = vunpack.c.l.b16 %v1603
    %v1643 = vunpack.c.h.b16 %v1603
    %v1644 = vunpack.c.l.b16 %v1604
    %v1645 = vunpack.c.h.b16 %v1604
    %v1646 = vunpack.c.l.b16 %v1605
    %v1647 = vunpack.c.h.b16 %v1605
    %v1648 = vpack.c.b16 %v1642, %v1636
    %v1649 = vpack.c.b16 %v1643, %v1637
    %v1650 = vpack.c.b16 %v1644, %v1638
    %v1651 = vpack.c.b16 %v1645, %v1639
    %v1652 = vpack.c.b16 %v1646, %v1640
    %v1653 = vpack.c.b16 %v1647, %v1641
    %vm1654 = vcmask 97280
    %v1656 = vsel %vm1654, %v1599, 0
    %vm1658 = vcmask 1045504
    %v1660 = vsel %vm1658, %v1648, 0
    %v1663 = vsel %vm1658, %v1649, 0
    %v1666 = vsel %vm1658, %v1650, 0
    %v1669 = vsel %vm1658, %v1651, 0
    %v1672 = vsel %vm1658, %v1652, 0
    %v1675 = vsel %vm1658, %v1653, 0
    %1677 = vmatprep.subr.bf16.mxu0 0
    %1678 = vmatpush1.bf16.msra.mxu0 0
    %1679 = vmatprep.subr.bf16.mxu0 0
    %1680 = vmatpush1.bf16.msra.mxu0 0
    %1681 = vmatprep.subr.bf16.mxu0 0
    %1682 = vmatpush1.bf16.msra.mxu0 0
    %1683 = vmatprep.subr.bf16.mxu0 0
    %1684 = vmatpush1.bf16.msra.mxu0 0
    %1685 = vmatprep.subr.bf16.mxu0 0
    %1686 = vmatpush1.bf16.msra.mxu0 0
    %1687 = vmatprep.subr.bf16.mxu0 0
    %1688 = vmatpush1.bf16.msra.mxu0 0
    %1689 = vmatprep.subr.bf16.mxu0 0
    %1690 = vmatpush1.bf16.msra.mxu0 0
    %1691 = vmatprep.subr.bf16.mxu0 %v1663
    %1692 = vmatpush1.bf16.msra.mxu0 %v1660
    %1693 = vmatprep.subr.bf16.mxu0 0
    %1694 = vmatpush2.bf16.msra.mxu0 0
    %1695 = vmatprep.subr.bf16.mxu0 0
    %1696 = vmatpush2.bf16.msra.mxu0 0
    %1697 = vmatprep.subr.bf16.mxu0 0
    %1698 = vmatpush2.bf16.msra.mxu0 0
    %1699 = vmatprep.subr.bf16.mxu0 0
    %1700 = vmatpush2.bf16.msra.mxu0 0
    %1701 = vmatprep.subr.bf16.mxu0 0
    %1702 = vmatpush2.bf16.msra.mxu0 0
    %1703 = vmatprep.subr.bf16.mxu0 0
    %1704 = vmatpush2.bf16.msra.mxu0 0
    %1705 = vmatprep.subr.bf16.mxu0 0
    %1706 = vmatpush2.bf16.msra.mxu0 0
    %1707 = vmatprep.subr.bf16.mxu0 0
    %1708 = vmatpush2.bf16.msra.mxu0 0
    %1709 = vmatprep.mubr.bf16.mxu0 0
    %1710 = vmatmul.mubr.bf16.gmra.mxu0 %v1656
    %v1711 = vpop.f32.mrf.mxu0
    %v1712 = vadd.f32 %v1609, %v1711
    %v1713 = vpop.f32.mrf.mxu0
    %v1714 = vadd.f32 %v1613, %v1713
    %v1715 = vpop.f32.mrf.mxu0
    %v1716 = vpop.f32.mrf.mxu0
    %1717 = vdwg.mxu0
    %1718 = vmatprep.subr.bf16.mxu0 0
    %1719 = vmatpush1.bf16.msra.mxu0 0
    %1720 = vmatprep.subr.bf16.mxu0 0
    %1721 = vmatpush1.bf16.msra.mxu0 0
    %1722 = vmatprep.subr.bf16.mxu0 0
    %1723 = vmatpush1.bf16.msra.mxu0 0
    %1724 = vmatprep.subr.bf16.mxu0 0
    %1725 = vmatpush1.bf16.msra.mxu0 0
    %1726 = vmatprep.subr.bf16.mxu0 0
    %1727 = vmatpush1.bf16.msra.mxu0 0
    %1728 = vmatprep.subr.bf16.mxu0 0
    %1729 = vmatpush1.bf16.msra.mxu0 0
    %1730 = vmatprep.subr.bf16.mxu0 0
    %1731 = vmatpush1.bf16.msra.mxu0 0
    %1732 = vmatprep.subr.bf16.mxu0 %v1669
    %1733 = vmatpush1.bf16.msra.mxu0 %v1666
    %1734 = vmatprep.subr.bf16.mxu0 0
    %1735 = vmatpush2.bf16.msra.mxu0 0
    %1736 = vmatprep.subr.bf16.mxu0 0
    %1737 = vmatpush2.bf16.msra.mxu0 0
    %1738 = vmatprep.subr.bf16.mxu0 0
    %1739 = vmatpush2.bf16.msra.mxu0 0
    %1740 = vmatprep.subr.bf16.mxu0 0
    %1741 = vmatpush2.bf16.msra.mxu0 0
    %1742 = vmatprep.subr.bf16.mxu0 0
    %1743 = vmatpush2.bf16.msra.mxu0 0
    %1744 = vmatprep.subr.bf16.mxu0 0
    %1745 = vmatpush2.bf16.msra.mxu0 0
    %1746 = vmatprep.subr.bf16.mxu0 0
    %1747 = vmatpush2.bf16.msra.mxu0 0
    %1748 = vmatprep.subr.bf16.mxu0 0
    %1749 = vmatpush2.bf16.msra.mxu0 0
    %1750 = vmatprep.mubr.bf16.mxu0 0
    %1751 = vmatmul.mubr.bf16.gmra.mxu0 %v1656
    %v1752 = vpop.f32.mrf.mxu0
    %v1753 = vadd.f32 %v1617, %v1752
    %v1754 = vpop.f32.mrf.mxu0
    %v1755 = vadd.f32 %v1621, %v1754
    %v1756 = vpop.f32.mrf.mxu0
    %v1757 = vpop.f32.mrf.mxu0
    %1758 = vdwg.mxu0
    %1759 = vmatprep.subr.bf16.mxu0 0
    %1760 = vmatpush1.bf16.msra.mxu0 0
    %1761 = vmatprep.subr.bf16.mxu0 0
    %1762 = vmatpush1.bf16.msra.mxu0 0
    %1763 = vmatprep.subr.bf16.mxu0 0
    %1764 = vmatpush1.bf16.msra.mxu0 0
    %1765 = vmatprep.subr.bf16.mxu0 0
    %1766 = vmatpush1.bf16.msra.mxu0 0
    %1767 = vmatprep.subr.bf16.mxu0 0
    %1768 = vmatpush1.bf16.msra.mxu0 0
    %1769 = vmatprep.subr.bf16.mxu0 0
    %1770 = vmatpush1.bf16.msra.mxu0 0
    %1771 = vmatprep.subr.bf16.mxu0 0
    %1772 = vmatpush1.bf16.msra.mxu0 0
    %1773 = vmatprep.subr.bf16.mxu0 %v1675
    %1774 = vmatpush1.bf16.msra.mxu0 %v1672
    %1775 = vmatprep.subr.bf16.mxu0 0
    %1776 = vmatpush2.bf16.msra.mxu0 0
    %1777 = vmatprep.subr.bf16.mxu0 0
    %1778 = vmatpush2.bf16.msra.mxu0 0
    %1779 = vmatprep.subr.bf16.mxu0 0
    %1780 = vmatpush2.bf16.msra.mxu0 0
    %1781 = vmatprep.subr.bf16.mxu0 0
    %1782 = vmatpush2.bf16.msra.mxu0 0
    %1783 = vmatprep.subr.bf16.mxu0 0
    %1784 = vmatpush2.bf16.msra.mxu0 0
    %1785 = vmatprep.subr.bf16.mxu0 0
    %1786 = vmatpush2.bf16.msra.mxu0 0
    %1787 = vmatprep.subr.bf16.mxu0 0
    %1788 = vmatpush2.bf16.msra.mxu0 0
    %1789 = vmatprep.subr.bf16.mxu0 0
    %1790 = vmatpush2.bf16.msra.mxu0 0
    %1791 = vmatprep.mubr.bf16.mxu0 0
    %1792 = vmatmul.mubr.bf16.gmra.mxu0 %v1656
    %v1793 = vpop.f32.mrf.mxu0
    %v1794 = vadd.f32 %v1625, %v1793
    %v1795 = vpop.f32.mrf.mxu0
    %v1796 = vadd.f32 %v1629, %v1795
    %v1797 = vpop.f32.mrf.mxu0
    %v1798 = vpop.f32.mrf.mxu0
    %1799 = vdwg.mxu0
    %v1800 = vadd.f32 %v1712, 3.0
    %v1801 = vadd.f32 %v1714, 3.0
    %v1802 = vadd.f32 %v1753, 3.0
    %v1803 = vadd.f32 %v1755, 3.0
    %v1804 = vadd.f32 %v1794, 3.0
    %v1805 = vadd.f32 %v1796, 3.0
    %v1806 = vmax.f32 %v1800, 0.0
    %v1807 = vmax.f32 %v1801, 0.0
    %v1808 = vmax.f32 %v1802, 0.0
    %v1809 = vmax.f32 %v1803, 0.0
    %v1810 = vmax.f32 %v1804, 0.0
    %v1811 = vmax.f32 %v1805, 0.0
    %v1812 = vmin.f32 %v1806, 6.0
    %v1813 = vmin.f32 %v1807, 6.0
    %v1814 = vmin.f32 %v1808, 6.0
    %v1815 = vmin.f32 %v1809, 6.0
    %v1816 = vmin.f32 %v1810, 6.0
    %v1817 = vmin.f32 %v1811, 6.0
    %v1818 = vmul.f32 %v1812, 0.16666667
    %v1819 = vmul.f32 %v1813, 0.16666667
    %v1820 = vmul.f32 %v1814, 0.16666667
    %v1821 = vmul.f32 %v1815, 0.16666667
    %v1822 = vmul.f32 %v1816, 0.16666667
    %v1823 = vmul.f32 %v1817, 0.16666667
    %v1824 = vld [vmem:[%s11] sm:$0xff]
    %v1825 = vld [vmem:[%s11 + $0x8] sm:$0xff]
    %v1826 = vld [vmem:[%s11 + $0x10] sm:$0xff]
    %v1827 = vld [vmem:[%s11 + $0x18] sm:$0xff]
    %vm1828 = vcmask 15360
    %v1830 = vsel %vm1828, %v1824, 0
    %v1833 = vsel %vm1828, %v1825, 0
    %v1836 = vsel %vm1828, %v1826, 0
    %v1839 = vsel %vm1828, %v1827, 0
    %vm1841 = vcmask 1041408
    %v1843 = vsel %vm1841, %v1818, 0
    %v1846 = vsel %vm1841, %v1819, 0
    %v1849 = vsel %vm1841, %v1820, 0
    %v1852 = vsel %vm1841, %v1821, 0
    %v1855 = vsel %vm1841, %v1822, 0
    %v1858 = vsel %vm1841, %v1823, 0
    %1860 = vmatprep.subr.mxu0 0.0
    %1861 = vmatpush1.msra.mxu0 0.0
    %1862 = vmatprep.subr.mxu0 0.0
    %1863 = vmatpush1.msra.mxu0 0.0
    %1864 = vmatprep.subr.mxu0 0.0
    %1865 = vmatpush1.msra.mxu0 0.0
    %1866 = vmatprep.subr.mxu0 0.0
    %1867 = vmatpush1.msra.mxu0 0.0
    %1868 = vmatprep.subr.mxu0 0.0
    %1869 = vmatpush1.msra.mxu0 0.0
    %1870 = vmatprep.subr.mxu0 0.0
    %1871 = vmatpush1.msra.mxu0 0.0
    %1872 = vmatprep.subr.mxu0 0.0
    %1873 = vmatpush1.msra.mxu0 0.0
    %1874 = vmatprep.subr.mxu0 0.0
    %1875 = vmatpush1.msra.mxu0 0.0
    %1876 = vmatprep.subr.mxu0 0.0
    %1877 = vmatpush1.msra.mxu0 0.0
    %1878 = vmatprep.subr.mxu0 0.0
    %1879 = vmatpush1.msra.mxu0 0.0
    %1880 = vmatprep.subr.mxu0 0.0
    %1881 = vmatpush1.msra.mxu0 0.0
    %1882 = vmatprep.subr.mxu0 0.0
    %1883 = vmatpush1.msra.mxu0 0.0
    %1884 = vmatprep.subr.mxu0 0.0
    %1885 = vmatpush1.msra.mxu0 0.0
    %1886 = vmatprep.subr.mxu0 0.0
    %1887 = vmatpush1.msra.mxu0 0.0
    %1888 = vmatprep.subr.mxu0 0.0
    %1889 = vmatpush1.msra.mxu0 0.0
    %1890 = vmatprep.subr.mxu0 %v1846
    %1891 = vmatpush1.msra.mxu0 %v1843
    %1892 = vmatprep.subr.mxu0 0.0
    %1893 = vmatpush2.msra.mxu0 0.0
    %1894 = vmatprep.subr.mxu0 0.0
    %1895 = vmatpush2.msra.mxu0 0.0
    %1896 = vmatprep.subr.mxu0 0.0
    %1897 = vmatpush2.msra.mxu0 0.0
    %1898 = vmatprep.subr.mxu0 0.0
    %1899 = vmatpush2.msra.mxu0 0.0
    %1900 = vmatprep.subr.mxu0 0.0
    %1901 = vmatpush2.msra.mxu0 0.0
    %1902 = vmatprep.subr.mxu0 0.0
    %1903 = vmatpush2.msra.mxu0 0.0
    %1904 = vmatprep.subr.mxu0 0.0
    %1905 = vmatpush2.msra.mxu0 0.0
    %1906 = vmatprep.subr.mxu0 0.0
    %1907 = vmatpush2.msra.mxu0 0.0
    %1908 = vmatprep.subr.mxu0 0.0
    %1909 = vmatpush2.msra.mxu0 0.0
    %1910 = vmatprep.subr.mxu0 0.0
    %1911 = vmatpush2.msra.mxu0 0.0
    %1912 = vmatprep.subr.mxu0 0.0
    %1913 = vmatpush2.msra.mxu0 0.0
    %1914 = vmatprep.subr.mxu0 0.0
    %1915 = vmatpush2.msra.mxu0 0.0
    %1916 = vmatprep.subr.mxu0 0.0
    %1917 = vmatpush2.msra.mxu0 0.0
    %1918 = vmatprep.subr.mxu0 0.0
    %1919 = vmatpush2.msra.mxu0 0.0
    %1920 = vmatprep.subr.mxu0 0.0
    %1921 = vmatpush2.msra.mxu0 0.0
    %1922 = vmatprep.subr.mxu0 0.0
    %1923 = vmatpush2.msra.mxu0 0.0
    %1924 = vmatprep.mubr.f32.mxu0 0.0
    %1925 = vmatmul.mubr.f32.gmra.mxu0 %v1830
    %v1926 = vpop.f32.mrf.mxu0
    %v1927 = vadd.f32 0.0, %v1926
    %v1928 = vpop.f32.mrf.mxu0
    %v1929 = vadd.f32 0.0, %v1928
    %1930 = vmatprep.mubr.f32.mxu0 0.0
    %1931 = vmatmul.mubr.f32.gmra.mxu0 %v1833
    %v1932 = vpop.f32.mrf.mxu0
    %v1933 = vadd.f32 0.0, %v1932
    %v1934 = vpop.f32.mrf.mxu0
    %v1935 = vadd.f32 0.0, %v1934
    %1936 = vmatprep.mubr.f32.mxu0 0.0
    %1937 = vmatmul.mubr.f32.gmra.mxu0 %v1836
    %v1938 = vpop.f32.mrf.mxu0
    %v1939 = vadd.f32 0.0, %v1938
    %v1940 = vpop.f32.mrf.mxu0
    %v1941 = vadd.f32 0.0, %v1940
    %1942 = vmatprep.mubr.f32.mxu0 0.0
    %1943 = vmatmul.mubr.f32.gmra.mxu0 %v1839
    %v1944 = vpop.f32.mrf.mxu0
    %v1945 = vadd.f32 0.0, %v1944
    %v1946 = vpop.f32.mrf.mxu0
    %v1947 = vadd.f32 0.0, %v1946
    %1948 = vdwg.mxu0
    %1949 = vmatprep.subr.mxu0 0.0
    %1950 = vmatpush1.msra.mxu0 0.0
    %1951 = vmatprep.subr.mxu0 0.0
    %1952 = vmatpush1.msra.mxu0 0.0
    %1953 = vmatprep.subr.mxu0 0.0
    %1954 = vmatpush1.msra.mxu0 0.0
    %1955 = vmatprep.subr.mxu0 0.0
    %1956 = vmatpush1.msra.mxu0 0.0
    %1957 = vmatprep.subr.mxu0 0.0
    %1958 = vmatpush1.msra.mxu0 0.0
    %1959 = vmatprep.subr.mxu0 0.0
    %1960 = vmatpush1.msra.mxu0 0.0
    %1961 = vmatprep.subr.mxu0 0.0
    %1962 = vmatpush1.msra.mxu0 0.0
    %1963 = vmatprep.subr.mxu0 0.0
    %1964 = vmatpush1.msra.mxu0 0.0
    %1965 = vmatprep.subr.mxu0 0.0
    %1966 = vmatpush1.msra.mxu0 0.0
    %1967 = vmatprep.subr.mxu0 0.0
    %1968 = vmatpush1.msra.mxu0 0.0
    %1969 = vmatprep.subr.mxu0 0.0
    %1970 = vmatpush1.msra.mxu0 0.0
    %1971 = vmatprep.subr.mxu0 0.0
    %1972 = vmatpush1.msra.mxu0 0.0
    %1973 = vmatprep.subr.mxu0 0.0
    %1974 = vmatpush1.msra.mxu0 0.0
    %1975 = vmatprep.subr.mxu0 0.0
    %1976 = vmatpush1.msra.mxu0 0.0
    %1977 = vmatprep.subr.mxu0 0.0
    %1978 = vmatpush1.msra.mxu0 0.0
    %1979 = vmatprep.subr.mxu0 %v1852
    %1980 = vmatpush1.msra.mxu0 %v1849
    %1981 = vmatprep.subr.mxu0 0.0
    %1982 = vmatpush2.msra.mxu0 0.0
    %1983 = vmatprep.subr.mxu0 0.0
    %1984 = vmatpush2.msra.mxu0 0.0
    %1985 = vmatprep.subr.mxu0 0.0
    %1986 = vmatpush2.msra.mxu0 0.0
    %1987 = vmatprep.subr.mxu0 0.0
    %1988 = vmatpush2.msra.mxu0 0.0
    %1989 = vmatprep.subr.mxu0 0.0
    %1990 = vmatpush2.msra.mxu0 0.0
    %1991 = vmatprep.subr.mxu0 0.0
    %1992 = vmatpush2.msra.mxu0 0.0
    %1993 = vmatprep.subr.mxu0 0.0
    %1994 = vmatpush2.msra.mxu0 0.0
    %1995 = vmatprep.subr.mxu0 0.0
    %1996 = vmatpush2.msra.mxu0 0.0
    %1997 = vmatprep.subr.mxu0 0.0
    %1998 = vmatpush2.msra.mxu0 0.0
    %1999 = vmatprep.subr.mxu0 0.0
    %2000 = vmatpush2.msra.mxu0 0.0
    %2001 = vmatprep.subr.mxu0 0.0
    %2002 = vmatpush2.msra.mxu0 0.0
    %2003 = vmatprep.subr.mxu0 0.0
    %2004 = vmatpush2.msra.mxu0 0.0
    %2005 = vmatprep.subr.mxu0 0.0
    %2006 = vmatpush2.msra.mxu0 0.0
    %2007 = vmatprep.subr.mxu0 0.0
    %2008 = vmatpush2.msra.mxu0 0.0
    %2009 = vmatprep.subr.mxu0 0.0
    %2010 = vmatpush2.msra.mxu0 0.0
    %2011 = vmatprep.subr.mxu0 0.0
    %2012 = vmatpush2.msra.mxu0 0.0
    %2013 = vmatprep.mubr.f32.mxu0 0.0
    %2014 = vmatmul.mubr.f32.gmra.mxu0 %v1830
    %v2015 = vpop.f32.mrf.mxu0
    %v2016 = vadd.f32 0.0, %v2015
    %v2017 = vpop.f32.mrf.mxu0
    %v2018 = vadd.f32 0.0, %v2017
    %2019 = vmatprep.mubr.f32.mxu0 0.0
    %2020 = vmatmul.mubr.f32.gmra.mxu0 %v1833
    %v2021 = vpop.f32.mrf.mxu0
    %v2022 = vadd.f32 0.0, %v2021
    %v2023 = vpop.f32.mrf.mxu0
    %v2024 = vadd.f32 0.0, %v2023
    %2025 = vmatprep.mubr.f32.mxu0 0.0
    %2026 = vmatmul.mubr.f32.gmra.mxu0 %v1836
    %v2027 = vpop.f32.mrf.mxu0
    %v2028 = vadd.f32 0.0, %v2027
    %v2029 = vpop.f32.mrf.mxu0
    %v2030 = vadd.f32 0.0, %v2029
    %2031 = vmatprep.mubr.f32.mxu0 0.0
    %2032 = vmatmul.mubr.f32.gmra.mxu0 %v1839
    %v2033 = vpop.f32.mrf.mxu0
    %v2034 = vadd.f32 0.0, %v2033
    %v2035 = vpop.f32.mrf.mxu0
    %v2036 = vadd.f32 0.0, %v2035
    %2037 = vdwg.mxu0
    %2038 = vmatprep.subr.mxu0 0.0
    %2039 = vmatpush1.msra.mxu0 0.0
    %2040 = vmatprep.subr.mxu0 0.0
    %2041 = vmatpush1.msra.mxu0 0.0
    %2042 = vmatprep.subr.mxu0 0.0
    %2043 = vmatpush1.msra.mxu0 0.0
    %2044 = vmatprep.subr.mxu0 0.0
    %2045 = vmatpush1.msra.mxu0 0.0
    %2046 = vmatprep.subr.mxu0 0.0
    %2047 = vmatpush1.msra.mxu0 0.0
    %2048 = vmatprep.subr.mxu0 0.0
    %2049 = vmatpush1.msra.mxu0 0.0
    %2050 = vmatprep.subr.mxu0 0.0
    %2051 = vmatpush1.msra.mxu0 0.0
    %2052 = vmatprep.subr.mxu0 0.0
    %2053 = vmatpush1.msra.mxu0 0.0
    %2054 = vmatprep.subr.mxu0 0.0
    %2055 = vmatpush1.msra.mxu0 0.0
    %2056 = vmatprep.subr.mxu0 0.0
    %2057 = vmatpush1.msra.mxu0 0.0
    %2058 = vmatprep.subr.mxu0 0.0
    %2059 = vmatpush1.msra.mxu0 0.0
    %2060 = vmatprep.subr.mxu0 0.0
    %2061 = vmatpush1.msra.mxu0 0.0
    %2062 = vmatprep.subr.mxu0 0.0
    %2063 = vmatpush1.msra.mxu0 0.0
    %2064 = vmatprep.subr.mxu0 0.0
    %2065 = vmatpush1.msra.mxu0 0.0
    %2066 = vmatprep.subr.mxu0 0.0
    %2067 = vmatpush1.msra.mxu0 0.0
    %2068 = vmatprep.subr.mxu0 %v1858
    %2069 = vmatpush1.msra.mxu0 %v1855
    %2070 = vmatprep.subr.mxu0 0.0
    %2071 = vmatpush2.msra.mxu0 0.0
    %2072 = vmatprep.subr.mxu0 0.0
    %2073 = vmatpush2.msra.mxu0 0.0
    %2074 = vmatprep.subr.mxu0 0.0
    %2075 = vmatpush2.msra.mxu0 0.0
    %2076 = vmatprep.subr.mxu0 0.0
    %2077 = vmatpush2.msra.mxu0 0.0
    %2078 = vmatprep.subr.mxu0 0.0
    %2079 = vmatpush2.msra.mxu0 0.0
    %2080 = vmatprep.subr.mxu0 0.0
    %2081 = vmatpush2.msra.mxu0 0.0
    %2082 = vmatprep.subr.mxu0 0.0
    %2083 = vmatpush2.msra.mxu0 0.0
    %2084 = vmatprep.subr.mxu0 0.0
    %2085 = vmatpush2.msra.mxu0 0.0
    %2086 = vmatprep.subr.mxu0 0.0
    %2087 = vmatpush2.msra.mxu0 0.0
    %2088 = vmatprep.subr.mxu0 0.0
    %2089 = vmatpush2.msra.mxu0 0.0
    %2090 = vmatprep.subr.mxu0 0.0
    %2091 = vmatpush2.msra.mxu0 0.0
    %2092 = vmatprep.subr.mxu0 0.0
    %2093 = vmatpush2.msra.mxu0 0.0
    %2094 = vmatprep.subr.mxu0 0.0
    %2095 = vmatpush2.msra.mxu0 0.0
    %2096 = vmatprep.subr.mxu0 0.0
    %2097 = vmatpush2.msra.mxu0 0.0
    %2098 = vmatprep.subr.mxu0 0.0
    %2099 = vmatpush2.msra.mxu0 0.0
    %2100 = vmatprep.subr.mxu0 0.0
    %2101 = vmatpush2.msra.mxu0 0.0
    %2102 = vmatprep.mubr.f32.mxu0 0.0
    %2103 = vmatmul.mubr.f32.gmra.mxu0 %v1830
    %v2104 = vpop.f32.mrf.mxu0
    %v2105 = vadd.f32 0.0, %v2104
    %v2106 = vpop.f32.mrf.mxu0
    %v2107 = vadd.f32 0.0, %v2106
    %2108 = vmatprep.mubr.f32.mxu0 0.0
    %2109 = vmatmul.mubr.f32.gmra.mxu0 %v1833
    %v2110 = vpop.f32.mrf.mxu0
    %v2111 = vadd.f32 0.0, %v2110
    %v2112 = vpop.f32.mrf.mxu0
    %v2113 = vadd.f32 0.0, %v2112
    %2114 = vmatprep.mubr.f32.mxu0 0.0
    %2115 = vmatmul.mubr.f32.gmra.mxu0 %v1836
    %v2116 = vpop.f32.mrf.mxu0
    %v2117 = vadd.f32 0.0, %v2116
    %v2118 = vpop.f32.mrf.mxu0
    %v2119 = vadd.f32 0.0, %v2118
    %2120 = vmatprep.mubr.f32.mxu0 0.0
    %2121 = vmatmul.mubr.f32.gmra.mxu0 %v1839
    %v2122 = vpop.f32.mrf.mxu0
    %v2123 = vadd.f32 0.0, %v2122
    %v2124 = vpop.f32.mrf.mxu0
    %v2125 = vadd.f32 0.0, %v2124
    %2126 = vdwg.mxu0
    %v2127 = vmul.f32 %v839, %v1927
    %v2128 = vmul.f32 %v840, %v1929
    %v2129 = vmul.f32 %v841, %v2016
    %v2130 = vmul.f32 %v842, %v2018
    %v2131 = vmul.f32 %v843, %v2105
    %v2132 = vmul.f32 %v844, %v2107
    %v2133 = vmul.f32 %v845, %v1933
    %v2134 = vmul.f32 %v846, %v1935
    %v2135 = vmul.f32 %v847, %v2022
    %v2136 = vmul.f32 %v848, %v2024
    %v2137 = vmul.f32 %v849, %v2111
    %v2138 = vmul.f32 %v850, %v2113
    %v2139 = vmul.f32 %v851, %v1939
    %v2140 = vmul.f32 %v852, %v1941
    %v2141 = vmul.f32 %v853, %v2028
    %v2142 = vmul.f32 %v854, %v2030
    %v2143 = vmul.f32 %v855, %v2117
    %v2144 = vmul.f32 %v856, %v2119
    %v2145 = vmul.f32 %v857, %v1945
    %v2146 = vmul.f32 %v858, %v1947
    %v2147 = vmul.f32 %v859, %v2034
    %v2148 = vmul.f32 %v860, %v2036
    %v2149 = vmul.f32 %v861, %v2123
    %v2150 = vmul.f32 %v862, %v2125
    %v2151 = vld [vmem:[%s7] sm:$0xf]
    %v2152 = vpack.c.bf16 %v2133, %v2127
    %v2153 = vpack.c.bf16 %v2134, %v2128
    %v2154 = vpack.c.bf16 %v2135, %v2129
    %v2155 = vpack.c.bf16 %v2136, %v2130
    %v2156 = vpack.c.bf16 %v2137, %v2131
    %v2157 = vpack.c.bf16 %v2138, %v2132
    %v2158 = vpack.c.bf16 %v2145, %v2139
    %v2159 = vpack.c.bf16 %v2146, %v2140
    %v2160 = vpack.c.bf16 %v2147, %v2141
    %v2161 = vpack.c.bf16 %v2148, %v2142
    %v2162 = vpack.c.bf16 %v2149, %v2143
    %v2163 = vpack.c.bf16 %v2150, %v2144
    %v2164 = vld [vmem:[#allocation10] sm:$0xff]
    %v2165 = vld [vmem:[#allocation10 + $0x8] sm:$0xff]
    %v2166 = vld [vmem:[#allocation10 + $0x10] sm:$0xff]
    %v2167 = vld [vmem:[#allocation10 + $0x18] sm:$0xff]
    %v2168 = vld [vmem:[#allocation10 + $0x20] sm:$0xff]
    %v2169 = vld [vmem:[#allocation10 + $0x28] sm:$0xff]
    %v2170 = vld [vmem:[#allocation10 + $0x30] sm:$0xff]
    %v2171 = vld [vmem:[#allocation10 + $0x38] sm:$0xff]
    %v2172 = vld [vmem:[#allocation10 + $0x40] sm:$0xff]
    %v2173 = vld [vmem:[#allocation10 + $0x48] sm:$0xff]
    %v2174 = vld [vmem:[#allocation10 + $0x50] sm:$0xff]
    %v2175 = vld [vmem:[#allocation10 + $0x58] sm:$0xff]
    %v2176 = vld [vmem:[#allocation10 + $0x60] sm:$0xff]
    %v2177 = vld [vmem:[#allocation10 + $0x68] sm:$0xff]
    %v2178 = vld [vmem:[#allocation10 + $0x70] sm:$0xff]
    %v2179 = vld [vmem:[#allocation10 + $0x78] sm:$0xff]
    %v2180 = vld [vmem:[#allocation10 + $0x80] sm:$0xff]
    %v2181 = vld [vmem:[#allocation10 + $0x88] sm:$0xff]
    %v2182 = vld [vmem:[#allocation10 + $0x90] sm:$0xff]
    %v2183 = vld [vmem:[#allocation10 + $0x98] sm:$0xff]
    %v2184 = vld [vmem:[#allocation10 + $0xa0] sm:$0xff]
    %v2185 = vld [vmem:[#allocation10 + $0xa8] sm:$0xff]
    %v2186 = vld [vmem:[#allocation10 + $0xb0] sm:$0xff]
    %v2187 = vld [vmem:[#allocation10 + $0xb8] sm:$0xff]
    %v2188 = vld [vmem:[#allocation10 + $0xc0] sm:$0xff]
    %v2189 = vld [vmem:[#allocation10 + $0xc8] sm:$0xff]
    %v2190 = vld [vmem:[#allocation10 + $0xd0] sm:$0xff]
    %v2191 = vld [vmem:[#allocation10 + $0xd8] sm:$0xff]
    %v2192 = vld [vmem:[#allocation10 + $0xe0] sm:$0xff]
    %v2193 = vld [vmem:[#allocation10 + $0xe8] sm:$0xff]
    %v2194 = vld [vmem:[#allocation10 + $0xf0] sm:$0xff]
    %v2195 = vld [vmem:[#allocation10 + $0xf8] sm:$0xff]
    %v2196 = vld [vmem:[#allocation10 + $0x100] sm:$0xff]
    %v2197 = vld [vmem:[#allocation10 + $0x108] sm:$0xff]
    %v2198 = vld [vmem:[#allocation10 + $0x110] sm:$0xff]
    %v2199 = vld [vmem:[#allocation10 + $0x118] sm:$0xff]
    %v2200 = vld [vmem:[#allocation10 + $0x120] sm:$0xff]
    %v2201 = vld [vmem:[#allocation10 + $0x128] sm:$0xff]
    %v2202 = vld [vmem:[#allocation10 + $0x130] sm:$0xff]
    %v2203 = vld [vmem:[#allocation10 + $0x138] sm:$0xff]
    %v2204 = vld [vmem:[#allocation10 + $0x140] sm:$0xff]
    %v2205 = vld [vmem:[#allocation10 + $0x148] sm:$0xff]
    %v2206 = vld [vmem:[#allocation10 + $0x150] sm:$0xff]
    %v2207 = vld [vmem:[#allocation10 + $0x158] sm:$0xff]
    %v2208 = vld [vmem:[#allocation10 + $0x160] sm:$0xff]
    %v2209 = vld [vmem:[#allocation10 + $0x168] sm:$0xff]
    %v2210 = vld [vmem:[#allocation10 + $0x170] sm:$0xff]
    %v2211 = vld [vmem:[#allocation10 + $0x178] sm:$0xff]
    %v2212 = vld [vmem:[#allocation10 + $0x180] sm:$0xff]
    %v2213 = vld [vmem:[#allocation10 + $0x188] sm:$0xff]
    %v2214 = vld [vmem:[#allocation10 + $0x190] sm:$0xff]
    %v2215 = vld [vmem:[#allocation10 + $0x198] sm:$0xff]
    %v2216 = vld [vmem:[#allocation10 + $0x1a0] sm:$0xff]
    %v2217 = vld [vmem:[#allocation10 + $0x1a8] sm:$0xff]
    %v2218 = vld [vmem:[#allocation10 + $0x1b0] sm:$0xff]
    %v2219 = vld [vmem:[#allocation10 + $0x1b8] sm:$0xff]
    %v2220 = vld [vmem:[#allocation10 + $0x1c0] sm:$0xff]
    %v2221 = vld [vmem:[#allocation10 + $0x1c8] sm:$0xff]
    %v2222 = vld [vmem:[#allocation10 + $0x1d0] sm:$0xff]
    %v2223 = vld [vmem:[#allocation10 + $0x1d8] sm:$0xff]
    %v2224 = vld [vmem:[#allocation10 + $0x1e0] sm:$0xff]
    %v2225 = vld [vmem:[#allocation10 + $0x1e8] sm:$0xff]
    %v2226 = vld [vmem:[#allocation10 + $0x1f0] sm:$0xff]
    %v2227 = vld [vmem:[#allocation10 + $0x1f8] sm:$0xff]
    %v2228 = vld [vmem:[#allocation10 + $0x200] sm:$0xff]
    %v2229 = vld [vmem:[#allocation10 + $0x208] sm:$0xff]
    %v2230 = vld [vmem:[#allocation10 + $0x210] sm:$0xff]
    %v2231 = vld [vmem:[#allocation10 + $0x218] sm:$0xff]
    %v2232 = vld [vmem:[#allocation10 + $0x220] sm:$0xff]
    %v2233 = vld [vmem:[#allocation10 + $0x228] sm:$0xff]
    %v2234 = vld [vmem:[#allocation10 + $0x230] sm:$0xff]
    %v2235 = vld [vmem:[#allocation10 + $0x238] sm:$0xff]
    %v2236 = vld [vmem:[#allocation10 + $0x240] sm:$0xff]
    %v2237 = vld [vmem:[#allocation10 + $0x248] sm:$0xff]
    %v2238 = vld [vmem:[#allocation10 + $0x250] sm:$0xff]
    %v2239 = vld [vmem:[#allocation10 + $0x258] sm:$0xff]
    %v2240 = vld [vmem:[#allocation10 + $0x260] sm:$0xff]
    %v2241 = vld [vmem:[#allocation10 + $0x268] sm:$0xff]
    %v2242 = vld [vmem:[#allocation10 + $0x270] sm:$0xff]
    %v2243 = vld [vmem:[#allocation10 + $0x278] sm:$0xff]
    %v2244 = vld [vmem:[#allocation10 + $0x280] sm:$0xff]
    %v2245 = vld [vmem:[#allocation10 + $0x288] sm:$0xff]
    %v2246 = vld [vmem:[#allocation10 + $0x290] sm:$0xff]
    %v2247 = vld [vmem:[#allocation10 + $0x298] sm:$0xff]
    %v2248 = vld [vmem:[#allocation10 + $0x2a0] sm:$0xff]
    %v2249 = vld [vmem:[#allocation10 + $0x2a8] sm:$0xff]
    %v2250 = vld [vmem:[#allocation10 + $0x2b0] sm:$0xff]
    %v2251 = vld [vmem:[#allocation10 + $0x2b8] sm:$0xff]
    %v2252 = vld [vmem:[#allocation10 + $0x2c0] sm:$0xff]
    %v2253 = vld [vmem:[#allocation10 + $0x2c8] sm:$0xff]
    %v2254 = vld [vmem:[#allocation10 + $0x2d0] sm:$0xff]
    %v2255 = vld [vmem:[#allocation10 + $0x2d8] sm:$0xff]
    %v2256 = vld [vmem:[#allocation10 + $0x2e0] sm:$0xff]
    %v2257 = vld [vmem:[#allocation10 + $0x2e8] sm:$0xff]
    %v2258 = vld [vmem:[#allocation10 + $0x2f0] sm:$0xff]
    %v2259 = vld [vmem:[#allocation10 + $0x2f8] sm:$0xff]
    %v2356 = vunpack.c.l.b16 %v2164
    %v2357 = vunpack.c.h.b16 %v2164
    %v2358 = vunpack.c.l.b16 %v2165
    %v2359 = vunpack.c.h.b16 %v2165
    %v2360 = vunpack.c.l.b16 %v2166
    %v2361 = vunpack.c.h.b16 %v2166
    %v2362 = vunpack.c.l.b16 %v2167
    %v2363 = vunpack.c.h.b16 %v2167
    %v2364 = vunpack.c.l.b16 %v2168
    %v2365 = vunpack.c.h.b16 %v2168
    %v2366 = vunpack.c.l.b16 %v2169
    %v2367 = vunpack.c.h.b16 %v2169
    %v2368 = vunpack.c.l.b16 %v2170
    %v2369 = vunpack.c.h.b16 %v2170
    %v2370 = vunpack.c.l.b16 %v2171
    %v2371 = vunpack.c.h.b16 %v2171
    %v2372 = vunpack.c.l.b16 %v2172
    %v2373 = vunpack.c.h.b16 %v2172
    %v2374 = vunpack.c.l.b16 %v2173
    %v2375 = vunpack.c.h.b16 %v2173
    %v2376 = vunpack.c.l.b16 %v2174
    %v2377 = vunpack.c.h.b16 %v2174
    %v2378 = vunpack.c.l.b16 %v2175
    %v2379 = vunpack.c.h.b16 %v2175
    %v2380 = vunpack.c.l.b16 %v2176
    %v2381 = vunpack.c.h.b16 %v2176
    %v2382 = vunpack.c.l.b16 %v2177
    %v2383 = vunpack.c.h.b16 %v2177
    %v2384 = vunpack.c.l.b16 %v2178
    %v2385 = vunpack.c.h.b16 %v2178
    %v2386 = vunpack.c.l.b16 %v2179
    %v2387 = vunpack.c.h.b16 %v2179
    %v2388 = vunpack.c.l.b16 %v2180
    %v2389 = vunpack.c.h.b16 %v2180
    %v2390 = vunpack.c.l.b16 %v2181
    %v2391 = vunpack.c.h.b16 %v2181
    %v2392 = vunpack.c.l.b16 %v2182
    %v2393 = vunpack.c.h.b16 %v2182
    %v2394 = vunpack.c.l.b16 %v2183
    %v2395 = vunpack.c.h.b16 %v2183
    %v2396 = vunpack.c.l.b16 %v2184
    %v2397 = vunpack.c.h.b16 %v2184
    %v2398 = vunpack.c.l.b16 %v2185
    %v2399 = vunpack.c.h.b16 %v2185
    %v2400 = vunpack.c.l.b16 %v2186
    %v2401 = vunpack.c.h.b16 %v2186
    %v2402 = vunpack.c.l.b16 %v2187
    %v2403 = vunpack.c.h.b16 %v2187
    %v2404 = vunpack.c.l.b16 %v2188
    %v2405 = vunpack.c.h.b16 %v2188
    %v2406 = vunpack.c.l.b16 %v2189
    %v2407 = vunpack.c.h.b16 %v2189
    %v2408 = vunpack.c.l.b16 %v2190
    %v2409 = vunpack.c.h.b16 %v2190
    %v2410 = vunpack.c.l.b16 %v2191
    %v2411 = vunpack.c.h.b16 %v2191
    %v2412 = vunpack.c.l.b16 %v2192
    %v2413 = vunpack.c.h.b16 %v2192
    %v2414 = vunpack.c.l.b16 %v2193
    %v2415 = vunpack.c.h.b16 %v2193
    %v2416 = vunpack.c.l.b16 %v2194
    %v2417 = vunpack.c.h.b16 %v2194
    %v2418 = vunpack.c.l.b16 %v2195
    %v2419 = vunpack.c.h.b16 %v2195
    %v2420 = vunpack.c.l.b16 %v2196
    %v2421 = vunpack.c.h.b16 %v2196
    %v2422 = vunpack.c.l.b16 %v2197
    %v2423 = vunpack.c.h.b16 %v2197
    %v2424 = vunpack.c.l.b16 %v2198
    %v2425 = vunpack.c.h.b16 %v2198
    %v2426 = vunpack.c.l.b16 %v2199
    %v2427 = vunpack.c.h.b16 %v2199
    %v2428 = vunpack.c.l.b16 %v2200
    %v2429 = vunpack.c.h.b16 %v2200
    %v2430 = vunpack.c.l.b16 %v2201
    %v2431 = vunpack.c.h.b16 %v2201
    %v2432 = vunpack.c.l.b16 %v2202
    %v2433 = vunpack.c.h.b16 %v2202
    %v2434 = vunpack.c.l.b16 %v2203
    %v2435 = vunpack.c.h.b16 %v2203
    %v2436 = vunpack.c.l.b16 %v2204
    %v2437 = vunpack.c.h.b16 %v2204
    %v2438 = vunpack.c.l.b16 %v2205
    %v2439 = vunpack.c.h.b16 %v2205
    %v2440 = vunpack.c.l.b16 %v2206
    %v2441 = vunpack.c.h.b16 %v2206
    %v2442 = vunpack.c.l.b16 %v2207
    %v2443 = vunpack.c.h.b16 %v2207
    %v2444 = vunpack.c.l.b16 %v2208
    %v2445 = vunpack.c.h.b16 %v2208
    %v2446 = vunpack.c.l.b16 %v2209
    %v2447 = vunpack.c.h.b16 %v2209
    %v2448 = vunpack.c.l.b16 %v2210
    %v2449 = vunpack.c.h.b16 %v2210
    %v2450 = vunpack.c.l.b16 %v2211
    %v2451 = vunpack.c.h.b16 %v2211
    %v2452 = vunpack.c.l.b16 %v2212
    %v2453 = vunpack.c.h.b16 %v2212
    %v2454 = vunpack.c.l.b16 %v2213
    %v2455 = vunpack.c.h.b16 %v2213
    %v2456 = vunpack.c.l.b16 %v2214
    %v2457 = vunpack.c.h.b16 %v2214
    %v2458 = vunpack.c.l.b16 %v2215
    %v2459 = vunpack.c.h.b16 %v2215
    %v2460 = vunpack.c.l.b16 %v2216
    %v2461 = vunpack.c.h.b16 %v2216
    %v2462 = vunpack.c.l.b16 %v2217
    %v2463 = vunpack.c.h.b16 %v2217
    %v2464 = vunpack.c.l.b16 %v2218
    %v2465 = vunpack.c.h.b16 %v2218
    %v2466 = vunpack.c.l.b16 %v2219
    %v2467 = vunpack.c.h.b16 %v2219
    %v2468 = vunpack.c.l.b16 %v2220
    %v2469 = vunpack.c.h.b16 %v2220
    %v2470 = vunpack.c.l.b16 %v2221
    %v2471 = vunpack.c.h.b16 %v2221
    %v2472 = vunpack.c.l.b16 %v2222
    %v2473 = vunpack.c.h.b16 %v2222
    %v2474 = vunpack.c.l.b16 %v2223
    %v2475 = vunpack.c.h.b16 %v2223
    %v2476 = vunpack.c.l.b16 %v2224
    %v2477 = vunpack.c.h.b16 %v2224
    %v2478 = vunpack.c.l.b16 %v2225
    %v2479 = vunpack.c.h.b16 %v2225
    %v2480 = vunpack.c.l.b16 %v2226
    %v2481 = vunpack.c.h.b16 %v2226
    %v2482 = vunpack.c.l.b16 %v2227
    %v2483 = vunpack.c.h.b16 %v2227
    %v2484 = vunpack.c.l.b16 %v2228
    %v2485 = vunpack.c.h.b16 %v2228
    %v2486 = vunpack.c.l.b16 %v2229
    %v2487 = vunpack.c.h.b16 %v2229
    %v2488 = vunpack.c.l.b16 %v2230
    %v2489 = vunpack.c.h.b16 %v2230
    %v2490 = vunpack.c.l.b16 %v2231
    %v2491 = vunpack.c.h.b16 %v2231
    %v2492 = vunpack.c.l.b16 %v2232
    %v2493 = vunpack.c.h.b16 %v2232
    %v2494 = vunpack.c.l.b16 %v2233
    %v2495 = vunpack.c.h.b16 %v2233
    %v2496 = vunpack.c.l.b16 %v2234
    %v2497 = vunpack.c.h.b16 %v2234
    %v2498 = vunpack.c.l.b16 %v2235
    %v2499 = vunpack.c.h.b16 %v2235
    %v2500 = vunpack.c.l.b16 %v2236
    %v2501 = vunpack.c.h.b16 %v2236
    %v2502 = vunpack.c.l.b16 %v2237
    %v2503 = vunpack.c.h.b16 %v2237
    %v2504 = vunpack.c.l.b16 %v2238
    %v2505 = vunpack.c.h.b16 %v2238
    %v2506 = vunpack.c.l.b16 %v2239
    %v2507 = vunpack.c.h.b16 %v2239
    %v2508 = vunpack.c.l.b16 %v2240
    %v2509 = vunpack.c.h.b16 %v2240
    %v2510 = vunpack.c.l.b16 %v2241
    %v2511 = vunpack.c.h.b16 %v2241
    %v2512 = vunpack.c.l.b16 %v2242
    %v2513 = vunpack.c.h.b16 %v2242
    %v2514 = vunpack.c.l.b16 %v2243
    %v2515 = vunpack.c.h.b16 %v2243
    %v2516 = vunpack.c.l.b16 %v2244
    %v2517 = vunpack.c.h.b16 %v2244
    %v2518 = vunpack.c.l.b16 %v2245
    %v2519 = vunpack.c.h.b16 %v2245
    %v2520 = vunpack.c.l.b16 %v2246
    %v2521 = vunpack.c.h.b16 %v2246
    %v2522 = vunpack.c.l.b16 %v2247
    %v2523 = vunpack.c.h.b16 %v2247
    %v2524 = vunpack.c.l.b16 %v2248
    %v2525 = vunpack.c.h.b16 %v2248
    %v2526 = vunpack.c.l.b16 %v2249
    %v2527 = vunpack.c.h.b16 %v2249
    %v2528 = vunpack.c.l.b16 %v2250
    %v2529 = vunpack.c.h.b16 %v2250
    %v2530 = vunpack.c.l.b16 %v2251
    %v2531 = vunpack.c.h.b16 %v2251
    %v2532 = vunpack.c.l.b16 %v2252
    %v2533 = vunpack.c.h.b16 %v2252
    %v2534 = vunpack.c.l.b16 %v2253
    %v2535 = vunpack.c.h.b16 %v2253
    %v2536 = vunpack.c.l.b16 %v2254
    %v2537 = vunpack.c.h.b16 %v2254
    %v2538 = vunpack.c.l.b16 %v2255
    %v2539 = vunpack.c.h.b16 %v2255
    %v2540 = vunpack.c.l.b16 %v2256
    %v2541 = vunpack.c.h.b16 %v2256
    %v2542 = vunpack.c.l.b16 %v2257
    %v2543 = vunpack.c.h.b16 %v2257
    %v2544 = vunpack.c.l.b16 %v2258
    %v2545 = vunpack.c.h.b16 %v2258
    %v2546 = vunpack.c.l.b16 %v2259
    %v2547 = vunpack.c.h.b16 %v2259
    %v2548 = vpack.c.b16 %v2358, %v2356
    %v2549 = vpack.c.b16 %v2359, %v2357
    %v2550 = vpack.c.b16 %v2362, %v2360
    %v2551 = vpack.c.b16 %v2363, %v2361
    %v2552 = vpack.c.b16 %v2366, %v2364
    %v2553 = vpack.c.b16 %v2367, %v2365
    %v2554 = vpack.c.b16 %v2370, %v2368
    %v2555 = vpack.c.b16 %v2371, %v2369
    %v2556 = vpack.c.b16 %v2374, %v2372
    %v2557 = vpack.c.b16 %v2375, %v2373
    %v2558 = vpack.c.b16 %v2378, %v2376
    %v2559 = vpack.c.b16 %v2379, %v2377
    %v2560 = vpack.c.b16 %v2382, %v2380
    %v2561 = vpack.c.b16 %v2383, %v2381
    %v2562 = vpack.c.b16 %v2386, %v2384
    %v2563 = vpack.c.b16 %v2387, %v2385
    %v2564 = vpack.c.b16 %v2390, %v2388
    %v2565 = vpack.c.b16 %v2391, %v2389
    %v2566 = vpack.c.b16 %v2394, %v2392
    %v2567 = vpack.c.b16 %v2395, %v2393
    %v2568 = vpack.c.b16 %v2398, %v2396
    %v2569 = vpack.c.b16 %v2399, %v2397
    %v2570 = vpack.c.b16 %v2402, %v2400
    %v2571 = vpack.c.b16 %v2403, %v2401
    %v2572 = vpack.c.b16 %v2406, %v2404
    %v2573 = vpack.c.b16 %v2407, %v2405
    %v2574 = vpack.c.b16 %v2410, %v2408
    %v2575 = vpack.c.b16 %v2411, %v2409
    %v2576 = vpack.c.b16 %v2414, %v2412
    %v2577 = vpack.c.b16 %v2415, %v2413
    %v2578 = vpack.c.b16 %v2418, %v2416
    %v2579 = vpack.c.b16 %v2419, %v2417
    %v2580 = vpack.c.b16 %v2422, %v2420
    %v2581 = vpack.c.b16 %v2423, %v2421
    %v2582 = vpack.c.b16 %v2426, %v2424
    %v2583 = vpack.c.b16 %v2427, %v2425
    %v2584 = vpack.c.b16 %v2430, %v2428
    %v2585 = vpack.c.b16 %v2431, %v2429
    %v2586 = vpack.c.b16 %v2434, %v2432
    %v2587 = vpack.c.b16 %v2435, %v2433
    %v2588 = vpack.c.b16 %v2438, %v2436
    %v2589 = vpack.c.b16 %v2439, %v2437
    %v2590 = vpack.c.b16 %v2442, %v2440
    %v2591 = vpack.c.b16 %v2443, %v2441
    %v2592 = vpack.c.b16 %v2446, %v2444
    %v2593 = vpack.c.b16 %v2447, %v2445
    %v2594 = vpack.c.b16 %v2450, %v2448
    %v2595 = vpack.c.b16 %v2451, %v2449
    %v2596 = vpack.c.b16 %v2454, %v2452
    %v2597 = vpack.c.b16 %v2455, %v2453
    %v2598 = vpack.c.b16 %v2458, %v2456
    %v2599 = vpack.c.b16 %v2459, %v2457
    %v2600 = vpack.c.b16 %v2462, %v2460
    %v2601 = vpack.c.b16 %v2463, %v2461
    %v2602 = vpack.c.b16 %v2466, %v2464
    %v2603 = vpack.c.b16 %v2467, %v2465
    %v2604 = vpack.c.b16 %v2470, %v2468
    %v2605 = vpack.c.b16 %v2471, %v2469
    %v2606 = vpack.c.b16 %v2474, %v2472
    %v2607 = vpack.c.b16 %v2475, %v2473
    %v2608 = vpack.c.b16 %v2478, %v2476
    %v2609 = vpack.c.b16 %v2479, %v2477
    %v2610 = vpack.c.b16 %v2482, %v2480
    %v2611 = vpack.c.b16 %v2483, %v2481
    %v2612 = vpack.c.b16 %v2486, %v2484
    %v2613 = vpack.c.b16 %v2487, %v2485
    %v2614 = vpack.c.b16 %v2490, %v2488
    %v2615 = vpack.c.b16 %v2491, %v2489
    %v2616 = vpack.c.b16 %v2494, %v2492
    %v2617 = vpack.c.b16 %v2495, %v2493
    %v2618 = vpack.c.b16 %v2498, %v2496
    %v2619 = vpack.c.b16 %v2499, %v2497
    %v2620 = vpack.c.b16 %v2502, %v2500
    %v2621 = vpack.c.b16 %v2503, %v2501
    %v2622 = vpack.c.b16 %v2506, %v2504
    %v2623 = vpack.c.b16 %v2507, %v2505
    %v2624 = vpack.c.b16 %v2510, %v2508
    %v2625 = vpack.c.b16 %v2511, %v2509
    %v2626 = vpack.c.b16 %v2514, %v2512
    %v2627 = vpack.c.b16 %v2515, %v2513
    %v2628 = vpack.c.b16 %v2518, %v2516
    %v2629 = vpack.c.b16 %v2519, %v2517
    %v2630 = vpack.c.b16 %v2522, %v2520
    %v2631 = vpack.c.b16 %v2523, %v2521
    %v2632 = vpack.c.b16 %v2526, %v2524
    %v2633 = vpack.c.b16 %v2527, %v2525
    %v2634 = vpack.c.b16 %v2530, %v2528
    %v2635 = vpack.c.b16 %v2531, %v2529
    %v2636 = vpack.c.b16 %v2534, %v2532
    %v2637 = vpack.c.b16 %v2535, %v2533
    %v2638 = vpack.c.b16 %v2538, %v2536
    %v2639 = vpack.c.b16 %v2539, %v2537
    %v2640 = vpack.c.b16 %v2542, %v2540
    %v2641 = vpack.c.b16 %v2543, %v2541
    %v2642 = vpack.c.b16 %v2546, %v2544
    %v2643 = vpack.c.b16 %v2547, %v2545
    %2740 = vmatprep.subr.bf16.mxu0 %v2563
    %2741 = vmatpush1.bf16.msra.mxu0 %v2562
    %2742 = vmatprep.subr.bf16.mxu0 %v2561
    %2743 = vmatpush1.bf16.msra.mxu0 %v2560
    %2744 = vmatprep.subr.bf16.mxu0 %v2559
    %2745 = vmatpush1.bf16.msra.mxu0 %v2558
    %2746 = vmatprep.subr.bf16.mxu0 %v2557
    %2747 = vmatpush1.bf16.msra.mxu0 %v2556
    %2748 = vmatprep.subr.bf16.mxu0 %v2555
    %2749 = vmatpush1.bf16.msra.mxu0 %v2554
    %2750 = vmatprep.subr.bf16.mxu0 %v2553
    %2751 = vmatpush1.bf16.msra.mxu0 %v2552
    %2752 = vmatprep.subr.bf16.mxu0 %v2551
    %2753 = vmatpush1.bf16.msra.mxu0 %v2550
    %2754 = vmatprep.subr.bf16.mxu0 %v2549
    %2755 = vmatpush1.bf16.msra.mxu0 %v2548
    %2756 = vmatprep.subr.bf16.mxu0 %v2579
    %2757 = vmatpush2.bf16.msra.mxu0 %v2578
    %2758 = vmatprep.subr.bf16.mxu0 %v2577
    %2759 = vmatpush2.bf16.msra.mxu0 %v2576
    %2760 = vmatprep.subr.bf16.mxu0 %v2575
    %2761 = vmatpush2.bf16.msra.mxu0 %v2574
    %2762 = vmatprep.subr.bf16.mxu0 %v2573
    %2763 = vmatpush2.bf16.msra.mxu0 %v2572
    %2764 = vmatprep.subr.bf16.mxu0 %v2571
    %2765 = vmatpush2.bf16.msra.mxu0 %v2570
    %2766 = vmatprep.subr.bf16.mxu0 %v2569
    %2767 = vmatpush2.bf16.msra.mxu0 %v2568
    %2768 = vmatprep.subr.bf16.mxu0 %v2567
    %2769 = vmatpush2.bf16.msra.mxu0 %v2566
    %2770 = vmatprep.subr.bf16.mxu0 %v2565
    %2771 = vmatpush2.bf16.msra.mxu0 %v2564
    %2772 = vmatprep.mubr.bf16.mxu0 %v2153
    %2773 = vmatmul.mubr.bf16.gmra.mxu0 %v2152
    %v2774 = vpop.f32.mrf.mxu0
    %v2775 = vadd.f32 0.0, %v2774
    %v2776 = vpop.f32.mrf.mxu0
    %v2777 = vadd.f32 0.0, %v2776
    %v2778 = vpop.f32.mrf.mxu0
    %v2779 = vadd.f32 0.0, %v2778
    %v2780 = vpop.f32.mrf.mxu0
    %v2781 = vadd.f32 0.0, %v2780
    %2782 = vmatprep.mubr.bf16.mxu0 %v2159
    %2783 = vmatmul.mubr.bf16.gmra.mxu0 %v2158
    %v2784 = vpop.f32.mrf.mxu0
    %v2785 = vadd.f32 0.0, %v2784
    %v2786 = vpop.f32.mrf.mxu0
    %v2787 = vadd.f32 0.0, %v2786
    %v2788 = vpop.f32.mrf.mxu0
    %v2789 = vadd.f32 0.0, %v2788
    %v2790 = vpop.f32.mrf.mxu0
    %v2791 = vadd.f32 0.0, %v2790
    %2792 = vdwg.mxu0
    %2793 = vmatprep.subr.bf16.mxu0 %v2595
    %2794 = vmatpush1.bf16.msra.mxu0 %v2594
    %2795 = vmatprep.subr.bf16.mxu0 %v2593
    %2796 = vmatpush1.bf16.msra.mxu0 %v2592
    %2797 = vmatprep.subr.bf16.mxu0 %v2591
    %2798 = vmatpush1.bf16.msra.mxu0 %v2590
    %2799 = vmatprep.subr.bf16.mxu0 %v2589
    %2800 = vmatpush1.bf16.msra.mxu0 %v2588
    %2801 = vmatprep.subr.bf16.mxu0 %v2587
    %2802 = vmatpush1.bf16.msra.mxu0 %v2586
    %2803 = vmatprep.subr.bf16.mxu0 %v2585
    %2804 = vmatpush1.bf16.msra.mxu0 %v2584
    %2805 = vmatprep.subr.bf16.mxu0 %v2583
    %2806 = vmatpush1.bf16.msra.mxu0 %v2582
    %2807 = vmatprep.subr.bf16.mxu0 %v2581
    %2808 = vmatpush1.bf16.msra.mxu0 %v2580
    %2809 = vmatprep.subr.bf16.mxu0 %v2611
    %2810 = vmatpush2.bf16.msra.mxu0 %v2610
    %2811 = vmatprep.subr.bf16.mxu0 %v2609
    %2812 = vmatpush2.bf16.msra.mxu0 %v2608
    %2813 = vmatprep.subr.bf16.mxu0 %v2607
    %2814 = vmatpush2.bf16.msra.mxu0 %v2606
    %2815 = vmatprep.subr.bf16.mxu0 %v2605
    %2816 = vmatpush2.bf16.msra.mxu0 %v2604
    %2817 = vmatprep.subr.bf16.mxu0 %v2603
    %2818 = vmatpush2.bf16.msra.mxu0 %v2602
    %2819 = vmatprep.subr.bf16.mxu0 %v2601
    %2820 = vmatpush2.bf16.msra.mxu0 %v2600
    %2821 = vmatprep.subr.bf16.mxu0 %v2599
    %2822 = vmatpush2.bf16.msra.mxu0 %v2598
    %2823 = vmatprep.subr.bf16.mxu0 %v2597
    %2824 = vmatpush2.bf16.msra.mxu0 %v2596
    %2825 = vmatprep.mubr.bf16.mxu0 %v2155
    %2826 = vmatmul.mubr.bf16.gmra.mxu0 %v2154
    %v2827 = vpop.f32.mrf.mxu0
    %v2828 = vadd.f32 %v2775, %v2827
    %v2829 = vpop.f32.mrf.mxu0
    %v2830 = vadd.f32 %v2777, %v2829
    %v2831 = vpop.f32.mrf.mxu0
    %v2832 = vadd.f32 %v2779, %v2831
    %v2833 = vpop.f32.mrf.mxu0
    %v2834 = vadd.f32 %v2781, %v2833
    %2835 = vmatprep.mubr.bf16.mxu0 %v2161
    %2836 = vmatmul.mubr.bf16.gmra.mxu0 %v2160
    %v2837 = vpop.f32.mrf.mxu0
    %v2838 = vadd.f32 %v2785, %v2837
    %v2839 = vpop.f32.mrf.mxu0
    %v2840 = vadd.f32 %v2787, %v2839
    %v2841 = vpop.f32.mrf.mxu0
    %v2842 = vadd.f32 %v2789, %v2841
    %v2843 = vpop.f32.mrf.mxu0
    %v2844 = vadd.f32 %v2791, %v2843
    %2845 = vdwg.mxu0
    %2846 = vmatprep.subr.bf16.mxu0 %v2627
    %2847 = vmatpush1.bf16.msra.mxu0 %v2626
    %2848 = vmatprep.subr.bf16.mxu0 %v2625
    %2849 = vmatpush1.bf16.msra.mxu0 %v2624
    %2850 = vmatprep.subr.bf16.mxu0 %v2623
    %2851 = vmatpush1.bf16.msra.mxu0 %v2622
    %2852 = vmatprep.subr.bf16.mxu0 %v2621
    %2853 = vmatpush1.bf16.msra.mxu0 %v2620
    %2854 = vmatprep.subr.bf16.mxu0 %v2619
    %2855 = vmatpush1.bf16.msra.mxu0 %v2618
    %2856 = vmatprep.subr.bf16.mxu0 %v2617
    %2857 = vmatpush1.bf16.msra.mxu0 %v2616
    %2858 = vmatprep.subr.bf16.mxu0 %v2615
    %2859 = vmatpush1.bf16.msra.mxu0 %v2614
    %2860 = vmatprep.subr.bf16.mxu0 %v2613
    %2861 = vmatpush1.bf16.msra.mxu0 %v2612
    %2862 = vmatprep.subr.bf16.mxu0 %v2643
    %2863 = vmatpush2.bf16.msra.mxu0 %v2642
    %2864 = vmatprep.subr.bf16.mxu0 %v2641
    %2865 = vmatpush2.bf16.msra.mxu0 %v2640
    %2866 = vmatprep.subr.bf16.mxu0 %v2639
    %2867 = vmatpush2.bf16.msra.mxu0 %v2638
    %2868 = vmatprep.subr.bf16.mxu0 %v2637
    %2869 = vmatpush2.bf16.msra.mxu0 %v2636
    %2870 = vmatprep.subr.bf16.mxu0 %v2635
    %2871 = vmatpush2.bf16.msra.mxu0 %v2634
    %2872 = vmatprep.subr.bf16.mxu0 %v2633
    %2873 = vmatpush2.bf16.msra.mxu0 %v2632
    %2874 = vmatprep.subr.bf16.mxu0 %v2631
    %2875 = vmatpush2.bf16.msra.mxu0 %v2630
    %2876 = vmatprep.subr.bf16.mxu0 %v2629
    %2877 = vmatpush2.bf16.msra.mxu0 %v2628
    %2878 = vmatprep.mubr.bf16.mxu0 %v2157
    %2879 = vmatmul.mubr.bf16.gmra.mxu0 %v2156
    %v2880 = vpop.f32.mrf.mxu0
    %v2881 = vadd.f32 %v2828, %v2880
    %v2882 = vpop.f32.mrf.mxu0
    %v2883 = vadd.f32 %v2830, %v2882
    %v2884 = vpop.f32.mrf.mxu0
    %v2885 = vadd.f32 %v2832, %v2884
    %v2886 = vpop.f32.mrf.mxu0
    %v2887 = vadd.f32 %v2834, %v2886
    %2888 = vmatprep.mubr.bf16.mxu0 %v2163
    %2889 = vmatmul.mubr.bf16.gmra.mxu0 %v2162
    %v2890 = vpop.f32.mrf.mxu0
    %v2891 = vadd.f32 %v2838, %v2890
    %v2892 = vpop.f32.mrf.mxu0
    %v2893 = vadd.f32 %v2840, %v2892
    %v2894 = vpop.f32.mrf.mxu0
    %v2895 = vadd.f32 %v2842, %v2894
    %v2896 = vpop.f32.mrf.mxu0
    %v2897 = vadd.f32 %v2844, %v2896
    %2898 = vdwg.mxu0
    %v2900 = vlaneseq
    %v2901 = vshrl.u32 %v2900, 7
    %v2902 = vsub.s32 0, %v2901
    %v2903 = vrot.slane %v2151, %v2902
    %v2904 = vlaneseq
    %v2905 = vshrl.u32 %v2904, 7
    %v2906 = vsub.s32 2, %v2905
    %v2907 = vrot.slane %v2151, %v2906
    %v2910 = vlaneseq
    %v2911 = vshrl.u32 %v2910, 7
    %v2912 = vsub.s32 0, %v2911
    %v2913 = vrot.slane %v2903, %v2912
    %v2914 = vlaneseq
    %v2915 = vshrl.u32 %v2914, 7
    %v2916 = vsub.s32 0, %v2915
    %v2917 = vrot.slane %v2907, %v2916
    %v2918 = vmul.f32 %v2881, %v2913
    %v2919 = vmul.f32 %v2883, %v2917
    %v2920 = vmul.f32 %v2885, %v2913
    %v2921 = vmul.f32 %v2887, %v2917
    %v2922 = vmul.f32 %v2891, %v2913
    %v2923 = vmul.f32 %v2893, %v2917
    %v2924 = vmul.f32 %v2895, %v2913
    %v2925 = vmul.f32 %v2897, %v2917
    %v2926 = vlaneseq
    %v2927 = vshrl.u32 %v2926, 7
    %v2928 = vsub.s32 1, %v2927
    %v2929 = vrot.slane %v2151, %v2928
    %v2930 = vlaneseq
    %v2931 = vshrl.u32 %v2930, 7
    %v2932 = vsub.s32 3, %v2931
    %v2933 = vrot.slane %v2151, %v2932
    %v2936 = vlaneseq
    %v2937 = vshrl.u32 %v2936, 7
    %v2938 = vsub.s32 1, %v2937
    %v2939 = vrot.slane %v2929, %v2938
    %v2940 = vlaneseq
    %v2941 = vshrl.u32 %v2940, 7
    %v2942 = vsub.s32 1, %v2941
    %v2943 = vrot.slane %v2933, %v2942
    %v2944 = vadd.f32 %v2918, %v2939
    %v2945 = vadd.f32 %v2919, %v2943
    %v2946 = vadd.f32 %v2920, %v2939
    %v2947 = vadd.f32 %v2921, %v2943
    %v2948 = vadd.f32 %v2922, %v2939
    %v2949 = vadd.f32 %v2923, %v2943
    %v2950 = vadd.f32 %v2924, %v2939
    %v2951 = vadd.f32 %v2925, %v2943
    %v2952 = vpack.c.bf16 %v2946, %v2944
    %v2953 = vpack.c.bf16 %v2947, %v2945
    %v2954 = vpack.c.bf16 %v2950, %v2948
    %v2955 = vpack.c.bf16 %v2951, %v2949
    %v2956 = vld [vmem:[%s9] sm:$0xff]
    %v2957 = vld [vmem:[%s9 + $0x8] sm:$0xff]
    %v2958 = vld [vmem:[%s9 + $0x10] sm:$0xff]
    %v2959 = vld [vmem:[%s9 + $0x18] sm:$0xff]
    %v2960 = vld [vmem:[%s9 + $0x20] sm:$0xff]
    %v2961 = vld [vmem:[%s9 + $0x28] sm:$0xff]
    %v2962 = vld [vmem:[%s9 + $0x30] sm:$0xff]
    %v2963 = vld [vmem:[%s9 + $0x38] sm:$0xff]
    %v2964 = vld [vmem:[%s9 + $0x40] sm:$0xff]
    %v2965 = vld [vmem:[%s9 + $0x48] sm:$0xff]
    %v2966 = vld [vmem:[%s9 + $0x50] sm:$0xff]
    %v2967 = vld [vmem:[%s9 + $0x58] sm:$0xff]
    %v2968 = vld [vmem:[%s9 + $0x60] sm:$0xff]
    %v2969 = vld [vmem:[%s9 + $0x68] sm:$0xff]
    %v2970 = vld [vmem:[%s9 + $0x70] sm:$0xff]
    %v2971 = vld [vmem:[%s9 + $0x78] sm:$0xff]
    %v2972 = vld [vmem:[%s9 + $0x80] sm:$0xff]
    %v2973 = vld [vmem:[%s9 + $0x88] sm:$0xff]
    %v2974 = vld [vmem:[%s9 + $0x90] sm:$0xff]
    %v2975 = vld [vmem:[%s9 + $0x98] sm:$0xff]
    %v2976 = vld [vmem:[%s9 + $0xa0] sm:$0xff]
    %v2977 = vld [vmem:[%s9 + $0xa8] sm:$0xff]
    %v2978 = vld [vmem:[%s9 + $0xb0] sm:$0xff]
    %v2979 = vld [vmem:[%s9 + $0xb8] sm:$0xff]
    %v2980 = vld [vmem:[%s9 + $0xc0] sm:$0xff]
    %v2981 = vld [vmem:[%s9 + $0xc8] sm:$0xff]
    %v2982 = vld [vmem:[%s9 + $0xd0] sm:$0xff]
    %v2983 = vld [vmem:[%s9 + $0xd8] sm:$0xff]
    %v2984 = vld [vmem:[%s9 + $0xe0] sm:$0xff]
    %v2985 = vld [vmem:[%s9 + $0xe8] sm:$0xff]
    %v2986 = vld [vmem:[%s9 + $0xf0] sm:$0xff]
    %v2987 = vld [vmem:[%s9 + $0xf8] sm:$0xff]
    %v2988 = vld [vmem:[%s9 + $0x100] sm:$0xff]
    %v2989 = vld [vmem:[%s9 + $0x108] sm:$0xff]
    %v2990 = vld [vmem:[%s9 + $0x110] sm:$0xff]
    %v2991 = vld [vmem:[%s9 + $0x118] sm:$0xff]
    %v2992 = vld [vmem:[%s9 + $0x120] sm:$0xff]
    %v2993 = vld [vmem:[%s9 + $0x128] sm:$0xff]
    %v2994 = vld [vmem:[%s9 + $0x130] sm:$0xff]
    %v2995 = vld [vmem:[%s9 + $0x138] sm:$0xff]
    %v2996 = vld [vmem:[%s9 + $0x140] sm:$0xff]
    %v2997 = vld [vmem:[%s9 + $0x148] sm:$0xff]
    %v2998 = vld [vmem:[%s9 + $0x150] sm:$0xff]
    %v2999 = vld [vmem:[%s9 + $0x158] sm:$0xff]
    %v3000 = vld [vmem:[%s9 + $0x160] sm:$0xff]
    %v3001 = vld [vmem:[%s9 + $0x168] sm:$0xff]
    %v3002 = vld [vmem:[%s9 + $0x170] sm:$0xff]
    %v3003 = vld [vmem:[%s9 + $0x178] sm:$0xff]
    %v3004 = vld [vmem:[%s9 + $0x180] sm:$0xff]
    %v3005 = vld [vmem:[%s9 + $0x188] sm:$0xff]
    %v3006 = vld [vmem:[%s9 + $0x190] sm:$0xff]
    %v3007 = vld [vmem:[%s9 + $0x198] sm:$0xff]
    %v3008 = vld [vmem:[%s9 + $0x1a0] sm:$0xff]
    %v3009 = vld [vmem:[%s9 + $0x1a8] sm:$0xff]
    %v3010 = vld [vmem:[%s9 + $0x1b0] sm:$0xff]
    %v3011 = vld [vmem:[%s9 + $0x1b8] sm:$0xff]
    %v3012 = vld [vmem:[%s9 + $0x1c0] sm:$0xff]
    %v3013 = vld [vmem:[%s9 + $0x1c8] sm:$0xff]
    %v3014 = vld [vmem:[%s9 + $0x1d0] sm:$0xff]
    %v3015 = vld [vmem:[%s9 + $0x1d8] sm:$0xff]
    %v3016 = vld [vmem:[%s9 + $0x1e0] sm:$0xff]
    %v3017 = vld [vmem:[%s9 + $0x1e8] sm:$0xff]
    %v3018 = vld [vmem:[%s9 + $0x1f0] sm:$0xff]
    %v3019 = vld [vmem:[%s9 + $0x1f8] sm:$0xff]
    %v3084 = vunpack.c.l.b16 %v2956
    %v3085 = vunpack.c.h.b16 %v2956
    %v3086 = vunpack.c.l.b16 %v2957
    %v3087 = vunpack.c.h.b16 %v2957
    %v3088 = vunpack.c.l.b16 %v2958
    %v3089 = vunpack.c.h.b16 %v2958
    %v3090 = vunpack.c.l.b16 %v2959
    %v3091 = vunpack.c.h.b16 %v2959
    %v3092 = vunpack.c.l.b16 %v2960
    %v3093 = vunpack.c.h.b16 %v2960
    %v3094 = vunpack.c.l.b16 %v2961
    %v3095 = vunpack.c.h.b16 %v2961
    %v3096 = vunpack.c.l.b16 %v2962
    %v3097 = vunpack.c.h.b16 %v2962
    %v3098 = vunpack.c.l.b16 %v2963
    %v3099 = vunpack.c.h.b16 %v2963
    %v3100 = vunpack.c.l.b16 %v2964
    %v3101 = vunpack.c.h.b16 %v2964
    %v3102 = vunpack.c.l.b16 %v2965
    %v3103 = vunpack.c.h.b16 %v2965
    %v3104 = vunpack.c.l.b16 %v2966
    %v3105 = vunpack.c.h.b16 %v2966
    %v3106 = vunpack.c.l.b16 %v2967
    %v3107 = vunpack.c.h.b16 %v2967
    %v3108 = vunpack.c.l.b16 %v2968
    %v3109 = vunpack.c.h.b16 %v2968
    %v3110 = vunpack.c.l.b16 %v2969
    %v3111 = vunpack.c.h.b16 %v2969
    %v3112 = vunpack.c.l.b16 %v2970
    %v3113 = vunpack.c.h.b16 %v2970
    %v3114 = vunpack.c.l.b16 %v2971
    %v3115 = vunpack.c.h.b16 %v2971
    %v3116 = vunpack.c.l.b16 %v2972
    %v3117 = vunpack.c.h.b16 %v2972
    %v3118 = vunpack.c.l.b16 %v2973
    %v3119 = vunpack.c.h.b16 %v2973
    %v3120 = vunpack.c.l.b16 %v2974
    %v3121 = vunpack.c.h.b16 %v2974
    %v3122 = vunpack.c.l.b16 %v2975
    %v3123 = vunpack.c.h.b16 %v2975
    %v3124 = vunpack.c.l.b16 %v2976
    %v3125 = vunpack.c.h.b16 %v2976
    %v3126 = vunpack.c.l.b16 %v2977
    %v3127 = vunpack.c.h.b16 %v2977
    %v3128 = vunpack.c.l.b16 %v2978
    %v3129 = vunpack.c.h.b16 %v2978
    %v3130 = vunpack.c.l.b16 %v2979
    %v3131 = vunpack.c.h.b16 %v2979
    %v3132 = vunpack.c.l.b16 %v2980
    %v3133 = vunpack.c.h.b16 %v2980
    %v3134 = vunpack.c.l.b16 %v2981
    %v3135 = vunpack.c.h.b16 %v2981
    %v3136 = vunpack.c.l.b16 %v2982
    %v3137 = vunpack.c.h.b16 %v2982
    %v3138 = vunpack.c.l.b16 %v2983
    %v3139 = vunpack.c.h.b16 %v2983
    %v3140 = vunpack.c.l.b16 %v2984
    %v3141 = vunpack.c.h.b16 %v2984
    %v3142 = vunpack.c.l.b16 %v2985
    %v3143 = vunpack.c.h.b16 %v2985
    %v3144 = vunpack.c.l.b16 %v2986
    %v3145 = vunpack.c.h.b16 %v2986
    %v3146 = vunpack.c.l.b16 %v2987
    %v3147 = vunpack.c.h.b16 %v2987
    %v3148 = vunpack.c.l.b16 %v2988
    %v3149 = vunpack.c.h.b16 %v2988
    %v3150 = vunpack.c.l.b16 %v2989
    %v3151 = vunpack.c.h.b16 %v2989
    %v3152 = vunpack.c.l.b16 %v2990
    %v3153 = vunpack.c.h.b16 %v2990
    %v3154 = vunpack.c.l.b16 %v2991
    %v3155 = vunpack.c.h.b16 %v2991
    %v3156 = vunpack.c.l.b16 %v2992
    %v3157 = vunpack.c.h.b16 %v2992
    %v3158 = vunpack.c.l.b16 %v2993
    %v3159 = vunpack.c.h.b16 %v2993
    %v3160 = vunpack.c.l.b16 %v2994
    %v3161 = vunpack.c.h.b16 %v2994
    %v3162 = vunpack.c.l.b16 %v2995
    %v3163 = vunpack.c.h.b16 %v2995
    %v3164 = vunpack.c.l.b16 %v2996
    %v3165 = vunpack.c.h.b16 %v2996
    %v3166 = vunpack.c.l.b16 %v2997
    %v3167 = vunpack.c.h.b16 %v2997
    %v3168 = vunpack.c.l.b16 %v2998
    %v3169 = vunpack.c.h.b16 %v2998
    %v3170 = vunpack.c.l.b16 %v2999
    %v3171 = vunpack.c.h.b16 %v2999
    %v3172 = vunpack.c.l.b16 %v3000
    %v3173 = vunpack.c.h.b16 %v3000
    %v3174 = vunpack.c.l.b16 %v3001
    %v3175 = vunpack.c.h.b16 %v3001
    %v3176 = vunpack.c.l.b16 %v3002
    %v3177 = vunpack.c.h.b16 %v3002
    %v3178 = vunpack.c.l.b16 %v3003
    %v3179 = vunpack.c.h.b16 %v3003
    %v3180 = vunpack.c.l.b16 %v3004
    %v3181 = vunpack.c.h.b16 %v3004
    %v3182 = vunpack.c.l.b16 %v3005
    %v3183 = vunpack.c.h.b16 %v3005
    %v3184 = vunpack.c.l.b16 %v3006
    %v3185 = vunpack.c.h.b16 %v3006
    %v3186 = vunpack.c.l.b16 %v3007
    %v3187 = vunpack.c.h.b16 %v3007
    %v3188 = vunpack.c.l.b16 %v3008
    %v3189 = vunpack.c.h.b16 %v3008
    %v3190 = vunpack.c.l.b16 %v3009
    %v3191 = vunpack.c.h.b16 %v3009
    %v3192 = vunpack.c.l.b16 %v3010
    %v3193 = vunpack.c.h.b16 %v3010
    %v3194 = vunpack.c.l.b16 %v3011
    %v3195 = vunpack.c.h.b16 %v3011
    %v3196 = vunpack.c.l.b16 %v3012
    %v3197 = vunpack.c.h.b16 %v3012
    %v3198 = vunpack.c.l.b16 %v3013
    %v3199 = vunpack.c.h.b16 %v3013
    %v3200 = vunpack.c.l.b16 %v3014
    %v3201 = vunpack.c.h.b16 %v3014
    %v3202 = vunpack.c.l.b16 %v3015
    %v3203 = vunpack.c.h.b16 %v3015
    %v3204 = vunpack.c.l.b16 %v3016
    %v3205 = vunpack.c.h.b16 %v3016
    %v3206 = vunpack.c.l.b16 %v3017
    %v3207 = vunpack.c.h.b16 %v3017
    %v3208 = vunpack.c.l.b16 %v3018
    %v3209 = vunpack.c.h.b16 %v3018
    %v3210 = vunpack.c.l.b16 %v3019
    %v3211 = vunpack.c.h.b16 %v3019
    %v3212 = vpack.c.b16 %v3088, %v3084
    %v3213 = vpack.c.b16 %v3089, %v3085
    %v3214 = vpack.c.b16 %v3090, %v3086
    %v3215 = vpack.c.b16 %v3091, %v3087
    %v3216 = vpack.c.b16 %v3096, %v3092
    %v3217 = vpack.c.b16 %v3097, %v3093
    %v3218 = vpack.c.b16 %v3098, %v3094
    %v3219 = vpack.c.b16 %v3099, %v3095
    %v3220 = vpack.c.b16 %v3104, %v3100
    %v3221 = vpack.c.b16 %v3105, %v3101
    %v3222 = vpack.c.b16 %v3106, %v3102
    %v3223 = vpack.c.b16 %v3107, %v3103
    %v3224 = vpack.c.b16 %v3112, %v3108
    %v3225 = vpack.c.b16 %v3113, %v3109
    %v3226 = vpack.c.b16 %v3114, %v3110
    %v3227 = vpack.c.b16 %v3115, %v3111
    %v3228 = vpack.c.b16 %v3120, %v3116
    %v3229 = vpack.c.b16 %v3121, %v3117
    %v3230 = vpack.c.b16 %v3122, %v3118
    %v3231 = vpack.c.b16 %v3123, %v3119
    %v3232 = vpack.c.b16 %v3128, %v3124
    %v3233 = vpack.c.b16 %v3129, %v3125
    %v3234 = vpack.c.b16 %v3130, %v3126
    %v3235 = vpack.c.b16 %v3131, %v3127
    %v3236 = vpack.c.b16 %v3136, %v3132
    %v3237 = vpack.c.b16 %v3137, %v3133
    %v3238 = vpack.c.b16 %v3138, %v3134
    %v3239 = vpack.c.b16 %v3139, %v3135
    %v3240 = vpack.c.b16 %v3144, %v3140
    %v3241 = vpack.c.b16 %v3145, %v3141
    %v3242 = vpack.c.b16 %v3146, %v3142
    %v3243 = vpack.c.b16 %v3147, %v3143
    %v3244 = vpack.c.b16 %v3152, %v3148
    %v3245 = vpack.c.b16 %v3153, %v3149
    %v3246 = vpack.c.b16 %v3154, %v3150
    %v3247 = vpack.c.b16 %v3155, %v3151
    %v3248 = vpack.c.b16 %v3160, %v3156
    %v3249 = vpack.c.b16 %v3161, %v3157
    %v3250 = vpack.c.b16 %v3162, %v3158
    %v3251 = vpack.c.b16 %v3163, %v3159
    %v3252 = vpack.c.b16 %v3168, %v3164
    %v3253 = vpack.c.b16 %v3169, %v3165
    %v3254 = vpack.c.b16 %v3170, %v3166
    %v3255 = vpack.c.b16 %v3171, %v3167
    %v3256 = vpack.c.b16 %v3176, %v3172
    %v3257 = vpack.c.b16 %v3177, %v3173
    %v3258 = vpack.c.b16 %v3178, %v3174
    %v3259 = vpack.c.b16 %v3179, %v3175
    %v3260 = vpack.c.b16 %v3184, %v3180
    %v3261 = vpack.c.b16 %v3185, %v3181
    %v3262 = vpack.c.b16 %v3186, %v3182
    %v3263 = vpack.c.b16 %v3187, %v3183
    %v3264 = vpack.c.b16 %v3192, %v3188
    %v3265 = vpack.c.b16 %v3193, %v3189
    %v3266 = vpack.c.b16 %v3194, %v3190
    %v3267 = vpack.c.b16 %v3195, %v3191
    %v3268 = vpack.c.b16 %v3200, %v3196
    %v3269 = vpack.c.b16 %v3201, %v3197
    %v3270 = vpack.c.b16 %v3202, %v3198
    %v3271 = vpack.c.b16 %v3203, %v3199
    %v3272 = vpack.c.b16 %v3208, %v3204
    %v3273 = vpack.c.b16 %v3209, %v3205
    %v3274 = vpack.c.b16 %v3210, %v3206
    %v3275 = vpack.c.b16 %v3211, %v3207
    %3340 = vmatprep.subr.bf16.mxu0 %v3241
    %3341 = vmatpush1.bf16.msra.mxu0 %v3240
    %3342 = vmatprep.subr.bf16.mxu0 %v3237
    %3343 = vmatpush1.bf16.msra.mxu0 %v3236
    %3344 = vmatprep.subr.bf16.mxu0 %v3233
    %3345 = vmatpush1.bf16.msra.mxu0 %v3232
    %3346 = vmatprep.subr.bf16.mxu0 %v3229
    %3347 = vmatpush1.bf16.msra.mxu0 %v3228
    %3348 = vmatprep.subr.bf16.mxu0 %v3225
    %3349 = vmatpush1.bf16.msra.mxu0 %v3224
    %3350 = vmatprep.subr.bf16.mxu0 %v3221
    %3351 = vmatpush1.bf16.msra.mxu0 %v3220
    %3352 = vmatprep.subr.bf16.mxu0 %v3217
    %3353 = vmatpush1.bf16.msra.mxu0 %v3216
    %3354 = vmatprep.subr.bf16.mxu0 %v3213
    %3355 = vmatpush1.bf16.msra.mxu0 %v3212
    %3356 = vmatprep.subr.bf16.mxu0 %v3273
    %3357 = vmatpush2.bf16.msra.mxu0 %v3272
    %3358 = vmatprep.subr.bf16.mxu0 %v3269
    %3359 = vmatpush2.bf16.msra.mxu0 %v3268
    %3360 = vmatprep.subr.bf16.mxu0 %v3265
    %3361 = vmatpush2.bf16.msra.mxu0 %v3264
    %3362 = vmatprep.subr.bf16.mxu0 %v3261
    %3363 = vmatpush2.bf16.msra.mxu0 %v3260
    %3364 = vmatprep.subr.bf16.mxu0 %v3257
    %3365 = vmatpush2.bf16.msra.mxu0 %v3256
    %3366 = vmatprep.subr.bf16.mxu0 %v3253
    %3367 = vmatpush2.bf16.msra.mxu0 %v3252
    %3368 = vmatprep.subr.bf16.mxu0 %v3249
    %3369 = vmatpush2.bf16.msra.mxu0 %v3248
    %3370 = vmatprep.subr.bf16.mxu0 %v3245
    %3371 = vmatpush2.bf16.msra.mxu0 %v3244
    %3372 = vmatprep.mubr.bf16.mxu0 %v2953
    %3373 = vmatmul.mubr.bf16.gmra.mxu0 %v2952
    %v3374 = vpop.f32.mrf.mxu0
    %v3375 = vadd.f32 0.0, %v3374
    %v3376 = vpop.f32.mrf.mxu0
    %v3377 = vadd.f32 0.0, %v3376
    %v3378 = vpop.f32.mrf.mxu0
    %v3379 = vadd.f32 0.0, %v3378
    %v3380 = vpop.f32.mrf.mxu0
    %v3381 = vadd.f32 0.0, %v3380
    %3382 = vmatprep.mubr.bf16.mxu0 %v2955
    %3383 = vmatmul.mubr.bf16.gmra.mxu0 %v2954
    %v3384 = vpop.f32.mrf.mxu0
    %v3385 = vadd.f32 0.0, %v3384
    %v3386 = vpop.f32.mrf.mxu0
    %v3387 = vadd.f32 0.0, %v3386
    %v3388 = vpop.f32.mrf.mxu0
    %v3389 = vadd.f32 0.0, %v3388
    %v3390 = vpop.f32.mrf.mxu0
    %v3391 = vadd.f32 0.0, %v3390
    %3392 = vdwg.mxu0
    %3393 = vmatprep.subr.bf16.mxu0 %v3243
    %3394 = vmatpush1.bf16.msra.mxu0 %v3242
    %3395 = vmatprep.subr.bf16.mxu0 %v3239
    %3396 = vmatpush1.bf16.msra.mxu0 %v3238
    %3397 = vmatprep.subr.bf16.mxu0 %v3235
    %3398 = vmatpush1.bf16.msra.mxu0 %v3234
    %3399 = vmatprep.subr.bf16.mxu0 %v3231
    %3400 = vmatpush1.bf16.msra.mxu0 %v3230
    %3401 = vmatprep.subr.bf16.mxu0 %v3227
    %3402 = vmatpush1.bf16.msra.mxu0 %v3226
    %3403 = vmatprep.subr.bf16.mxu0 %v3223
    %3404 = vmatpush1.bf16.msra.mxu0 %v3222
    %3405 = vmatprep.subr.bf16.mxu0 %v3219
    %3406 = vmatpush1.bf16.msra.mxu0 %v3218
    %3407 = vmatprep.subr.bf16.mxu0 %v3215
    %3408 = vmatpush1.bf16.msra.mxu0 %v3214
    %3409 = vmatprep.subr.bf16.mxu0 %v3275
    %3410 = vmatpush2.bf16.msra.mxu0 %v3274
    %3411 = vmatprep.subr.bf16.mxu0 %v3271
    %3412 = vmatpush2.bf16.msra.mxu0 %v3270
    %3413 = vmatprep.subr.bf16.mxu0 %v3267
    %3414 = vmatpush2.bf16.msra.mxu0 %v3266
    %3415 = vmatprep.subr.bf16.mxu0 %v3263
    %3416 = vmatpush2.bf16.msra.mxu0 %v3262
    %3417 = vmatprep.subr.bf16.mxu0 %v3259
    %3418 = vmatpush2.bf16.msra.mxu0 %v3258
    %3419 = vmatprep.subr.bf16.mxu0 %v3255
    %3420 = vmatpush2.bf16.msra.mxu0 %v3254
    %3421 = vmatprep.subr.bf16.mxu0 %v3251
    %3422 = vmatpush2.bf16.msra.mxu0 %v3250
    %3423 = vmatprep.subr.bf16.mxu0 %v3247
    %3424 = vmatpush2.bf16.msra.mxu0 %v3246
    %3425 = vmatprep.mubr.bf16.mxu0 %v2953
    %3426 = vmatmul.mubr.bf16.gmra.mxu0 %v2952
    %v3427 = vpop.f32.mrf.mxu0
    %v3428 = vadd.f32 0.0, %v3427
    %v3429 = vpop.f32.mrf.mxu0
    %v3430 = vadd.f32 0.0, %v3429
    %v3431 = vpop.f32.mrf.mxu0
    %v3432 = vadd.f32 0.0, %v3431
    %v3433 = vpop.f32.mrf.mxu0
    %v3434 = vadd.f32 0.0, %v3433
    %3435 = vmatprep.mubr.bf16.mxu0 %v2955
    %3436 = vmatmul.mubr.bf16.gmra.mxu0 %v2954
    %v3437 = vpop.f32.mrf.mxu0
    %v3438 = vadd.f32 0.0, %v3437
    %v3439 = vpop.f32.mrf.mxu0
    %v3440 = vadd.f32 0.0, %v3439
    %v3441 = vpop.f32.mrf.mxu0
    %v3442 = vadd.f32 0.0, %v3441
    %v3443 = vpop.f32.mrf.mxu0
    %v3444 = vadd.f32 0.0, %v3443
    %3445 = vdwg.mxu0
    %v3446 = vld [vmem:[%s8] sm:$0xff]
    %v3447 = vld [vmem:[%s8 + $0x8] sm:$0xff]
    %v3448 = vld [vmem:[%s8 + $0x10] sm:$0xff]
    %v3449 = vld [vmem:[%s8 + $0x18] sm:$0xff]
    %vm3450 = vcmask 130048
    %v3452 = vsel %vm3450, %v3446, 0
    %v3455 = vsel %vm3450, %v3447, 0
    %v3458 = vsel %vm3450, %v3448, 0
    %v3461 = vsel %vm3450, %v3449, 0
    %3463 = vmatprep.subr.mxu0 0.0
    %3464 = vmatpush1.msra.mxu0 0.0
    %3465 = vmatprep.subr.mxu0 0.0
    %3466 = vmatpush1.msra.mxu0 0.0
    %3467 = vmatprep.subr.mxu0 0.0
    %3468 = vmatpush1.msra.mxu0 0.0
    %3469 = vmatprep.subr.mxu0 0.0
    %3470 = vmatpush1.msra.mxu0 0.0
    %3471 = vmatprep.subr.mxu0 0.0
    %3472 = vmatpush1.msra.mxu0 0.0
    %3473 = vmatprep.subr.mxu0 0.0
    %3474 = vmatpush1.msra.mxu0 0.0
    %3475 = vmatprep.subr.mxu0 0.0
    %3476 = vmatpush1.msra.mxu0 0.0
    %3477 = vmatprep.subr.mxu0 0.0
    %3478 = vmatpush1.msra.mxu0 0.0
    %3479 = vmatprep.subr.mxu0 0.0
    %3480 = vmatpush1.msra.mxu0 0.0
    %3481 = vmatprep.subr.mxu0 0.0
    %3482 = vmatpush1.msra.mxu0 0.0
    %3483 = vmatprep.subr.mxu0 0.0
    %3484 = vmatpush1.msra.mxu0 0.0
    %3485 = vmatprep.subr.mxu0 0.0
    %3486 = vmatpush1.msra.mxu0 0.0
    %3487 = vmatprep.subr.mxu0 0.0
    %3488 = vmatpush1.msra.mxu0 0.0
    %3489 = vmatprep.subr.mxu0 0.0
    %3490 = vmatpush1.msra.mxu0 0.0
    %3491 = vmatprep.subr.mxu0 %v3381
    %3492 = vmatpush1.msra.mxu0 %v3379
    %3493 = vmatprep.subr.mxu0 %v3377
    %3494 = vmatpush1.msra.mxu0 %v3375
    %3495 = vmatprep.subr.mxu0 0.0
    %3496 = vmatpush2.msra.mxu0 0.0
    %3497 = vmatprep.subr.mxu0 0.0
    %3498 = vmatpush2.msra.mxu0 0.0
    %3499 = vmatprep.subr.mxu0 0.0
    %3500 = vmatpush2.msra.mxu0 0.0
    %3501 = vmatprep.subr.mxu0 0.0
    %3502 = vmatpush2.msra.mxu0 0.0
    %3503 = vmatprep.subr.mxu0 0.0
    %3504 = vmatpush2.msra.mxu0 0.0
    %3505 = vmatprep.subr.mxu0 0.0
    %3506 = vmatpush2.msra.mxu0 0.0
    %3507 = vmatprep.subr.mxu0 0.0
    %3508 = vmatpush2.msra.mxu0 0.0
    %3509 = vmatprep.subr.mxu0 0.0
    %3510 = vmatpush2.msra.mxu0 0.0
    %3511 = vmatprep.subr.mxu0 0.0
    %3512 = vmatpush2.msra.mxu0 0.0
    %3513 = vmatprep.subr.mxu0 0.0
    %3514 = vmatpush2.msra.mxu0 0.0
    %3515 = vmatprep.subr.mxu0 0.0
    %3516 = vmatpush2.msra.mxu0 0.0
    %3517 = vmatprep.subr.mxu0 0.0
    %3518 = vmatpush2.msra.mxu0 0.0
    %3519 = vmatprep.subr.mxu0 0.0
    %3520 = vmatpush2.msra.mxu0 0.0
    %3521 = vmatprep.subr.mxu0 0.0
    %3522 = vmatpush2.msra.mxu0 0.0
    %3523 = vmatprep.subr.mxu0 0.0
    %3524 = vmatpush2.msra.mxu0 0.0
    %3525 = vmatprep.subr.mxu0 0.0
    %3526 = vmatpush2.msra.mxu0 0.0
    %3527 = vmatprep.mubr.f32.mxu0 0.0
    %3528 = vmatmul.mubr.f32.gmra.mxu0 %v3452
    %v3529 = vpop.f32.mrf.mxu0
    %v3530 = vadd.f32 0.0, %v3529
    %v3531 = vpop.f32.mrf.mxu0
    %v3532 = vadd.f32 0.0, %v3531
    %3533 = vmatprep.mubr.f32.mxu0 0.0
    %3534 = vmatmul.mubr.f32.gmra.mxu0 %v3455
    %v3535 = vpop.f32.mrf.mxu0
    %v3536 = vadd.f32 0.0, %v3535
    %v3537 = vpop.f32.mrf.mxu0
    %v3538 = vadd.f32 0.0, %v3537
    %3539 = vmatprep.mubr.f32.mxu0 0.0
    %3540 = vmatmul.mubr.f32.gmra.mxu0 %v3458
    %v3541 = vpop.f32.mrf.mxu0
    %v3542 = vadd.f32 0.0, %v3541
    %v3543 = vpop.f32.mrf.mxu0
    %v3544 = vadd.f32 0.0, %v3543
    %3545 = vmatprep.mubr.f32.mxu0 0.0
    %3546 = vmatmul.mubr.f32.gmra.mxu0 %v3461
    %v3547 = vpop.f32.mrf.mxu0
    %v3548 = vadd.f32 0.0, %v3547
    %v3549 = vpop.f32.mrf.mxu0
    %v3550 = vadd.f32 0.0, %v3549
    %3551 = vdwg.mxu0
    %3552 = vmatprep.subr.mxu0 0.0
    %3553 = vmatpush1.msra.mxu0 0.0
    %3554 = vmatprep.subr.mxu0 0.0
    %3555 = vmatpush1.msra.mxu0 0.0
    %3556 = vmatprep.subr.mxu0 0.0
    %3557 = vmatpush1.msra.mxu0 0.0
    %3558 = vmatprep.subr.mxu0 0.0
    %3559 = vmatpush1.msra.mxu0 0.0
    %3560 = vmatprep.subr.mxu0 0.0
    %3561 = vmatpush1.msra.mxu0 0.0
    %3562 = vmatprep.subr.mxu0 0.0
    %3563 = vmatpush1.msra.mxu0 0.0
    %3564 = vmatprep.subr.mxu0 0.0
    %3565 = vmatpush1.msra.mxu0 0.0
    %3566 = vmatprep.subr.mxu0 0.0
    %3567 = vmatpush1.msra.mxu0 0.0
    %3568 = vmatprep.subr.mxu0 0.0
    %3569 = vmatpush1.msra.mxu0 0.0
    %3570 = vmatprep.subr.mxu0 0.0
    %3571 = vmatpush1.msra.mxu0 0.0
    %3572 = vmatprep.subr.mxu0 0.0
    %3573 = vmatpush1.msra.mxu0 0.0
    %3574 = vmatprep.subr.mxu0 0.0
    %3575 = vmatpush1.msra.mxu0 0.0
    %3576 = vmatprep.subr.mxu0 0.0
    %3577 = vmatpush1.msra.mxu0 0.0
    %3578 = vmatprep.subr.mxu0 0.0
    %3579 = vmatpush1.msra.mxu0 0.0
    %3580 = vmatprep.subr.mxu0 %v3434
    %3581 = vmatpush1.msra.mxu0 %v3432
    %3582 = vmatprep.subr.mxu0 %v3430
    %3583 = vmatpush1.msra.mxu0 %v3428
    %3584 = vmatprep.subr.mxu0 0.0
    %3585 = vmatpush2.msra.mxu0 0.0
    %3586 = vmatprep.subr.mxu0 0.0
    %3587 = vmatpush2.msra.mxu0 0.0
    %3588 = vmatprep.subr.mxu0 0.0
    %3589 = vmatpush2.msra.mxu0 0.0
    %3590 = vmatprep.subr.mxu0 0.0
    %3591 = vmatpush2.msra.mxu0 0.0
    %3592 = vmatprep.subr.mxu0 0.0
    %3593 = vmatpush2.msra.mxu0 0.0
    %3594 = vmatprep.subr.mxu0 0.0
    %3595 = vmatpush2.msra.mxu0 0.0
    %3596 = vmatprep.subr.mxu0 0.0
    %3597 = vmatpush2.msra.mxu0 0.0
    %3598 = vmatprep.subr.mxu0 0.0
    %3599 = vmatpush2.msra.mxu0 0.0
    %3600 = vmatprep.subr.mxu0 0.0
    %3601 = vmatpush2.msra.mxu0 0.0
    %3602 = vmatprep.subr.mxu0 0.0
    %3603 = vmatpush2.msra.mxu0 0.0
    %3604 = vmatprep.subr.mxu0 0.0
    %3605 = vmatpush2.msra.mxu0 0.0
    %3606 = vmatprep.subr.mxu0 0.0
    %3607 = vmatpush2.msra.mxu0 0.0
    %3608 = vmatprep.subr.mxu0 0.0
    %3609 = vmatpush2.msra.mxu0 0.0
    %3610 = vmatprep.subr.mxu0 0.0
    %3611 = vmatpush2.msra.mxu0 0.0
    %3612 = vmatprep.subr.mxu0 0.0
    %3613 = vmatpush2.msra.mxu0 0.0
    %3614 = vmatprep.subr.mxu0 0.0
    %3615 = vmatpush2.msra.mxu0 0.0
    %3616 = vmatprep.mubr.f32.mxu0 0.0
    %3617 = vmatmul.mubr.f32.gmra.mxu0 %v3452
    %v3618 = vpop.f32.mrf.mxu0
    %v3619 = vadd.f32 0.0, %v3618
    %v3620 = vpop.f32.mrf.mxu0
    %v3621 = vadd.f32 0.0, %v3620
    %3622 = vmatprep.mubr.f32.mxu0 0.0
    %3623 = vmatmul.mubr.f32.gmra.mxu0 %v3455
    %v3624 = vpop.f32.mrf.mxu0
    %v3625 = vadd.f32 0.0, %v3624
    %v3626 = vpop.f32.mrf.mxu0
    %v3627 = vadd.f32 0.0, %v3626
    %3628 = vmatprep.mubr.f32.mxu0 0.0
    %3629 = vmatmul.mubr.f32.gmra.mxu0 %v3458
    %v3630 = vpop.f32.mrf.mxu0
    %v3631 = vadd.f32 0.0, %v3630
    %v3632 = vpop.f32.mrf.mxu0
    %v3633 = vadd.f32 0.0, %v3632
    %3634 = vmatprep.mubr.f32.mxu0 0.0
    %3635 = vmatmul.mubr.f32.gmra.mxu0 %v3461
    %v3636 = vpop.f32.mrf.mxu0
    %v3637 = vadd.f32 0.0, %v3636
    %v3638 = vpop.f32.mrf.mxu0
    %v3639 = vadd.f32 0.0, %v3638
    %3640 = vdwg.mxu0
    %3641 = vst [vmem:[#allocation11] sm:$0xff] %v3530
    %3642 = vst [vmem:[#allocation11 + $0x8] sm:$0xff] %v3532
    %3643 = vst [vmem:[#allocation11 + $0x10] sm:$0xff] %v3619
    %3644 = vst [vmem:[#allocation11 + $0x18] sm:$0xff] %v3621
    %3645 = vst [vmem:[#allocation11 + $0x20] sm:$0xff] %v3536
    %3646 = vst [vmem:[#allocation11 + $0x28] sm:$0xff] %v3538
    %3647 = vst [vmem:[#allocation11 + $0x30] sm:$0xff] %v3625
    %3648 = vst [vmem:[#allocation11 + $0x38] sm:$0xff] %v3627
    %3649 = vst [vmem:[#allocation11 + $0x40] sm:$0xff] %v3542
    %3650 = vst [vmem:[#allocation11 + $0x48] sm:$0xff] %v3544
    %3651 = vst [vmem:[#allocation11 + $0x50] sm:$0xff] %v3631
    %3652 = vst [vmem:[#allocation11 + $0x58] sm:$0xff] %v3633
    %3653 = vst [vmem:[#allocation11 + $0x60] sm:$0xff] %v3548
    %3654 = vst [vmem:[#allocation11 + $0x68] sm:$0xff] %v3550
    %3655 = vst [vmem:[#allocation11 + $0x70] sm:$0xff] %v3637
    %3656 = vst [vmem:[#allocation11 + $0x78] sm:$0xff] %v3639
    %3657 = vmatprep.subr.mxu0 0.0
    %3658 = vmatpush1.msra.mxu0 0.0
    %3659 = vmatprep.subr.mxu0 0.0
    %3660 = vmatpush1.msra.mxu0 0.0
    %3661 = vmatprep.subr.mxu0 0.0
    %3662 = vmatpush1.msra.mxu0 0.0
    %3663 = vmatprep.subr.mxu0 0.0
    %3664 = vmatpush1.msra.mxu0 0.0
    %3665 = vmatprep.subr.mxu0 0.0
    %3666 = vmatpush1.msra.mxu0 0.0
    %3667 = vmatprep.subr.mxu0 0.0
    %3668 = vmatpush1.msra.mxu0 0.0
    %3669 = vmatprep.subr.mxu0 0.0
    %3670 = vmatpush1.msra.mxu0 0.0
    %3671 = vmatprep.subr.mxu0 0.0
    %3672 = vmatpush1.msra.mxu0 0.0
    %3673 = vmatprep.subr.mxu0 0.0
    %3674 = vmatpush1.msra.mxu0 0.0
    %3675 = vmatprep.subr.mxu0 0.0
    %3676 = vmatpush1.msra.mxu0 0.0
    %3677 = vmatprep.subr.mxu0 0.0
    %3678 = vmatpush1.msra.mxu0 0.0
    %3679 = vmatprep.subr.mxu0 0.0
    %3680 = vmatpush1.msra.mxu0 0.0
    %3681 = vmatprep.subr.mxu0 0.0
    %3682 = vmatpush1.msra.mxu0 0.0
    %3683 = vmatprep.subr.mxu0 0.0
    %3684 = vmatpush1.msra.mxu0 0.0
    %3685 = vmatprep.subr.mxu0 %v3391
    %3686 = vmatpush1.msra.mxu0 %v3389
    %3687 = vmatprep.subr.mxu0 %v3387
    %3688 = vmatpush1.msra.mxu0 %v3385
    %3689 = vmatprep.subr.mxu0 0.0
    %3690 = vmatpush2.msra.mxu0 0.0
    %3691 = vmatprep.subr.mxu0 0.0
    %3692 = vmatpush2.msra.mxu0 0.0
    %3693 = vmatprep.subr.mxu0 0.0
    %3694 = vmatpush2.msra.mxu0 0.0
    %3695 = vmatprep.subr.mxu0 0.0
    %3696 = vmatpush2.msra.mxu0 0.0
    %3697 = vmatprep.subr.mxu0 0.0
    %3698 = vmatpush2.msra.mxu0 0.0
    %3699 = vmatprep.subr.mxu0 0.0
    %3700 = vmatpush2.msra.mxu0 0.0
    %3701 = vmatprep.subr.mxu0 0.0
    %3702 = vmatpush2.msra.mxu0 0.0
    %3703 = vmatprep.subr.mxu0 0.0
    %3704 = vmatpush2.msra.mxu0 0.0
    %3705 = vmatprep.subr.mxu0 0.0
    %3706 = vmatpush2.msra.mxu0 0.0
    %3707 = vmatprep.subr.mxu0 0.0
    %3708 = vmatpush2.msra.mxu0 0.0
    %3709 = vmatprep.subr.mxu0 0.0
    %3710 = vmatpush2.msra.mxu0 0.0
    %3711 = vmatprep.subr.mxu0 0.0
    %3712 = vmatpush2.msra.mxu0 0.0
    %3713 = vmatprep.subr.mxu0 0.0
    %3714 = vmatpush2.msra.mxu0 0.0
    %3715 = vmatprep.subr.mxu0 0.0
    %3716 = vmatpush2.msra.mxu0 0.0
    %3717 = vmatprep.subr.mxu0 0.0
    %3718 = vmatpush2.msra.mxu0 0.0
    %3719 = vmatprep.subr.mxu0 0.0
    %3720 = vmatpush2.msra.mxu0 0.0
    %3721 = vmatprep.mubr.f32.mxu0 0.0
    %3722 = vmatmul.mubr.f32.gmra.mxu0 %v3452
    %v3723 = vpop.f32.mrf.mxu0
    %v3724 = vadd.f32 0.0, %v3723
    %v3725 = vpop.f32.mrf.mxu0
    %v3726 = vadd.f32 0.0, %v3725
    %3727 = vmatprep.mubr.f32.mxu0 0.0
    %3728 = vmatmul.mubr.f32.gmra.mxu0 %v3455
    %v3729 = vpop.f32.mrf.mxu0
    %v3730 = vadd.f32 0.0, %v3729
    %v3731 = vpop.f32.mrf.mxu0
    %v3732 = vadd.f32 0.0, %v3731
    %3733 = vmatprep.mubr.f32.mxu0 0.0
    %3734 = vmatmul.mubr.f32.gmra.mxu0 %v3458
    %v3735 = vpop.f32.mrf.mxu0
    %v3736 = vadd.f32 0.0, %v3735
    %v3737 = vpop.f32.mrf.mxu0
    %v3738 = vadd.f32 0.0, %v3737
    %3739 = vmatprep.mubr.f32.mxu0 0.0
    %3740 = vmatmul.mubr.f32.gmra.mxu0 %v3461
    %v3741 = vpop.f32.mrf.mxu0
    %v3742 = vadd.f32 0.0, %v3741
    %v3743 = vpop.f32.mrf.mxu0
    %v3744 = vadd.f32 0.0, %v3743
    %3745 = vdwg.mxu0
    %3746 = vmatprep.subr.mxu0 0.0
    %3747 = vmatpush1.msra.mxu0 0.0
    %3748 = vmatprep.subr.mxu0 0.0
    %3749 = vmatpush1.msra.mxu0 0.0
    %3750 = vmatprep.subr.mxu0 0.0
    %3751 = vmatpush1.msra.mxu0 0.0
    %3752 = vmatprep.subr.mxu0 0.0
    %3753 = vmatpush1.msra.mxu0 0.0
    %3754 = vmatprep.subr.mxu0 0.0
    %3755 = vmatpush1.msra.mxu0 0.0
    %3756 = vmatprep.subr.mxu0 0.0
    %3757 = vmatpush1.msra.mxu0 0.0
    %3758 = vmatprep.subr.mxu0 0.0
    %3759 = vmatpush1.msra.mxu0 0.0
    %3760 = vmatprep.subr.mxu0 0.0
    %3761 = vmatpush1.msra.mxu0 0.0
    %3762 = vmatprep.subr.mxu0 0.0
    %3763 = vmatpush1.msra.mxu0 0.0
    %3764 = vmatprep.subr.mxu0 0.0
    %3765 = vmatpush1.msra.mxu0 0.0
    %3766 = vmatprep.subr.mxu0 0.0
    %3767 = vmatpush1.msra.mxu0 0.0
    %3768 = vmatprep.subr.mxu0 0.0
    %3769 = vmatpush1.msra.mxu0 0.0
    %3770 = vmatprep.subr.mxu0 0.0
    %3771 = vmatpush1.msra.mxu0 0.0
    %3772 = vmatprep.subr.mxu0 0.0
    %3773 = vmatpush1.msra.mxu0 0.0
    %3774 = vmatprep.subr.mxu0 %v3444
    %3775 = vmatpush1.msra.mxu0 %v3442
    %3776 = vmatprep.subr.mxu0 %v3440
    %3777 = vmatpush1.msra.mxu0 %v3438
    %3778 = vmatprep.subr.mxu0 0.0
    %3779 = vmatpush2.msra.mxu0 0.0
    %3780 = vmatprep.subr.mxu0 0.0
    %3781 = vmatpush2.msra.mxu0 0.0
    %3782 = vmatprep.subr.mxu0 0.0
    %3783 = vmatpush2.msra.mxu0 0.0
    %3784 = vmatprep.subr.mxu0 0.0
    %3785 = vmatpush2.msra.mxu0 0.0
    %3786 = vmatprep.subr.mxu0 0.0
    %3787 = vmatpush2.msra.mxu0 0.0
    %3788 = vmatprep.subr.mxu0 0.0
    %3789 = vmatpush2.msra.mxu0 0.0
    %3790 = vmatprep.subr.mxu0 0.0
    %3791 = vmatpush2.msra.mxu0 0.0
    %3792 = vmatprep.subr.mxu0 0.0
    %3793 = vmatpush2.msra.mxu0 0.0
    %3794 = vmatprep.subr.mxu0 0.0
    %3795 = vmatpush2.msra.mxu0 0.0
    %3796 = vmatprep.subr.mxu0 0.0
    %3797 = vmatpush2.msra.mxu0 0.0
    %3798 = vmatprep.subr.mxu0 0.0
    %3799 = vmatpush2.msra.mxu0 0.0
    %3800 = vmatprep.subr.mxu0 0.0
    %3801 = vmatpush2.msra.mxu0 0.0
    %3802 = vmatprep.subr.mxu0 0.0
    %3803 = vmatpush2.msra.mxu0 0.0
    %3804 = vmatprep.subr.mxu0 0.0
    %3805 = vmatpush2.msra.mxu0 0.0
    %3806 = vmatprep.subr.mxu0 0.0
    %3807 = vmatpush2.msra.mxu0 0.0
    %3808 = vmatprep.subr.mxu0 0.0
    %3809 = vmatpush2.msra.mxu0 0.0
    %3810 = vmatprep.mubr.f32.mxu0 0.0
    %3811 = vmatmul.mubr.f32.gmra.mxu0 %v3452
    %v3812 = vpop.f32.mrf.mxu0
    %v3813 = vadd.f32 0.0, %v3812
    %v3814 = vpop.f32.mrf.mxu0
    %v3815 = vadd.f32 0.0, %v3814
    %3816 = vmatprep.mubr.f32.mxu0 0.0
    %3817 = vmatmul.mubr.f32.gmra.mxu0 %v3455
    %v3818 = vpop.f32.mrf.mxu0
    %v3819 = vadd.f32 0.0, %v3818
    %v3820 = vpop.f32.mrf.mxu0
    %v3821 = vadd.f32 0.0, %v3820
    %3822 = vmatprep.mubr.f32.mxu0 0.0
    %3823 = vmatmul.mubr.f32.gmra.mxu0 %v3458
    %v3824 = vpop.f32.mrf.mxu0
    %v3825 = vadd.f32 0.0, %v3824
    %v3826 = vpop.f32.mrf.mxu0
    %v3827 = vadd.f32 0.0, %v3826
    %3828 = vmatprep.mubr.f32.mxu0 0.0
    %3829 = vmatmul.mubr.f32.gmra.mxu0 %v3461
    %v3830 = vpop.f32.mrf.mxu0
    %v3831 = vadd.f32 0.0, %v3830
    %v3832 = vpop.f32.mrf.mxu0
    %v3833 = vadd.f32 0.0, %v3832
    %3834 = vdwg.mxu0
    %3835 = vst [vmem:[#allocation11 + $0x80] sm:$0xff] %v3724
    %3836 = vst [vmem:[#allocation11 + $0x88] sm:$0xff] %v3726
    %3837 = vst [vmem:[#allocation11 + $0x90] sm:$0xff] %v3813
    %3838 = vst [vmem:[#allocation11 + $0x98] sm:$0xff] %v3815
    %3839 = vst [vmem:[#allocation11 + $0xa0] sm:$0xff] %v3730
    %3840 = vst [vmem:[#allocation11 + $0xa8] sm:$0xff] %v3732
    %3841 = vst [vmem:[#allocation11 + $0xb0] sm:$0xff] %v3819
    %3842 = vst [vmem:[#allocation11 + $0xb8] sm:$0xff] %v3821
    %3843 = vst [vmem:[#allocation11 + $0xc0] sm:$0xff] %v3736
    %3844 = vst [vmem:[#allocation11 + $0xc8] sm:$0xff] %v3738
    %3845 = vst [vmem:[#allocation11 + $0xd0] sm:$0xff] %v3825
    %3846 = vst [vmem:[#allocation11 + $0xd8] sm:$0xff] %v3827
    %3847 = vst [vmem:[#allocation11 + $0xe0] sm:$0xff] %v3742
    %3848 = vst [vmem:[#allocation11 + $0xe8] sm:$0xff] %v3744
    %3849 = vst [vmem:[#allocation11 + $0xf0] sm:$0xff] %v3831
    %3850 = vst [vmem:[#allocation11 + $0xf8] sm:$0xff] %v3833
    // Predicated region
    $region70: #{tpu_custom_call.1} parent=1 // pred_check
      _
    $region71: #{tpu_custom_call.1} parent=1 // pred_check_branch
      %3852 = sbr.rel (0) target = $region73
    $region72: #{tpu_custom_call.1} parent=1 // pred_region
      %s3854 = ssub.s32 4096, 4096
      %3855 = vsyncadd [#allocation4], %s3854
      %s3856 = sshll.u32 [#allocation11], 4
      %s3857 = int_to_ptr.vmem [resolvable:$true] %s3856
      %3862 = dma.vmem_to_hbm [thread:$0]  %s3857, 4096, %s12, [#allocation4], 512, 512, 32
    $region73: #{tpu_custom_call.1} parent=1 // pred_fallthru
      _
    // Predicated region
    $region74: #{tpu_custom_call.1} parent=1 // pred_check
      _
    $region75: #{tpu_custom_call.1} parent=1 // pred_check_branch
      %3864 = sbr.rel (0) target = $region77
    $region76: #{tpu_custom_call.1} parent=1 // pred_region
      %3865 = dma.done [#allocation4], 4096
    $region77: #{tpu_custom_call.1} parent=1 // pred_fallthru
      _
    %3866 = vsyncpa [#allocation3], 1
    %3867 = vsyncpa [#allocation6], 1
    %3868 = vsyncpa [#allocation9], 1
    %3869 = vsyncpa [#allocation4], 1

</llo_original>
